<compile_context>
chip_gen: v6e
topology: v6e:2x2x1
jax: 0.10.0
libtpu: 0.0.40
codegen_flags: <defaults>
</compile_context>

<pallas_src>
import functools

import jax
import jax.numpy as jnp
from jax.experimental import pallas as pl
from jax.experimental.pallas import tpu as pltpu


# ---------------------------------------------------------------------------
# Fused forward kernel: one grid step == one block of Bblk examples.
# ---------------------------------------------------------------------------
def _bert_forward_kernel(
    x_ref, mask_ref,
    emb_g_ref, emb_b_ref,
    wqkv_ref, bqkv_ref, wo_ref, bo_ref,
    ln1g_ref, ln1b_ref, w1_ref, b1_ref, w2_ref, b2_ref, ln2g_ref, ln2b_ref,
    wp_ref, bp_ref, wc_ref, bc_ref,
    out_ref,
    *, num_layers, num_heads, mxu_dtype):
    R, H = x_ref.shape                      # R = Bblk * S (flattened rows)
    Bblk, _, S = mask_ref.shape
    nH = num_heads
    dh = H // nH
    scale = 1.0 / (dh ** 0.5)

    def mm(a, b, dims=None):
        # bf16 MXU inputs, f32 accumulation; weights are already bf16.
        a = a.astype(mxu_dtype)
        b = b.astype(mxu_dtype)
        if dims is None:
            return jnp.dot(a, b, preferred_element_type=jnp.float32)
        return jax.lax.dot_general(a, b, dims,
                                   preferred_element_type=jnp.float32)

    def layer_norm(v, g, b):
        mu = jnp.mean(v, axis=-1, keepdims=True)
        var = jnp.mean((v - mu) ** 2, axis=-1, keepdims=True)
        return (v - mu) * jax.lax.rsqrt(var + 1e-12) * g + b

    # Additive attention bias per example; hoisted out of the layer loop.
    bias = [mask_ref[e] for e in range(Bblk)]                     # each [1, S]

    # ---- embedding LayerNorm on all Bblk*S rows at once ----
    x = layer_norm(x_ref[...], emb_g_ref[...], emb_b_ref[...])    # [R, H]

    # ---- transformer encoder layers ----
    # TODO(synk): at real BERT sizes (L=12, H=768) replace this static unroll
    # with lax.fori_loop over the stacked-weight refs and/or stream one layer
    # of weights per grid step (resident weights don't fit v7x's 64 MiB VMEM).
    for l in range(num_layers):
        # fused QKV projection on the whole row block: [R, 3H]
        qkv = mm(x, wqkv_ref[l]) + bqkv_ref[l]
        qkv_mx = qkv.astype(mxu_dtype)

        ctx_rows = []
        for e in range(Bblk):
            r0 = e * S

            # head-batched operands [nH, S, dh]; stacking along a new leading
            # (major) axis is a cheap tile placement, no lane shuffles.
            def split_heads(col0, _r0=r0):
                return jnp.stack(
                    [qkv_mx[_r0:_r0 + S, col0 + h * dh: col0 + (h + 1) * dh]
                     for h in range(nH)], axis=0)

            q_b = split_heads(0)
            k_b = split_heads(H)
            v_b = split_heads(2 * H)

            # one batched matmul for all heads; K^T folded into contraction.
            s = jnp.einsum('hqd,hkd->hqk', q_b, k_b,
                           preferred_element_type=jnp.float32)    # [nH, S, S]
            s = s * scale + bias[e]
            s = s - jnp.max(s, axis=-1, keepdims=True)
            p = jnp.exp(s)
            p = p * pl.reciprocal(jnp.sum(p, axis=-1, keepdims=True),
                                  approx=True)
            ctx_b = jnp.einsum('hqk,hkd->hqd', p.astype(mxu_dtype), v_b,
                               preferred_element_type=jnp.float32)  # [nH,S,dh]
            ctx_rows.append(
                jnp.concatenate([ctx_b[h] for h in range(nH)], axis=-1))

        # back to flattened rows for the dense path (S-aligned sublane concat)
        ctx = ctx_rows[0] if Bblk == 1 else jnp.concatenate(ctx_rows, axis=0)

        attn_out = mm(ctx, wo_ref[l]) + bo_ref[l]
        x = layer_norm(x + attn_out, ln1g_ref[l], ln1b_ref[l])

        # TODO(synk): HF BERT uses exact erf-GELU; tanh approximation here.
        inter = jax.nn.gelu(mm(x, w1_ref[l]) + b1_ref[l], approximate=True)
        ffn = mm(inter, w2_ref[l]) + b2_ref[l]
        x = layer_norm(x + ffn, ln2g_ref[l], ln2b_ref[l])

    # ---- pooler (CLS token, tanh) + classifier (sigmoid), fused tail ----
    # One lane-dense [1, Bblk] logits row per grid step.
    logit_cols = []
    for e in range(Bblk):
        cls = x[e * S:e * S + 1, :]                                # [1, H]
        pooled = jnp.tanh(mm(cls, wp_ref[...]) + bp_ref[...])     # [1, H]
        # classifier weight is in PyTorch [out=1, in=H] layout; contract dim 1
        # of both operands (no explicit transpose).
        logit_cols.append(
            jax.nn.sigmoid(mm(pooled, wc_ref[...],
                              (((1,), (1,)), ((), ()))) + bc_ref[...]))  # [1,1]
    logits = (logit_cols[0] if Bblk == 1
              else jnp.concatenate(logit_cols, axis=-1))           # [1, Bblk]
    out_ref[0] = logits


# ---------------------------------------------------------------------------
# Parameter init (synthetic small BERT, weights pre-stacked per layer)
# ---------------------------------------------------------------------------
def init_params(key, vocab=100, H=32, nH=4, L=2, inter=64, max_pos=16):
    ks = jax.random.split(key, 9)

    def w(k, shape):
        return jax.random.normal(k, shape, jnp.float32) * 0.02

    return {
        "num_heads": nH,
        "num_layers": L,
        "word_emb": w(ks[0], (vocab, H)),
        "pos_emb": w(ks[1], (max_pos, H)),
        "type_emb": w(ks[2], (2, H)),
        "emb_ln_g": jnp.ones((1, H), jnp.float32),
        "emb_ln_b": jnp.zeros((1, H), jnp.float32),
        # per-layer weights stacked along a leading L axis, [in, out] layout
        "Wqkv": w(ks[3], (L, H, 3 * H)),              # fused Q|K|V projection
        "bqkv": jnp.zeros((L, 1, 3 * H), jnp.float32),
        "Wo": w(ks[4], (L, H, H)),
        "bo": jnp.zeros((L, 1, H), jnp.float32),
        "ln1_g": jnp.ones((L, 1, H), jnp.float32),
        "ln1_b": jnp.zeros((L, 1, H), jnp.float32),
        "W1": w(ks[5], (L, H, inter)),
        "b1": jnp.zeros((L, 1, inter), jnp.float32),
        "W2": w(ks[6], (L, inter, H)),
        "b2": jnp.zeros((L, 1, H), jnp.float32),
        "ln2_g": jnp.ones((L, 1, H), jnp.float32),
        "ln2_b": jnp.zeros((L, 1, H), jnp.float32),
        "Wp": w(ks[7], (H, H)),                       # pooler ([in, out])
        "bp": jnp.zeros((1, H), jnp.float32),
        "Wc": w(ks[8], (1, H)),                       # classifier ([out, in])
        "bc": jnp.zeros((1, 1), jnp.float32),
    }


def _default_num_batch_blocks(B):
    # v7x has 2 TensorCores/chip: keep grid >= 2 so both get a shard.
    # v5e/v6e have 1 TC where extra grid steps are pure sequential overhead.
    try:
        kind = jax.devices()[0].device_kind.lower()
    except Exception:
        kind = ""
    if "v7" in kind and B >= 2 and B % 2 == 0:
        return 2
    return 1


# ---------------------------------------------------------------------------
# Forward
# ---------------------------------------------------------------------------
def fast_chinese_style_classifier(params, input_ids, attention_mask, *,
                                  mxu_dtype=jnp.bfloat16,
                                  num_batch_blocks=None):
    B, S = input_ids.shape
    H = params["word_emb"].shape[1]
    nH = params["num_heads"]
    L = params["num_layers"]

    if num_batch_blocks is None:
        num_batch_blocks = _default_num_batch_blocks(B)
    assert B % num_batch_blocks == 0
    Bblk = B // num_batch_blocks

    # ---- BERT embeddings (gathers are plain-JAX glue) ----
    # token_type_ids are not passed by the reference forward -> all segment 0.
    assert S <= params["pos_emb"].shape[0]
    pos_ids = jnp.arange(S)
    x_emb = (params["word_emb"][input_ids]
             + params["pos_emb"][pos_ids][None, :, :]
             + params["type_emb"][0][None, None, :]).astype(jnp.float32)
    x_flat = x_emb.reshape(B * S, H)                          # rows flattened

    # additive attention bias, HF BERT convention: (1 - mask) * -10000
    mask_bias = ((1.0 - attention_mask.astype(jnp.float32))
                 * -10000.0)[:, None, :]                      # [B, 1, S]

    # Pre-cast MXU weight matrices to bf16 (halves weight DMA / VMEM bytes,
    # removes per-matmul in-kernel weight casts); biases & LN params stay f32.
    def cw(w):
        return w.astype(mxu_dtype)

    weights = [
        params["emb_ln_g"], params["emb_ln_b"],
        cw(params["Wqkv"]), params["bqkv"],
        cw(params["Wo"]), params["bo"],
        params["ln1_g"], params["ln1_b"],
        cw(params["W1"]), params["b1"],
        cw(params["W2"]), params["b2"],
        params["ln2_g"], params["ln2_b"],
        cw(params["Wp"]), params["bp"],
        cw(params["Wc"]), params["bc"],
    ]

    def replicated(arr):
        nd = arr.ndim
        # Full-array block, constant index -> DMA'd once, VMEM-resident.
        # TODO(synk): at real BERT sizes stream weights per layer (extra grid
        # axis over L, "arbitrary") and/or pipeline_mode=pl.Buffered(1);
        # resident full-array weights only fit VMEM at toy sizes.
        return pl.BlockSpec(arr.shape, lambda g, _nd=nd: (0,) * _nd)

    in_specs = ([pl.BlockSpec((Bblk * S, H), lambda g: (g, 0)),
                 pl.BlockSpec((Bblk, 1, S), lambda g: (g, 0, 0))]
                + [replicated(a) for a in weights])

    out = pl.pallas_call(
        functools.partial(_bert_forward_kernel,
                          num_layers=L, num_heads=nH, mxu_dtype=mxu_dtype),
        out_shape=jax.ShapeDtypeStruct((num_batch_blocks, 1, Bblk),
                                       jnp.float32),
        grid=(num_batch_blocks,),
        in_specs=in_specs,
        out_specs=pl.BlockSpec((1, 1, Bblk), lambda g: (g, 0, 0)),
        compiler_params=pltpu.CompilerParams(
            dimension_semantics=("parallel",)),
    )(x_flat, mask_bias, *weights)

    return out.reshape(B, 1)


# ---------------------------------------------------------------------------
if __name__ == "__main__":
    B, S, H, nH, L, VOCAB = 2, 8, 32, 4, 2, 100

    key = jax.random.PRNGKey(0)
    k_params, k_ids = jax.random.split(key)
    params = init_params(k_params, vocab=VOCAB, H=H, nH=nH, L=L,
                         inter=2 * H, max_pos=16)

    input_ids = jax.random.randint(k_ids, (B, S), 0, VOCAB, dtype=jnp.int32)
    attention_mask = jnp.array(
        [[1, 1, 1, 1, 1, 1, 1, 1],
         [1, 1, 1, 1, 1, 1, 0, 0]], dtype=jnp.int32)

    out = fast_chinese_style_classifier(params, input_ids, attention_mask)
    out = jax.block_until_ready(out)
    assert out.shape == (B, 1)
    print("KERNEL_OK")
</pallas_src>

<mosaic_0001>
module attributes {stable_mosaic.version = 11 : i64} {
  func.func @_bert_forward_kernel(%arg0: i32, %arg1: memref<16x32xf32, #tpu.memory_space<vmem>>, %arg2: memref<2x1x8xf32, #tpu.memory_space<vmem>>, %arg3: memref<1x32xf32, #tpu.memory_space<vmem>>, %arg4: memref<1x32xf32, #tpu.memory_space<vmem>>, %arg5: memref<2x32x96xbf16, #tpu.memory_space<vmem>>, %arg6: memref<2x1x96xf32, #tpu.memory_space<vmem>>, %arg7: memref<2x32x32xbf16, #tpu.memory_space<vmem>>, %arg8: memref<2x1x32xf32, #tpu.memory_space<vmem>>, %arg9: memref<2x1x32xf32, #tpu.memory_space<vmem>>, %arg10: memref<2x1x32xf32, #tpu.memory_space<vmem>>, %arg11: memref<2x32x64xbf16, #tpu.memory_space<vmem>>, %arg12: memref<2x1x64xf32, #tpu.memory_space<vmem>>, %arg13: memref<2x64x32xbf16, #tpu.memory_space<vmem>>, %arg14: memref<2x1x32xf32, #tpu.memory_space<vmem>>, %arg15: memref<2x1x32xf32, #tpu.memory_space<vmem>>, %arg16: memref<2x1x32xf32, #tpu.memory_space<vmem>>, %arg17: memref<32x32xbf16, #tpu.memory_space<vmem>>, %arg18: memref<1x32xf32, #tpu.memory_space<vmem>>, %arg19: memref<1x32xbf16, #tpu.memory_space<vmem>>, %arg20: memref<1x1xf32, #tpu.memory_space<vmem>>, %arg21: memref<1x1x2xf32, #tpu.memory_space<vmem>>) attributes {dimension_semantics = [#tpu.dimension_semantics<parallel>], iteration_bounds = array<i64: 1>, scalar_prefetch = 0 : i64, scratch_operands = 0 : i64, tpu.core_type = #tpu.core_type<tc>, window_params = [{transform_indices = @transform_0, window_bounds = array<i64: 16, 32>}, {transform_indices = @transform_1, window_bounds = array<i64: 2, 1, 8>}, {pipeline_mode = #tpu.pipeline_mode<synchronous>, transform_indices = @transform_2, window_bounds = array<i64: 1, 32>}, {pipeline_mode = #tpu.pipeline_mode<synchronous>, transform_indices = @transform_3, window_bounds = array<i64: 1, 32>}, {pipeline_mode = #tpu.pipeline_mode<synchronous>, transform_indices = @transform_4, window_bounds = array<i64: 2, 32, 96>}, {pipeline_mode = #tpu.pipeline_mode<synchronous>, transform_indices = @transform_5, window_bounds = array<i64: 2, 1, 96>}, {pipeline_mode = #tpu.pipeline_mode<synchronous>, transform_indices = @transform_6, window_bounds = array<i64: 2, 32, 32>}, {pipeline_mode = #tpu.pipeline_mode<synchronous>, transform_indices = @transform_7, window_bounds = array<i64: 2, 1, 32>}, {pipeline_mode = #tpu.pipeline_mode<synchronous>, transform_indices = @transform_8, window_bounds = array<i64: 2, 1, 32>}, {pipeline_mode = #tpu.pipeline_mode<synchronous>, transform_indices = @transform_9, window_bounds = array<i64: 2, 1, 32>}, {pipeline_mode = #tpu.pipeline_mode<synchronous>, transform_indices = @transform_10, window_bounds = array<i64: 2, 32, 64>}, {pipeline_mode = #tpu.pipeline_mode<synchronous>, transform_indices = @transform_11, window_bounds = array<i64: 2, 1, 64>}, {pipeline_mode = #tpu.pipeline_mode<synchronous>, transform_indices = @transform_12, window_bounds = array<i64: 2, 64, 32>}, {pipeline_mode = #tpu.pipeline_mode<synchronous>, transform_indices = @transform_13, window_bounds = array<i64: 2, 1, 32>}, {pipeline_mode = #tpu.pipeline_mode<synchronous>, transform_indices = @transform_14, window_bounds = array<i64: 2, 1, 32>}, {pipeline_mode = #tpu.pipeline_mode<synchronous>, transform_indices = @transform_15, window_bounds = array<i64: 2, 1, 32>}, {pipeline_mode = #tpu.pipeline_mode<synchronous>, transform_indices = @transform_16, window_bounds = array<i64: 32, 32>}, {pipeline_mode = #tpu.pipeline_mode<synchronous>, transform_indices = @transform_17, window_bounds = array<i64: 1, 32>}, {pipeline_mode = #tpu.pipeline_mode<synchronous>, transform_indices = @transform_18, window_bounds = array<i64: 1, 32>}, {pipeline_mode = #tpu.pipeline_mode<synchronous>, transform_indices = @transform_19, window_bounds = array<i64: 1, 1>}, {transform_indices = @transform_20, window_bounds = array<i64: 1, 1, 2>}]} {
    %c0 = arith.constant 0 : index
    %c0_0 = arith.constant 0 : index
    %c0_1 = arith.constant 0 : index
    %0 = vector.load %arg2[%c0, %c0_0, %c0_1] : memref<2x1x8xf32, #tpu.memory_space<vmem>>, vector<1x1x8xf32>
    %1 = vector.shape_cast %0 : vector<1x1x8xf32> to vector<1x8xf32>
    %c1 = arith.constant 1 : index
    %c0_2 = arith.constant 0 : index
    %c0_3 = arith.constant 0 : index
    %2 = vector.load %arg2[%c1, %c0_2, %c0_3] : memref<2x1x8xf32, #tpu.memory_space<vmem>>, vector<1x1x8xf32>
    %3 = vector.shape_cast %2 : vector<1x1x8xf32> to vector<1x8xf32>
    %c0_4 = arith.constant 0 : index
    %c0_5 = arith.constant 0 : index
    %4 = vector.load %arg1[%c0_4, %c0_5] : memref<16x32xf32, #tpu.memory_space<vmem>>, vector<16x32xf32>
    %c0_6 = arith.constant 0 : index
    %c0_7 = arith.constant 0 : index
    %5 = vector.load %arg3[%c0_6, %c0_7] : memref<1x32xf32, #tpu.memory_space<vmem>>, vector<1x32xf32>
    %c0_8 = arith.constant 0 : index
    %c0_9 = arith.constant 0 : index
    %6 = vector.load %arg4[%c0_8, %c0_9] : memref<1x32xf32, #tpu.memory_space<vmem>>, vector<1x32xf32>
    %cst = arith.constant dense<0.000000e+00> : vector<16xf32>
    %7 = vector.multi_reduction <add>, %4, %cst [1] : vector<16x32xf32> to vector<16xf32>
    %8 = vector.shape_cast %7 : vector<16xf32> to vector<16x1xf32>
    %cst_10 = arith.constant 3.200000e+01 : f32
    %9 = vector.broadcast %cst_10 : f32 to vector<16x1xf32>
    %10 = arith.divf %8, %9 : vector<16x1xf32>
    %11 = vector.broadcast %10 : vector<16x1xf32> to vector<16x32xf32>
    %12 = arith.subf %4, %11 : vector<16x32xf32>
    %13 = arith.mulf %12, %12 : vector<16x32xf32>
    %cst_11 = arith.constant dense<0.000000e+00> : vector<16xf32>
    %14 = vector.multi_reduction <add>, %13, %cst_11 [1] : vector<16x32xf32> to vector<16xf32>
    %15 = vector.shape_cast %14 : vector<16xf32> to vector<16x1xf32>
    %cst_12 = arith.constant 3.200000e+01 : f32
    %16 = vector.broadcast %cst_12 : f32 to vector<16x1xf32>
    %17 = arith.divf %15, %16 : vector<16x1xf32>
    %18 = vector.broadcast %10 : vector<16x1xf32> to vector<16x32xf32>
    %19 = arith.subf %4, %18 : vector<16x32xf32>
    %cst_13 = arith.constant 9.99999996E-13 : f32
    %20 = vector.broadcast %cst_13 : f32 to vector<16x1xf32>
    %21 = arith.addf %17, %20 : vector<16x1xf32>
    %22 = math.rsqrt %21 : vector<16x1xf32>
    %23 = vector.broadcast %22 : vector<16x1xf32> to vector<16x32xf32>
    %24 = arith.mulf %19, %23 : vector<16x32xf32>
    %25 = vector.broadcast %5 : vector<1x32xf32> to vector<16x32xf32>
    %26 = arith.mulf %24, %25 : vector<16x32xf32>
    %27 = vector.broadcast %6 : vector<1x32xf32> to vector<16x32xf32>
    %28 = arith.addf %26, %27 : vector<16x32xf32>
    %c0_14 = arith.constant 0 : index
    %c0_15 = arith.constant 0 : index
    %c0_16 = arith.constant 0 : index
    %29 = vector.load %arg5[%c0_14, %c0_15, %c0_16] : memref<2x32x96xbf16, #tpu.memory_space<vmem>>, vector<1x32x96xbf16>
    %30 = vector.shape_cast %29 : vector<1x32x96xbf16> to vector<32x96xbf16>
    %31 = arith.truncf %28 : vector<16x32xf32> to vector<16x32xbf16>
    %cst_17 = arith.constant dense<0.000000e+00> : vector<16x96xf32>
    %32 = tpu.matmul %31, %30, %cst_17 {dimension_numbers = #tpu.dot_dimension_numbers<[1], [0], [0], [1], [0, 0, 1, 1], [], []>} : vector<16x32xbf16>, vector<32x96xbf16>, vector<16x96xf32> -> vector<16x96xf32>
    %c0_18 = arith.constant 0 : index
    %c0_19 = arith.constant 0 : index
    %c0_20 = arith.constant 0 : index
    %33 = vector.load %arg6[%c0_18, %c0_19, %c0_20] : memref<2x1x96xf32, #tpu.memory_space<vmem>>, vector<1x1x96xf32>
    %34 = vector.shape_cast %33 : vector<1x1x96xf32> to vector<1x96xf32>
    %35 = vector.broadcast %34 : vector<1x96xf32> to vector<16x96xf32>
    %36 = arith.addf %32, %35 : vector<16x96xf32>
    %37 = arith.truncf %36 : vector<16x96xf32> to vector<16x96xbf16>
    %38 = vector.extract_strided_slice %37 {offsets = [0, 0], sizes = [8, 8], strides = [1, 1]} : vector<16x96xbf16> to vector<8x8xbf16>
    %39 = vector.extract_strided_slice %37 {offsets = [0, 8], sizes = [8, 8], strides = [1, 1]} : vector<16x96xbf16> to vector<8x8xbf16>
    %40 = vector.extract_strided_slice %37 {offsets = [0, 16], sizes = [8, 8], strides = [1, 1]} : vector<16x96xbf16> to vector<8x8xbf16>
    %41 = vector.extract_strided_slice %37 {offsets = [0, 24], sizes = [8, 8], strides = [1, 1]} : vector<16x96xbf16> to vector<8x8xbf16>
    %42 = vector.shape_cast %38 : vector<8x8xbf16> to vector<1x8x8xbf16>
    %43 = vector.shape_cast %39 : vector<8x8xbf16> to vector<1x8x8xbf16>
    %44 = vector.shape_cast %40 : vector<8x8xbf16> to vector<1x8x8xbf16>
    %45 = vector.shape_cast %41 : vector<8x8xbf16> to vector<1x8x8xbf16>
    %46 = tpu.concatenate %42, %43, %44, %45 in 0 : vector<1x8x8xbf16>, vector<1x8x8xbf16>, vector<1x8x8xbf16>, vector<1x8x8xbf16> -> vector<4x8x8xbf16>
    %47 = vector.extract_strided_slice %37 {offsets = [0, 32], sizes = [8, 8], strides = [1, 1]} : vector<16x96xbf16> to vector<8x8xbf16>
    %48 = vector.extract_strided_slice %37 {offsets = [0, 40], sizes = [8, 8], strides = [1, 1]} : vector<16x96xbf16> to vector<8x8xbf16>
    %49 = vector.extract_strided_slice %37 {offsets = [0, 48], sizes = [8, 8], strides = [1, 1]} : vector<16x96xbf16> to vector<8x8xbf16>
    %50 = vector.extract_strided_slice %37 {offsets = [0, 56], sizes = [8, 8], strides = [1, 1]} : vector<16x96xbf16> to vector<8x8xbf16>
    %51 = vector.shape_cast %47 : vector<8x8xbf16> to vector<1x8x8xbf16>
    %52 = vector.shape_cast %48 : vector<8x8xbf16> to vector<1x8x8xbf16>
    %53 = vector.shape_cast %49 : vector<8x8xbf16> to vector<1x8x8xbf16>
    %54 = vector.shape_cast %50 : vector<8x8xbf16> to vector<1x8x8xbf16>
    %55 = tpu.concatenate %51, %52, %53, %54 in 0 : vector<1x8x8xbf16>, vector<1x8x8xbf16>, vector<1x8x8xbf16>, vector<1x8x8xbf16> -> vector<4x8x8xbf16>
    %56 = vector.extract_strided_slice %37 {offsets = [0, 64], sizes = [8, 8], strides = [1, 1]} : vector<16x96xbf16> to vector<8x8xbf16>
    %57 = vector.extract_strided_slice %37 {offsets = [0, 72], sizes = [8, 8], strides = [1, 1]} : vector<16x96xbf16> to vector<8x8xbf16>
    %58 = vector.extract_strided_slice %37 {offsets = [0, 80], sizes = [8, 8], strides = [1, 1]} : vector<16x96xbf16> to vector<8x8xbf16>
    %59 = vector.extract_strided_slice %37 {offsets = [0, 88], sizes = [8, 8], strides = [1, 1]} : vector<16x96xbf16> to vector<8x8xbf16>
    %60 = vector.shape_cast %56 : vector<8x8xbf16> to vector<1x8x8xbf16>
    %61 = vector.shape_cast %57 : vector<8x8xbf16> to vector<1x8x8xbf16>
    %62 = vector.shape_cast %58 : vector<8x8xbf16> to vector<1x8x8xbf16>
    %63 = vector.shape_cast %59 : vector<8x8xbf16> to vector<1x8x8xbf16>
    %64 = tpu.concatenate %60, %61, %62, %63 in 0 : vector<1x8x8xbf16>, vector<1x8x8xbf16>, vector<1x8x8xbf16>, vector<1x8x8xbf16> -> vector<4x8x8xbf16>
    "tpu.trace_start"() <{level = 10 : i32, message = "hqd,hkd->hqk"}> : () -> ()
    %cst_21 = arith.constant dense<0.000000e+00> : vector<4x8x8xf32>
    %65 = tpu.matmul %46, %55, %cst_21 {dimension_numbers = #tpu.dot_dimension_numbers<[2], [2], [1], [1], [0, 0, 0, 1, 1, 1], [0], [0]>} : vector<4x8x8xbf16>, vector<4x8x8xbf16>, vector<4x8x8xf32> -> vector<4x8x8xf32>
    "tpu.trace_stop"() : () -> ()
    %cst_22 = arith.constant 0.353553385 : f32
    %66 = vector.broadcast %cst_22 : f32 to vector<4x8x8xf32>
    %67 = arith.mulf %65, %66 : vector<4x8x8xf32>
    %68 = vector.shape_cast %1 : vector<1x8xf32> to vector<1x1x8xf32>
    %69 = vector.broadcast %68 : vector<1x1x8xf32> to vector<4x8x8xf32>
    %70 = arith.addf %67, %69 : vector<4x8x8xf32>
    %cst_23 = arith.constant dense<0xFF800000> : vector<4x8xf32>
    %71 = vector.multi_reduction <maximumf>, %70, %cst_23 [2] : vector<4x8x8xf32> to vector<4x8xf32>
    %72 = vector.shape_cast %71 : vector<4x8xf32> to vector<4x8x1xf32>
    %73 = vector.broadcast %72 : vector<4x8x1xf32> to vector<4x8x8xf32>
    %74 = arith.subf %70, %73 : vector<4x8x8xf32>
    %75 = math.exp %74 : vector<4x8x8xf32>
    %cst_24 = arith.constant dense<0.000000e+00> : vector<4x8xf32>
    %76 = vector.multi_reduction <add>, %75, %cst_24 [2] : vector<4x8x8xf32> to vector<4x8xf32>
    %77 = vector.shape_cast %76 : vector<4x8xf32> to vector<4x8x1xf32>
    %78 = tpu.reciprocal %77 {approx = true} : vector<4x8x1xf32> -> vector<4x8x1xf32>
    %79 = vector.broadcast %78 : vector<4x8x1xf32> to vector<4x8x8xf32>
    %80 = arith.mulf %75, %79 : vector<4x8x8xf32>
    %81 = arith.truncf %80 : vector<4x8x8xf32> to vector<4x8x8xbf16>
    "tpu.trace_start"() <{level = 10 : i32, message = "hqk,hkd->hqd"}> : () -> ()
    %cst_25 = arith.constant dense<0.000000e+00> : vector<4x8x8xf32>
    %82 = tpu.matmul %81, %64, %cst_25 {dimension_numbers = #tpu.dot_dimension_numbers<[2], [1], [1], [2], [0, 0, 0, 1, 1, 2], [0], [0]>} : vector<4x8x8xbf16>, vector<4x8x8xbf16>, vector<4x8x8xf32> -> vector<4x8x8xf32>
    "tpu.trace_stop"() : () -> ()
    %83 = vector.extract_strided_slice %82 {offsets = [0, 0, 0], sizes = [1, 8, 8], strides = [1, 1, 1]} : vector<4x8x8xf32> to vector<1x8x8xf32>
    %84 = vector.shape_cast %83 : vector<1x8x8xf32> to vector<8x8xf32>
    %85 = vector.extract_strided_slice %82 {offsets = [1, 0, 0], sizes = [1, 8, 8], strides = [1, 1, 1]} : vector<4x8x8xf32> to vector<1x8x8xf32>
    %86 = vector.shape_cast %85 : vector<1x8x8xf32> to vector<8x8xf32>
    %87 = vector.extract_strided_slice %82 {offsets = [2, 0, 0], sizes = [1, 8, 8], strides = [1, 1, 1]} : vector<4x8x8xf32> to vector<1x8x8xf32>
    %88 = vector.shape_cast %87 : vector<1x8x8xf32> to vector<8x8xf32>
    %89 = vector.extract_strided_slice %82 {offsets = [3, 0, 0], sizes = [1, 8, 8], strides = [1, 1, 1]} : vector<4x8x8xf32> to vector<1x8x8xf32>
    %90 = vector.shape_cast %89 : vector<1x8x8xf32> to vector<8x8xf32>
    %91 = tpu.concatenate %84, %86, %88, %90 in 1 : vector<8x8xf32>, vector<8x8xf32>, vector<8x8xf32>, vector<8x8xf32> -> vector<8x32xf32>
    %92 = vector.extract_strided_slice %37 {offsets = [8, 0], sizes = [8, 8], strides = [1, 1]} : vector<16x96xbf16> to vector<8x8xbf16>
    %93 = vector.extract_strided_slice %37 {offsets = [8, 8], sizes = [8, 8], strides = [1, 1]} : vector<16x96xbf16> to vector<8x8xbf16>
    %94 = vector.extract_strided_slice %37 {offsets = [8, 16], sizes = [8, 8], strides = [1, 1]} : vector<16x96xbf16> to vector<8x8xbf16>
    %95 = vector.extract_strided_slice %37 {offsets = [8, 24], sizes = [8, 8], strides = [1, 1]} : vector<16x96xbf16> to vector<8x8xbf16>
    %96 = vector.shape_cast %92 : vector<8x8xbf16> to vector<1x8x8xbf16>
    %97 = vector.shape_cast %93 : vector<8x8xbf16> to vector<1x8x8xbf16>
    %98 = vector.shape_cast %94 : vector<8x8xbf16> to vector<1x8x8xbf16>
    %99 = vector.shape_cast %95 : vector<8x8xbf16> to vector<1x8x8xbf16>
    %100 = tpu.concatenate %96, %97, %98, %99 in 0 : vector<1x8x8xbf16>, vector<1x8x8xbf16>, vector<1x8x8xbf16>, vector<1x8x8xbf16> -> vector<4x8x8xbf16>
    %101 = vector.extract_strided_slice %37 {offsets = [8, 32], sizes = [8, 8], strides = [1, 1]} : vector<16x96xbf16> to vector<8x8xbf16>
    %102 = vector.extract_strided_slice %37 {offsets = [8, 40], sizes = [8, 8], strides = [1, 1]} : vector<16x96xbf16> to vector<8x8xbf16>
    %103 = vector.extract_strided_slice %37 {offsets = [8, 48], sizes = [8, 8], strides = [1, 1]} : vector<16x96xbf16> to vector<8x8xbf16>
    %104 = vector.extract_strided_slice %37 {offsets = [8, 56], sizes = [8, 8], strides = [1, 1]} : vector<16x96xbf16> to vector<8x8xbf16>
    %105 = vector.shape_cast %101 : vector<8x8xbf16> to vector<1x8x8xbf16>
    %106 = vector.shape_cast %102 : vector<8x8xbf16> to vector<1x8x8xbf16>
    %107 = vector.shape_cast %103 : vector<8x8xbf16> to vector<1x8x8xbf16>
    %108 = vector.shape_cast %104 : vector<8x8xbf16> to vector<1x8x8xbf16>
    %109 = tpu.concatenate %105, %106, %107, %108 in 0 : vector<1x8x8xbf16>, vector<1x8x8xbf16>, vector<1x8x8xbf16>, vector<1x8x8xbf16> -> vector<4x8x8xbf16>
    %110 = vector.extract_strided_slice %37 {offsets = [8, 64], sizes = [8, 8], strides = [1, 1]} : vector<16x96xbf16> to vector<8x8xbf16>
    %111 = vector.extract_strided_slice %37 {offsets = [8, 72], sizes = [8, 8], strides = [1, 1]} : vector<16x96xbf16> to vector<8x8xbf16>
    %112 = vector.extract_strided_slice %37 {offsets = [8, 80], sizes = [8, 8], strides = [1, 1]} : vector<16x96xbf16> to vector<8x8xbf16>
    %113 = vector.extract_strided_slice %37 {offsets = [8, 88], sizes = [8, 8], strides = [1, 1]} : vector<16x96xbf16> to vector<8x8xbf16>
    %114 = vector.shape_cast %110 : vector<8x8xbf16> to vector<1x8x8xbf16>
    %115 = vector.shape_cast %111 : vector<8x8xbf16> to vector<1x8x8xbf16>
    %116 = vector.shape_cast %112 : vector<8x8xbf16> to vector<1x8x8xbf16>
    %117 = vector.shape_cast %113 : vector<8x8xbf16> to vector<1x8x8xbf16>
    %118 = tpu.concatenate %114, %115, %116, %117 in 0 : vector<1x8x8xbf16>, vector<1x8x8xbf16>, vector<1x8x8xbf16>, vector<1x8x8xbf16> -> vector<4x8x8xbf16>
    "tpu.trace_start"() <{level = 10 : i32, message = "hqd,hkd->hqk"}> : () -> ()
    %cst_26 = arith.constant dense<0.000000e+00> : vector<4x8x8xf32>
    %119 = tpu.matmul %100, %109, %cst_26 {dimension_numbers = #tpu.dot_dimension_numbers<[2], [2], [1], [1], [0, 0, 0, 1, 1, 1], [0], [0]>} : vector<4x8x8xbf16>, vector<4x8x8xbf16>, vector<4x8x8xf32> -> vector<4x8x8xf32>
    "tpu.trace_stop"() : () -> ()
    %cst_27 = arith.constant 0.353553385 : f32
    %120 = vector.broadcast %cst_27 : f32 to vector<4x8x8xf32>
    %121 = arith.mulf %119, %120 : vector<4x8x8xf32>
    %122 = vector.shape_cast %3 : vector<1x8xf32> to vector<1x1x8xf32>
    %123 = vector.broadcast %122 : vector<1x1x8xf32> to vector<4x8x8xf32>
    %124 = arith.addf %121, %123 : vector<4x8x8xf32>
    %cst_28 = arith.constant dense<0xFF800000> : vector<4x8xf32>
    %125 = vector.multi_reduction <maximumf>, %124, %cst_28 [2] : vector<4x8x8xf32> to vector<4x8xf32>
    %126 = vector.shape_cast %125 : vector<4x8xf32> to vector<4x8x1xf32>
    %127 = vector.broadcast %126 : vector<4x8x1xf32> to vector<4x8x8xf32>
    %128 = arith.subf %124, %127 : vector<4x8x8xf32>
    %129 = math.exp %128 : vector<4x8x8xf32>
    %cst_29 = arith.constant dense<0.000000e+00> : vector<4x8xf32>
    %130 = vector.multi_reduction <add>, %129, %cst_29 [2] : vector<4x8x8xf32> to vector<4x8xf32>
    %131 = vector.shape_cast %130 : vector<4x8xf32> to vector<4x8x1xf32>
    %132 = tpu.reciprocal %131 {approx = true} : vector<4x8x1xf32> -> vector<4x8x1xf32>
    %133 = vector.broadcast %132 : vector<4x8x1xf32> to vector<4x8x8xf32>
    %134 = arith.mulf %129, %133 : vector<4x8x8xf32>
    %135 = arith.truncf %134 : vector<4x8x8xf32> to vector<4x8x8xbf16>
    "tpu.trace_start"() <{level = 10 : i32, message = "hqk,hkd->hqd"}> : () -> ()
    %cst_30 = arith.constant dense<0.000000e+00> : vector<4x8x8xf32>
    %136 = tpu.matmul %135, %118, %cst_30 {dimension_numbers = #tpu.dot_dimension_numbers<[2], [1], [1], [2], [0, 0, 0, 1, 1, 2], [0], [0]>} : vector<4x8x8xbf16>, vector<4x8x8xbf16>, vector<4x8x8xf32> -> vector<4x8x8xf32>
    "tpu.trace_stop"() : () -> ()
    %137 = vector.extract_strided_slice %136 {offsets = [0, 0, 0], sizes = [1, 8, 8], strides = [1, 1, 1]} : vector<4x8x8xf32> to vector<1x8x8xf32>
    %138 = vector.shape_cast %137 : vector<1x8x8xf32> to vector<8x8xf32>
    %139 = vector.extract_strided_slice %136 {offsets = [1, 0, 0], sizes = [1, 8, 8], strides = [1, 1, 1]} : vector<4x8x8xf32> to vector<1x8x8xf32>
    %140 = vector.shape_cast %139 : vector<1x8x8xf32> to vector<8x8xf32>
    %141 = vector.extract_strided_slice %136 {offsets = [2, 0, 0], sizes = [1, 8, 8], strides = [1, 1, 1]} : vector<4x8x8xf32> to vector<1x8x8xf32>
    %142 = vector.shape_cast %141 : vector<1x8x8xf32> to vector<8x8xf32>
    %143 = vector.extract_strided_slice %136 {offsets = [3, 0, 0], sizes = [1, 8, 8], strides = [1, 1, 1]} : vector<4x8x8xf32> to vector<1x8x8xf32>
    %144 = vector.shape_cast %143 : vector<1x8x8xf32> to vector<8x8xf32>
    %145 = tpu.concatenate %138, %140, %142, %144 in 1 : vector<8x8xf32>, vector<8x8xf32>, vector<8x8xf32>, vector<8x8xf32> -> vector<8x32xf32>
    %146 = tpu.concatenate %91, %145 in 0 : vector<8x32xf32>, vector<8x32xf32> -> vector<16x32xf32>
    %c0_31 = arith.constant 0 : index
    %c0_32 = arith.constant 0 : index
    %c0_33 = arith.constant 0 : index
    %147 = vector.load %arg7[%c0_31, %c0_32, %c0_33] : memref<2x32x32xbf16, #tpu.memory_space<vmem>>, vector<1x32x32xbf16>
    %148 = vector.shape_cast %147 : vector<1x32x32xbf16> to vector<32x32xbf16>
    %149 = arith.truncf %146 : vector<16x32xf32> to vector<16x32xbf16>
    %cst_34 = arith.constant dense<0.000000e+00> : vector<16x32xf32>
    %150 = tpu.matmul %149, %148, %cst_34 {dimension_numbers = #tpu.dot_dimension_numbers<[1], [0], [0], [1], [0, 0, 1, 1], [], []>} : vector<16x32xbf16>, vector<32x32xbf16>, vector<16x32xf32> -> vector<16x32xf32>
    %c0_35 = arith.constant 0 : index
    %c0_36 = arith.constant 0 : index
    %c0_37 = arith.constant 0 : index
    %151 = vector.load %arg8[%c0_35, %c0_36, %c0_37] : memref<2x1x32xf32, #tpu.memory_space<vmem>>, vector<1x1x32xf32>
    %152 = vector.shape_cast %151 : vector<1x1x32xf32> to vector<1x32xf32>
    %153 = vector.broadcast %152 : vector<1x32xf32> to vector<16x32xf32>
    %154 = arith.addf %150, %153 : vector<16x32xf32>
    %155 = arith.addf %28, %154 : vector<16x32xf32>
    %c0_38 = arith.constant 0 : index
    %c0_39 = arith.constant 0 : index
    %c0_40 = arith.constant 0 : index
    %156 = vector.load %arg9[%c0_38, %c0_39, %c0_40] : memref<2x1x32xf32, #tpu.memory_space<vmem>>, vector<1x1x32xf32>
    %157 = vector.shape_cast %156 : vector<1x1x32xf32> to vector<1x32xf32>
    %c0_41 = arith.constant 0 : index
    %c0_42 = arith.constant 0 : index
    %c0_43 = arith.constant 0 : index
    %158 = vector.load %arg10[%c0_41, %c0_42, %c0_43] : memref<2x1x32xf32, #tpu.memory_space<vmem>>, vector<1x1x32xf32>
    %159 = vector.shape_cast %158 : vector<1x1x32xf32> to vector<1x32xf32>
    %cst_44 = arith.constant dense<0.000000e+00> : vector<16xf32>
    %160 = vector.multi_reduction <add>, %155, %cst_44 [1] : vector<16x32xf32> to vector<16xf32>
    %161 = vector.shape_cast %160 : vector<16xf32> to vector<16x1xf32>
    %cst_45 = arith.constant 3.200000e+01 : f32
    %162 = vector.broadcast %cst_45 : f32 to vector<16x1xf32>
    %163 = arith.divf %161, %162 : vector<16x1xf32>
    %164 = vector.broadcast %163 : vector<16x1xf32> to vector<16x32xf32>
    %165 = arith.subf %155, %164 : vector<16x32xf32>
    %166 = arith.mulf %165, %165 : vector<16x32xf32>
    %cst_46 = arith.constant dense<0.000000e+00> : vector<16xf32>
    %167 = vector.multi_reduction <add>, %166, %cst_46 [1] : vector<16x32xf32> to vector<16xf32>
    %168 = vector.shape_cast %167 : vector<16xf32> to vector<16x1xf32>
    %cst_47 = arith.constant 3.200000e+01 : f32
    %169 = vector.broadcast %cst_47 : f32 to vector<16x1xf32>
    %170 = arith.divf %168, %169 : vector<16x1xf32>
    %171 = vector.broadcast %163 : vector<16x1xf32> to vector<16x32xf32>
    %172 = arith.subf %155, %171 : vector<16x32xf32>
    %cst_48 = arith.constant 9.99999996E-13 : f32
    %173 = vector.broadcast %cst_48 : f32 to vector<16x1xf32>
    %174 = arith.addf %170, %173 : vector<16x1xf32>
    %175 = math.rsqrt %174 : vector<16x1xf32>
    %176 = vector.broadcast %175 : vector<16x1xf32> to vector<16x32xf32>
    %177 = arith.mulf %172, %176 : vector<16x32xf32>
    %178 = vector.broadcast %157 : vector<1x32xf32> to vector<16x32xf32>
    %179 = arith.mulf %177, %178 : vector<16x32xf32>
    %180 = vector.broadcast %159 : vector<1x32xf32> to vector<16x32xf32>
    %181 = arith.addf %179, %180 : vector<16x32xf32>
    %c0_49 = arith.constant 0 : index
    %c0_50 = arith.constant 0 : index
    %c0_51 = arith.constant 0 : index
    %182 = vector.load %arg11[%c0_49, %c0_50, %c0_51] : memref<2x32x64xbf16, #tpu.memory_space<vmem>>, vector<1x32x64xbf16>
    %183 = vector.shape_cast %182 : vector<1x32x64xbf16> to vector<32x64xbf16>
    %184 = arith.truncf %181 : vector<16x32xf32> to vector<16x32xbf16>
    %cst_52 = arith.constant dense<0.000000e+00> : vector<16x64xf32>
    %185 = tpu.matmul %184, %183, %cst_52 {dimension_numbers = #tpu.dot_dimension_numbers<[1], [0], [0], [1], [0, 0, 1, 1], [], []>} : vector<16x32xbf16>, vector<32x64xbf16>, vector<16x64xf32> -> vector<16x64xf32>
    %c0_53 = arith.constant 0 : index
    %c0_54 = arith.constant 0 : index
    %c0_55 = arith.constant 0 : index
    %186 = vector.load %arg12[%c0_53, %c0_54, %c0_55] : memref<2x1x64xf32, #tpu.memory_space<vmem>>, vector<1x1x64xf32>
    %187 = vector.shape_cast %186 : vector<1x1x64xf32> to vector<1x64xf32>
    %188 = vector.broadcast %187 : vector<1x64xf32> to vector<16x64xf32>
    %189 = arith.addf %185, %188 : vector<16x64xf32>
    %190 = arith.mulf %189, %189 : vector<16x64xf32>
    %191 = arith.mulf %189, %190 : vector<16x64xf32>
    %cst_56 = arith.constant 4.471500e-02 : f32
    %192 = vector.broadcast %cst_56 : f32 to vector<16x64xf32>
    %193 = arith.mulf %192, %191 : vector<16x64xf32>
    %194 = arith.addf %189, %193 : vector<16x64xf32>
    %cst_57 = arith.constant 0.797884583 : f32
    %195 = vector.broadcast %cst_57 : f32 to vector<16x64xf32>
    %196 = arith.mulf %195, %194 : vector<16x64xf32>
    %197 = math.tanh %196 : vector<16x64xf32>
    %cst_58 = arith.constant 1.000000e+00 : f32
    %198 = vector.broadcast %cst_58 : f32 to vector<16x64xf32>
    %199 = arith.addf %198, %197 : vector<16x64xf32>
    %cst_59 = arith.constant 5.000000e-01 : f32
    %200 = vector.broadcast %cst_59 : f32 to vector<16x64xf32>
    %201 = arith.mulf %200, %199 : vector<16x64xf32>
    %202 = arith.mulf %189, %201 : vector<16x64xf32>
    %c0_60 = arith.constant 0 : index
    %c0_61 = arith.constant 0 : index
    %c0_62 = arith.constant 0 : index
    %203 = vector.load %arg13[%c0_60, %c0_61, %c0_62] : memref<2x64x32xbf16, #tpu.memory_space<vmem>>, vector<1x64x32xbf16>
    %204 = vector.shape_cast %203 : vector<1x64x32xbf16> to vector<64x32xbf16>
    %205 = arith.truncf %202 : vector<16x64xf32> to vector<16x64xbf16>
    %cst_63 = arith.constant dense<0.000000e+00> : vector<16x32xf32>
    %206 = tpu.matmul %205, %204, %cst_63 {dimension_numbers = #tpu.dot_dimension_numbers<[1], [0], [0], [1], [0, 0, 1, 1], [], []>} : vector<16x64xbf16>, vector<64x32xbf16>, vector<16x32xf32> -> vector<16x32xf32>
    %c0_64 = arith.constant 0 : index
    %c0_65 = arith.constant 0 : index
    %c0_66 = arith.constant 0 : index
    %207 = vector.load %arg14[%c0_64, %c0_65, %c0_66] : memref<2x1x32xf32, #tpu.memory_space<vmem>>, vector<1x1x32xf32>
    %208 = vector.shape_cast %207 : vector<1x1x32xf32> to vector<1x32xf32>
    %209 = vector.broadcast %208 : vector<1x32xf32> to vector<16x32xf32>
    %210 = arith.addf %206, %209 : vector<16x32xf32>
    %211 = arith.addf %181, %210 : vector<16x32xf32>
    %c0_67 = arith.constant 0 : index
    %c0_68 = arith.constant 0 : index
    %c0_69 = arith.constant 0 : index
    %212 = vector.load %arg15[%c0_67, %c0_68, %c0_69] : memref<2x1x32xf32, #tpu.memory_space<vmem>>, vector<1x1x32xf32>
    %213 = vector.shape_cast %212 : vector<1x1x32xf32> to vector<1x32xf32>
    %c0_70 = arith.constant 0 : index
    %c0_71 = arith.constant 0 : index
    %c0_72 = arith.constant 0 : index
    %214 = vector.load %arg16[%c0_70, %c0_71, %c0_72] : memref<2x1x32xf32, #tpu.memory_space<vmem>>, vector<1x1x32xf32>
    %215 = vector.shape_cast %214 : vector<1x1x32xf32> to vector<1x32xf32>
    %cst_73 = arith.constant dense<0.000000e+00> : vector<16xf32>
    %216 = vector.multi_reduction <add>, %211, %cst_73 [1] : vector<16x32xf32> to vector<16xf32>
    %217 = vector.shape_cast %216 : vector<16xf32> to vector<16x1xf32>
    %cst_74 = arith.constant 3.200000e+01 : f32
    %218 = vector.broadcast %cst_74 : f32 to vector<16x1xf32>
    %219 = arith.divf %217, %218 : vector<16x1xf32>
    %220 = vector.broadcast %219 : vector<16x1xf32> to vector<16x32xf32>
    %221 = arith.subf %211, %220 : vector<16x32xf32>
    %222 = arith.mulf %221, %221 : vector<16x32xf32>
    %cst_75 = arith.constant dense<0.000000e+00> : vector<16xf32>
    %223 = vector.multi_reduction <add>, %222, %cst_75 [1] : vector<16x32xf32> to vector<16xf32>
    %224 = vector.shape_cast %223 : vector<16xf32> to vector<16x1xf32>
    %cst_76 = arith.constant 3.200000e+01 : f32
    %225 = vector.broadcast %cst_76 : f32 to vector<16x1xf32>
    %226 = arith.divf %224, %225 : vector<16x1xf32>
    %227 = vector.broadcast %219 : vector<16x1xf32> to vector<16x32xf32>
    %228 = arith.subf %211, %227 : vector<16x32xf32>
    %cst_77 = arith.constant 9.99999996E-13 : f32
    %229 = vector.broadcast %cst_77 : f32 to vector<16x1xf32>
    %230 = arith.addf %226, %229 : vector<16x1xf32>
    %231 = math.rsqrt %230 : vector<16x1xf32>
    %232 = vector.broadcast %231 : vector<16x1xf32> to vector<16x32xf32>
    %233 = arith.mulf %228, %232 : vector<16x32xf32>
    %234 = vector.broadcast %213 : vector<1x32xf32> to vector<16x32xf32>
    %235 = arith.mulf %233, %234 : vector<16x32xf32>
    %236 = vector.broadcast %215 : vector<1x32xf32> to vector<16x32xf32>
    %237 = arith.addf %235, %236 : vector<16x32xf32>
    %c1_78 = arith.constant 1 : index
    %c0_79 = arith.constant 0 : index
    %c0_80 = arith.constant 0 : index
    %238 = vector.load %arg5[%c1_78, %c0_79, %c0_80] : memref<2x32x96xbf16, #tpu.memory_space<vmem>>, vector<1x32x96xbf16>
    %239 = vector.shape_cast %238 : vector<1x32x96xbf16> to vector<32x96xbf16>
    %240 = arith.truncf %237 : vector<16x32xf32> to vector<16x32xbf16>
    %cst_81 = arith.constant dense<0.000000e+00> : vector<16x96xf32>
    %241 = tpu.matmul %240, %239, %cst_81 {dimension_numbers = #tpu.dot_dimension_numbers<[1], [0], [0], [1], [0, 0, 1, 1], [], []>} : vector<16x32xbf16>, vector<32x96xbf16>, vector<16x96xf32> -> vector<16x96xf32>
    %c1_82 = arith.constant 1 : index
    %c0_83 = arith.constant 0 : index
    %c0_84 = arith.constant 0 : index
    %242 = vector.load %arg6[%c1_82, %c0_83, %c0_84] : memref<2x1x96xf32, #tpu.memory_space<vmem>>, vector<1x1x96xf32>
    %243 = vector.shape_cast %242 : vector<1x1x96xf32> to vector<1x96xf32>
    %244 = vector.broadcast %243 : vector<1x96xf32> to vector<16x96xf32>
    %245 = arith.addf %241, %244 : vector<16x96xf32>
    %246 = arith.truncf %245 : vector<16x96xf32> to vector<16x96xbf16>
    %247 = vector.extract_strided_slice %246 {offsets = [0, 0], sizes = [8, 8], strides = [1, 1]} : vector<16x96xbf16> to vector<8x8xbf16>
    %248 = vector.extract_strided_slice %246 {offsets = [0, 8], sizes = [8, 8], strides = [1, 1]} : vector<16x96xbf16> to vector<8x8xbf16>
    %249 = vector.extract_strided_slice %246 {offsets = [0, 16], sizes = [8, 8], strides = [1, 1]} : vector<16x96xbf16> to vector<8x8xbf16>
    %250 = vector.extract_strided_slice %246 {offsets = [0, 24], sizes = [8, 8], strides = [1, 1]} : vector<16x96xbf16> to vector<8x8xbf16>
    %251 = vector.shape_cast %247 : vector<8x8xbf16> to vector<1x8x8xbf16>
    %252 = vector.shape_cast %248 : vector<8x8xbf16> to vector<1x8x8xbf16>
    %253 = vector.shape_cast %249 : vector<8x8xbf16> to vector<1x8x8xbf16>
    %254 = vector.shape_cast %250 : vector<8x8xbf16> to vector<1x8x8xbf16>
    %255 = tpu.concatenate %251, %252, %253, %254 in 0 : vector<1x8x8xbf16>, vector<1x8x8xbf16>, vector<1x8x8xbf16>, vector<1x8x8xbf16> -> vector<4x8x8xbf16>
    %256 = vector.extract_strided_slice %246 {offsets = [0, 32], sizes = [8, 8], strides = [1, 1]} : vector<16x96xbf16> to vector<8x8xbf16>
    %257 = vector.extract_strided_slice %246 {offsets = [0, 40], sizes = [8, 8], strides = [1, 1]} : vector<16x96xbf16> to vector<8x8xbf16>
    %258 = vector.extract_strided_slice %246 {offsets = [0, 48], sizes = [8, 8], strides = [1, 1]} : vector<16x96xbf16> to vector<8x8xbf16>
    %259 = vector.extract_strided_slice %246 {offsets = [0, 56], sizes = [8, 8], strides = [1, 1]} : vector<16x96xbf16> to vector<8x8xbf16>
    %260 = vector.shape_cast %256 : vector<8x8xbf16> to vector<1x8x8xbf16>
    %261 = vector.shape_cast %257 : vector<8x8xbf16> to vector<1x8x8xbf16>
    %262 = vector.shape_cast %258 : vector<8x8xbf16> to vector<1x8x8xbf16>
    %263 = vector.shape_cast %259 : vector<8x8xbf16> to vector<1x8x8xbf16>
    %264 = tpu.concatenate %260, %261, %262, %263 in 0 : vector<1x8x8xbf16>, vector<1x8x8xbf16>, vector<1x8x8xbf16>, vector<1x8x8xbf16> -> vector<4x8x8xbf16>
    %265 = vector.extract_strided_slice %246 {offsets = [0, 64], sizes = [8, 8], strides = [1, 1]} : vector<16x96xbf16> to vector<8x8xbf16>
    %266 = vector.extract_strided_slice %246 {offsets = [0, 72], sizes = [8, 8], strides = [1, 1]} : vector<16x96xbf16> to vector<8x8xbf16>
    %267 = vector.extract_strided_slice %246 {offsets = [0, 80], sizes = [8, 8], strides = [1, 1]} : vector<16x96xbf16> to vector<8x8xbf16>
    %268 = vector.extract_strided_slice %246 {offsets = [0, 88], sizes = [8, 8], strides = [1, 1]} : vector<16x96xbf16> to vector<8x8xbf16>
    %269 = vector.shape_cast %265 : vector<8x8xbf16> to vector<1x8x8xbf16>
    %270 = vector.shape_cast %266 : vector<8x8xbf16> to vector<1x8x8xbf16>
    %271 = vector.shape_cast %267 : vector<8x8xbf16> to vector<1x8x8xbf16>
    %272 = vector.shape_cast %268 : vector<8x8xbf16> to vector<1x8x8xbf16>
    %273 = tpu.concatenate %269, %270, %271, %272 in 0 : vector<1x8x8xbf16>, vector<1x8x8xbf16>, vector<1x8x8xbf16>, vector<1x8x8xbf16> -> vector<4x8x8xbf16>
    "tpu.trace_start"() <{level = 10 : i32, message = "hqd,hkd->hqk"}> : () -> ()
    %cst_85 = arith.constant dense<0.000000e+00> : vector<4x8x8xf32>
    %274 = tpu.matmul %255, %264, %cst_85 {dimension_numbers = #tpu.dot_dimension_numbers<[2], [2], [1], [1], [0, 0, 0, 1, 1, 1], [0], [0]>} : vector<4x8x8xbf16>, vector<4x8x8xbf16>, vector<4x8x8xf32> -> vector<4x8x8xf32>
    "tpu.trace_stop"() : () -> ()
    %cst_86 = arith.constant 0.353553385 : f32
    %275 = vector.broadcast %cst_86 : f32 to vector<4x8x8xf32>
    %276 = arith.mulf %274, %275 : vector<4x8x8xf32>
    %277 = vector.shape_cast %1 : vector<1x8xf32> to vector<1x1x8xf32>
    %278 = vector.broadcast %277 : vector<1x1x8xf32> to vector<4x8x8xf32>
    %279 = arith.addf %276, %278 : vector<4x8x8xf32>
    %cst_87 = arith.constant dense<0xFF800000> : vector<4x8xf32>
    %280 = vector.multi_reduction <maximumf>, %279, %cst_87 [2] : vector<4x8x8xf32> to vector<4x8xf32>
    %281 = vector.shape_cast %280 : vector<4x8xf32> to vector<4x8x1xf32>
    %282 = vector.broadcast %281 : vector<4x8x1xf32> to vector<4x8x8xf32>
    %283 = arith.subf %279, %282 : vector<4x8x8xf32>
    %284 = math.exp %283 : vector<4x8x8xf32>
    %cst_88 = arith.constant dense<0.000000e+00> : vector<4x8xf32>
    %285 = vector.multi_reduction <add>, %284, %cst_88 [2] : vector<4x8x8xf32> to vector<4x8xf32>
    %286 = vector.shape_cast %285 : vector<4x8xf32> to vector<4x8x1xf32>
    %287 = tpu.reciprocal %286 {approx = true} : vector<4x8x1xf32> -> vector<4x8x1xf32>
    %288 = vector.broadcast %287 : vector<4x8x1xf32> to vector<4x8x8xf32>
    %289 = arith.mulf %284, %288 : vector<4x8x8xf32>
    %290 = arith.truncf %289 : vector<4x8x8xf32> to vector<4x8x8xbf16>
    "tpu.trace_start"() <{level = 10 : i32, message = "hqk,hkd->hqd"}> : () -> ()
    %cst_89 = arith.constant dense<0.000000e+00> : vector<4x8x8xf32>
    %291 = tpu.matmul %290, %273, %cst_89 {dimension_numbers = #tpu.dot_dimension_numbers<[2], [1], [1], [2], [0, 0, 0, 1, 1, 2], [0], [0]>} : vector<4x8x8xbf16>, vector<4x8x8xbf16>, vector<4x8x8xf32> -> vector<4x8x8xf32>
    "tpu.trace_stop"() : () -> ()
    %292 = vector.extract_strided_slice %291 {offsets = [0, 0, 0], sizes = [1, 8, 8], strides = [1, 1, 1]} : vector<4x8x8xf32> to vector<1x8x8xf32>
    %293 = vector.shape_cast %292 : vector<1x8x8xf32> to vector<8x8xf32>
    %294 = vector.extract_strided_slice %291 {offsets = [1, 0, 0], sizes = [1, 8, 8], strides = [1, 1, 1]} : vector<4x8x8xf32> to vector<1x8x8xf32>
    %295 = vector.shape_cast %294 : vector<1x8x8xf32> to vector<8x8xf32>
    %296 = vector.extract_strided_slice %291 {offsets = [2, 0, 0], sizes = [1, 8, 8], strides = [1, 1, 1]} : vector<4x8x8xf32> to vector<1x8x8xf32>
    %297 = vector.shape_cast %296 : vector<1x8x8xf32> to vector<8x8xf32>
    %298 = vector.extract_strided_slice %291 {offsets = [3, 0, 0], sizes = [1, 8, 8], strides = [1, 1, 1]} : vector<4x8x8xf32> to vector<1x8x8xf32>
    %299 = vector.shape_cast %298 : vector<1x8x8xf32> to vector<8x8xf32>
    %300 = tpu.concatenate %293, %295, %297, %299 in 1 : vector<8x8xf32>, vector<8x8xf32>, vector<8x8xf32>, vector<8x8xf32> -> vector<8x32xf32>
    %301 = vector.extract_strided_slice %246 {offsets = [8, 0], sizes = [8, 8], strides = [1, 1]} : vector<16x96xbf16> to vector<8x8xbf16>
    %302 = vector.extract_strided_slice %246 {offsets = [8, 8], sizes = [8, 8], strides = [1, 1]} : vector<16x96xbf16> to vector<8x8xbf16>
    %303 = vector.extract_strided_slice %246 {offsets = [8, 16], sizes = [8, 8], strides = [1, 1]} : vector<16x96xbf16> to vector<8x8xbf16>
    %304 = vector.extract_strided_slice %246 {offsets = [8, 24], sizes = [8, 8], strides = [1, 1]} : vector<16x96xbf16> to vector<8x8xbf16>
    %305 = vector.shape_cast %301 : vector<8x8xbf16> to vector<1x8x8xbf16>
    %306 = vector.shape_cast %302 : vector<8x8xbf16> to vector<1x8x8xbf16>
    %307 = vector.shape_cast %303 : vector<8x8xbf16> to vector<1x8x8xbf16>
    %308 = vector.shape_cast %304 : vector<8x8xbf16> to vector<1x8x8xbf16>
    %309 = tpu.concatenate %305, %306, %307, %308 in 0 : vector<1x8x8xbf16>, vector<1x8x8xbf16>, vector<1x8x8xbf16>, vector<1x8x8xbf16> -> vector<4x8x8xbf16>
    %310 = vector.extract_strided_slice %246 {offsets = [8, 32], sizes = [8, 8], strides = [1, 1]} : vector<16x96xbf16> to vector<8x8xbf16>
    %311 = vector.extract_strided_slice %246 {offsets = [8, 40], sizes = [8, 8], strides = [1, 1]} : vector<16x96xbf16> to vector<8x8xbf16>
    %312 = vector.extract_strided_slice %246 {offsets = [8, 48], sizes = [8, 8], strides = [1, 1]} : vector<16x96xbf16> to vector<8x8xbf16>
    %313 = vector.extract_strided_slice %246 {offsets = [8, 56], sizes = [8, 8], strides = [1, 1]} : vector<16x96xbf16> to vector<8x8xbf16>
    %314 = vector.shape_cast %310 : vector<8x8xbf16> to vector<1x8x8xbf16>
    %315 = vector.shape_cast %311 : vector<8x8xbf16> to vector<1x8x8xbf16>
    %316 = vector.shape_cast %312 : vector<8x8xbf16> to vector<1x8x8xbf16>
    %317 = vector.shape_cast %313 : vector<8x8xbf16> to vector<1x8x8xbf16>
    %318 = tpu.concatenate %314, %315, %316, %317 in 0 : vector<1x8x8xbf16>, vector<1x8x8xbf16>, vector<1x8x8xbf16>, vector<1x8x8xbf16> -> vector<4x8x8xbf16>
    %319 = vector.extract_strided_slice %246 {offsets = [8, 64], sizes = [8, 8], strides = [1, 1]} : vector<16x96xbf16> to vector<8x8xbf16>
    %320 = vector.extract_strided_slice %246 {offsets = [8, 72], sizes = [8, 8], strides = [1, 1]} : vector<16x96xbf16> to vector<8x8xbf16>
    %321 = vector.extract_strided_slice %246 {offsets = [8, 80], sizes = [8, 8], strides = [1, 1]} : vector<16x96xbf16> to vector<8x8xbf16>
    %322 = vector.extract_strided_slice %246 {offsets = [8, 88], sizes = [8, 8], strides = [1, 1]} : vector<16x96xbf16> to vector<8x8xbf16>
    %323 = vector.shape_cast %319 : vector<8x8xbf16> to vector<1x8x8xbf16>
    %324 = vector.shape_cast %320 : vector<8x8xbf16> to vector<1x8x8xbf16>
    %325 = vector.shape_cast %321 : vector<8x8xbf16> to vector<1x8x8xbf16>
    %326 = vector.shape_cast %322 : vector<8x8xbf16> to vector<1x8x8xbf16>
    %327 = tpu.concatenate %323, %324, %325, %326 in 0 : vector<1x8x8xbf16>, vector<1x8x8xbf16>, vector<1x8x8xbf16>, vector<1x8x8xbf16> -> vector<4x8x8xbf16>
    "tpu.trace_start"() <{level = 10 : i32, message = "hqd,hkd->hqk"}> : () -> ()
    %cst_90 = arith.constant dense<0.000000e+00> : vector<4x8x8xf32>
    %328 = tpu.matmul %309, %318, %cst_90 {dimension_numbers = #tpu.dot_dimension_numbers<[2], [2], [1], [1], [0, 0, 0, 1, 1, 1], [0], [0]>} : vector<4x8x8xbf16>, vector<4x8x8xbf16>, vector<4x8x8xf32> -> vector<4x8x8xf32>
    "tpu.trace_stop"() : () -> ()
    %cst_91 = arith.constant 0.353553385 : f32
    %329 = vector.broadcast %cst_91 : f32 to vector<4x8x8xf32>
    %330 = arith.mulf %328, %329 : vector<4x8x8xf32>
    %331 = vector.shape_cast %3 : vector<1x8xf32> to vector<1x1x8xf32>
    %332 = vector.broadcast %331 : vector<1x1x8xf32> to vector<4x8x8xf32>
    %333 = arith.addf %330, %332 : vector<4x8x8xf32>
    %cst_92 = arith.constant dense<0xFF800000> : vector<4x8xf32>
    %334 = vector.multi_reduction <maximumf>, %333, %cst_92 [2] : vector<4x8x8xf32> to vector<4x8xf32>
    %335 = vector.shape_cast %334 : vector<4x8xf32> to vector<4x8x1xf32>
    %336 = vector.broadcast %335 : vector<4x8x1xf32> to vector<4x8x8xf32>
    %337 = arith.subf %333, %336 : vector<4x8x8xf32>
    %338 = math.exp %337 : vector<4x8x8xf32>
    %cst_93 = arith.constant dense<0.000000e+00> : vector<4x8xf32>
    %339 = vector.multi_reduction <add>, %338, %cst_93 [2] : vector<4x8x8xf32> to vector<4x8xf32>
    %340 = vector.shape_cast %339 : vector<4x8xf32> to vector<4x8x1xf32>
    %341 = tpu.reciprocal %340 {approx = true} : vector<4x8x1xf32> -> vector<4x8x1xf32>
    %342 = vector.broadcast %341 : vector<4x8x1xf32> to vector<4x8x8xf32>
    %343 = arith.mulf %338, %342 : vector<4x8x8xf32>
    %344 = arith.truncf %343 : vector<4x8x8xf32> to vector<4x8x8xbf16>
    "tpu.trace_start"() <{level = 10 : i32, message = "hqk,hkd->hqd"}> : () -> ()
    %cst_94 = arith.constant dense<0.000000e+00> : vector<4x8x8xf32>
    %345 = tpu.matmul %344, %327, %cst_94 {dimension_numbers = #tpu.dot_dimension_numbers<[2], [1], [1], [2], [0, 0, 0, 1, 1, 2], [0], [0]>} : vector<4x8x8xbf16>, vector<4x8x8xbf16>, vector<4x8x8xf32> -> vector<4x8x8xf32>
    "tpu.trace_stop"() : () -> ()
    %346 = vector.extract_strided_slice %345 {offsets = [0, 0, 0], sizes = [1, 8, 8], strides = [1, 1, 1]} : vector<4x8x8xf32> to vector<1x8x8xf32>
    %347 = vector.shape_cast %346 : vector<1x8x8xf32> to vector<8x8xf32>
    %348 = vector.extract_strided_slice %345 {offsets = [1, 0, 0], sizes = [1, 8, 8], strides = [1, 1, 1]} : vector<4x8x8xf32> to vector<1x8x8xf32>
    %349 = vector.shape_cast %348 : vector<1x8x8xf32> to vector<8x8xf32>
    %350 = vector.extract_strided_slice %345 {offsets = [2, 0, 0], sizes = [1, 8, 8], strides = [1, 1, 1]} : vector<4x8x8xf32> to vector<1x8x8xf32>
    %351 = vector.shape_cast %350 : vector<1x8x8xf32> to vector<8x8xf32>
    %352 = vector.extract_strided_slice %345 {offsets = [3, 0, 0], sizes = [1, 8, 8], strides = [1, 1, 1]} : vector<4x8x8xf32> to vector<1x8x8xf32>
    %353 = vector.shape_cast %352 : vector<1x8x8xf32> to vector<8x8xf32>
    %354 = tpu.concatenate %347, %349, %351, %353 in 1 : vector<8x8xf32>, vector<8x8xf32>, vector<8x8xf32>, vector<8x8xf32> -> vector<8x32xf32>
    %355 = tpu.concatenate %300, %354 in 0 : vector<8x32xf32>, vector<8x32xf32> -> vector<16x32xf32>
    %c1_95 = arith.constant 1 : index
    %c0_96 = arith.constant 0 : index
    %c0_97 = arith.constant 0 : index
    %356 = vector.load %arg7[%c1_95, %c0_96, %c0_97] : memref<2x32x32xbf16, #tpu.memory_space<vmem>>, vector<1x32x32xbf16>
    %357 = vector.shape_cast %356 : vector<1x32x32xbf16> to vector<32x32xbf16>
    %358 = arith.truncf %355 : vector<16x32xf32> to vector<16x32xbf16>
    %cst_98 = arith.constant dense<0.000000e+00> : vector<16x32xf32>
    %359 = tpu.matmul %358, %357, %cst_98 {dimension_numbers = #tpu.dot_dimension_numbers<[1], [0], [0], [1], [0, 0, 1, 1], [], []>} : vector<16x32xbf16>, vector<32x32xbf16>, vector<16x32xf32> -> vector<16x32xf32>
    %c1_99 = arith.constant 1 : index
    %c0_100 = arith.constant 0 : index
    %c0_101 = arith.constant 0 : index
    %360 = vector.load %arg8[%c1_99, %c0_100, %c0_101] : memref<2x1x32xf32, #tpu.memory_space<vmem>>, vector<1x1x32xf32>
    %361 = vector.shape_cast %360 : vector<1x1x32xf32> to vector<1x32xf32>
    %362 = vector.broadcast %361 : vector<1x32xf32> to vector<16x32xf32>
    %363 = arith.addf %359, %362 : vector<16x32xf32>
    %364 = arith.addf %237, %363 : vector<16x32xf32>
    %c1_102 = arith.constant 1 : index
    %c0_103 = arith.constant 0 : index
    %c0_104 = arith.constant 0 : index
    %365 = vector.load %arg9[%c1_102, %c0_103, %c0_104] : memref<2x1x32xf32, #tpu.memory_space<vmem>>, vector<1x1x32xf32>
    %366 = vector.shape_cast %365 : vector<1x1x32xf32> to vector<1x32xf32>
    %c1_105 = arith.constant 1 : index
    %c0_106 = arith.constant 0 : index
    %c0_107 = arith.constant 0 : index
    %367 = vector.load %arg10[%c1_105, %c0_106, %c0_107] : memref<2x1x32xf32, #tpu.memory_space<vmem>>, vector<1x1x32xf32>
    %368 = vector.shape_cast %367 : vector<1x1x32xf32> to vector<1x32xf32>
    %cst_108 = arith.constant dense<0.000000e+00> : vector<16xf32>
    %369 = vector.multi_reduction <add>, %364, %cst_108 [1] : vector<16x32xf32> to vector<16xf32>
    %370 = vector.shape_cast %369 : vector<16xf32> to vector<16x1xf32>
    %cst_109 = arith.constant 3.200000e+01 : f32
    %371 = vector.broadcast %cst_109 : f32 to vector<16x1xf32>
    %372 = arith.divf %370, %371 : vector<16x1xf32>
    %373 = vector.broadcast %372 : vector<16x1xf32> to vector<16x32xf32>
    %374 = arith.subf %364, %373 : vector<16x32xf32>
    %375 = arith.mulf %374, %374 : vector<16x32xf32>
    %cst_110 = arith.constant dense<0.000000e+00> : vector<16xf32>
    %376 = vector.multi_reduction <add>, %375, %cst_110 [1] : vector<16x32xf32> to vector<16xf32>
    %377 = vector.shape_cast %376 : vector<16xf32> to vector<16x1xf32>
    %cst_111 = arith.constant 3.200000e+01 : f32
    %378 = vector.broadcast %cst_111 : f32 to vector<16x1xf32>
    %379 = arith.divf %377, %378 : vector<16x1xf32>
    %380 = vector.broadcast %372 : vector<16x1xf32> to vector<16x32xf32>
    %381 = arith.subf %364, %380 : vector<16x32xf32>
    %cst_112 = arith.constant 9.99999996E-13 : f32
    %382 = vector.broadcast %cst_112 : f32 to vector<16x1xf32>
    %383 = arith.addf %379, %382 : vector<16x1xf32>
    %384 = math.rsqrt %383 : vector<16x1xf32>
    %385 = vector.broadcast %384 : vector<16x1xf32> to vector<16x32xf32>
    %386 = arith.mulf %381, %385 : vector<16x32xf32>
    %387 = vector.broadcast %366 : vector<1x32xf32> to vector<16x32xf32>
    %388 = arith.mulf %386, %387 : vector<16x32xf32>
    %389 = vector.broadcast %368 : vector<1x32xf32> to vector<16x32xf32>
    %390 = arith.addf %388, %389 : vector<16x32xf32>
    %c1_113 = arith.constant 1 : index
    %c0_114 = arith.constant 0 : index
    %c0_115 = arith.constant 0 : index
    %391 = vector.load %arg11[%c1_113, %c0_114, %c0_115] : memref<2x32x64xbf16, #tpu.memory_space<vmem>>, vector<1x32x64xbf16>
    %392 = vector.shape_cast %391 : vector<1x32x64xbf16> to vector<32x64xbf16>
    %393 = arith.truncf %390 : vector<16x32xf32> to vector<16x32xbf16>
    %cst_116 = arith.constant dense<0.000000e+00> : vector<16x64xf32>
    %394 = tpu.matmul %393, %392, %cst_116 {dimension_numbers = #tpu.dot_dimension_numbers<[1], [0], [0], [1], [0, 0, 1, 1], [], []>} : vector<16x32xbf16>, vector<32x64xbf16>, vector<16x64xf32> -> vector<16x64xf32>
    %c1_117 = arith.constant 1 : index
    %c0_118 = arith.constant 0 : index
    %c0_119 = arith.constant 0 : index
    %395 = vector.load %arg12[%c1_117, %c0_118, %c0_119] : memref<2x1x64xf32, #tpu.memory_space<vmem>>, vector<1x1x64xf32>
    %396 = vector.shape_cast %395 : vector<1x1x64xf32> to vector<1x64xf32>
    %397 = vector.broadcast %396 : vector<1x64xf32> to vector<16x64xf32>
    %398 = arith.addf %394, %397 : vector<16x64xf32>
    %399 = arith.mulf %398, %398 : vector<16x64xf32>
    %400 = arith.mulf %398, %399 : vector<16x64xf32>
    %cst_120 = arith.constant 4.471500e-02 : f32
    %401 = vector.broadcast %cst_120 : f32 to vector<16x64xf32>
    %402 = arith.mulf %401, %400 : vector<16x64xf32>
    %403 = arith.addf %398, %402 : vector<16x64xf32>
    %cst_121 = arith.constant 0.797884583 : f32
    %404 = vector.broadcast %cst_121 : f32 to vector<16x64xf32>
    %405 = arith.mulf %404, %403 : vector<16x64xf32>
    %406 = math.tanh %405 : vector<16x64xf32>
    %cst_122 = arith.constant 1.000000e+00 : f32
    %407 = vector.broadcast %cst_122 : f32 to vector<16x64xf32>
    %408 = arith.addf %407, %406 : vector<16x64xf32>
    %cst_123 = arith.constant 5.000000e-01 : f32
    %409 = vector.broadcast %cst_123 : f32 to vector<16x64xf32>
    %410 = arith.mulf %409, %408 : vector<16x64xf32>
    %411 = arith.mulf %398, %410 : vector<16x64xf32>
    %c1_124 = arith.constant 1 : index
    %c0_125 = arith.constant 0 : index
    %c0_126 = arith.constant 0 : index
    %412 = vector.load %arg13[%c1_124, %c0_125, %c0_126] : memref<2x64x32xbf16, #tpu.memory_space<vmem>>, vector<1x64x32xbf16>
    %413 = vector.shape_cast %412 : vector<1x64x32xbf16> to vector<64x32xbf16>
    %414 = arith.truncf %411 : vector<16x64xf32> to vector<16x64xbf16>
    %cst_127 = arith.constant dense<0.000000e+00> : vector<16x32xf32>
    %415 = tpu.matmul %414, %413, %cst_127 {dimension_numbers = #tpu.dot_dimension_numbers<[1], [0], [0], [1], [0, 0, 1, 1], [], []>} : vector<16x64xbf16>, vector<64x32xbf16>, vector<16x32xf32> -> vector<16x32xf32>
    %c1_128 = arith.constant 1 : index
    %c0_129 = arith.constant 0 : index
    %c0_130 = arith.constant 0 : index
    %416 = vector.load %arg14[%c1_128, %c0_129, %c0_130] : memref<2x1x32xf32, #tpu.memory_space<vmem>>, vector<1x1x32xf32>
    %417 = vector.shape_cast %416 : vector<1x1x32xf32> to vector<1x32xf32>
    %418 = vector.broadcast %417 : vector<1x32xf32> to vector<16x32xf32>
    %419 = arith.addf %415, %418 : vector<16x32xf32>
    %420 = arith.addf %390, %419 : vector<16x32xf32>
    %c1_131 = arith.constant 1 : index
    %c0_132 = arith.constant 0 : index
    %c0_133 = arith.constant 0 : index
    %421 = vector.load %arg15[%c1_131, %c0_132, %c0_133] : memref<2x1x32xf32, #tpu.memory_space<vmem>>, vector<1x1x32xf32>
    %422 = vector.shape_cast %421 : vector<1x1x32xf32> to vector<1x32xf32>
    %c1_134 = arith.constant 1 : index
    %c0_135 = arith.constant 0 : index
    %c0_136 = arith.constant 0 : index
    %423 = vector.load %arg16[%c1_134, %c0_135, %c0_136] : memref<2x1x32xf32, #tpu.memory_space<vmem>>, vector<1x1x32xf32>
    %424 = vector.shape_cast %423 : vector<1x1x32xf32> to vector<1x32xf32>
    %cst_137 = arith.constant dense<0.000000e+00> : vector<16xf32>
    %425 = vector.multi_reduction <add>, %420, %cst_137 [1] : vector<16x32xf32> to vector<16xf32>
    %426 = vector.shape_cast %425 : vector<16xf32> to vector<16x1xf32>
    %cst_138 = arith.constant 3.200000e+01 : f32
    %427 = vector.broadcast %cst_138 : f32 to vector<16x1xf32>
    %428 = arith.divf %426, %427 : vector<16x1xf32>
    %429 = vector.broadcast %428 : vector<16x1xf32> to vector<16x32xf32>
    %430 = arith.subf %420, %429 : vector<16x32xf32>
    %431 = arith.mulf %430, %430 : vector<16x32xf32>
    %cst_139 = arith.constant dense<0.000000e+00> : vector<16xf32>
    %432 = vector.multi_reduction <add>, %431, %cst_139 [1] : vector<16x32xf32> to vector<16xf32>
    %433 = vector.shape_cast %432 : vector<16xf32> to vector<16x1xf32>
    %cst_140 = arith.constant 3.200000e+01 : f32
    %434 = vector.broadcast %cst_140 : f32 to vector<16x1xf32>
    %435 = arith.divf %433, %434 : vector<16x1xf32>
    %436 = vector.broadcast %428 : vector<16x1xf32> to vector<16x32xf32>
    %437 = arith.subf %420, %436 : vector<16x32xf32>
    %cst_141 = arith.constant 9.99999996E-13 : f32
    %438 = vector.broadcast %cst_141 : f32 to vector<16x1xf32>
    %439 = arith.addf %435, %438 : vector<16x1xf32>
    %440 = math.rsqrt %439 : vector<16x1xf32>
    %441 = vector.broadcast %440 : vector<16x1xf32> to vector<16x32xf32>
    %442 = arith.mulf %437, %441 : vector<16x32xf32>
    %443 = vector.broadcast %422 : vector<1x32xf32> to vector<16x32xf32>
    %444 = arith.mulf %442, %443 : vector<16x32xf32>
    %445 = vector.broadcast %424 : vector<1x32xf32> to vector<16x32xf32>
    %446 = arith.addf %444, %445 : vector<16x32xf32>
    %447 = vector.extract_strided_slice %446 {offsets = [0, 0], sizes = [1, 32], strides = [1, 1]} : vector<16x32xf32> to vector<1x32xf32>
    %c0_142 = arith.constant 0 : index
    %c0_143 = arith.constant 0 : index
    %448 = vector.load %arg17[%c0_142, %c0_143] : memref<32x32xbf16, #tpu.memory_space<vmem>>, vector<32x32xbf16>
    %449 = arith.truncf %447 : vector<1x32xf32> to vector<1x32xbf16>
    %cst_144 = arith.constant dense<0.000000e+00> : vector<1x32xf32>
    %450 = tpu.matmul %449, %448, %cst_144 {dimension_numbers = #tpu.dot_dimension_numbers<[1], [0], [0], [1], [0, 0, 1, 1], [], []>} : vector<1x32xbf16>, vector<32x32xbf16>, vector<1x32xf32> -> vector<1x32xf32>
    %c0_145 = arith.constant 0 : index
    %c0_146 = arith.constant 0 : index
    %451 = vector.load %arg18[%c0_145, %c0_146] : memref<1x32xf32, #tpu.memory_space<vmem>>, vector<1x32xf32>
    %452 = arith.addf %450, %451 : vector<1x32xf32>
    %453 = math.tanh %452 : vector<1x32xf32>
    %c0_147 = arith.constant 0 : index
    %c0_148 = arith.constant 0 : index
    %454 = vector.load %arg19[%c0_147, %c0_148] : memref<1x32xbf16, #tpu.memory_space<vmem>>, vector<1x32xbf16>
    %455 = arith.truncf %453 : vector<1x32xf32> to vector<1x32xbf16>
    %456 = arith.extf %455 : vector<1x32xbf16> to vector<1x32xf32>
    %457 = arith.extf %454 : vector<1x32xbf16> to vector<1x32xf32>
    %cst_149 = arith.constant dense<0.000000e+00> : vector<1xf32>
    %458 = arith.mulf %456, %457 : vector<1x32xf32>
    %459 = vector.multi_reduction <add>, %458, %cst_149 [1] : vector<1x32xf32> to vector<1xf32>
    %460 = vector.shape_cast %459 : vector<1xf32> to vector<1x1xf32>
    %c0_150 = arith.constant 0 : index
    %c0_151 = arith.constant 0 : index
    %461 = vector.load %arg20[%c0_150, %c0_151] : memref<1x1xf32, #tpu.memory_space<vmem>>, vector<1x1xf32>
    %462 = arith.addf %460, %461 : vector<1x1xf32>
    %463 = arith.negf %462 : vector<1x1xf32>
    %464 = math.exp %463 : vector<1x1xf32>
    %cst_152 = arith.constant 1.000000e+00 : f32
    %465 = vector.broadcast %cst_152 : f32 to vector<1x1xf32>
    %466 = arith.addf %465, %464 : vector<1x1xf32>
    %467 = arith.divf %465, %466 : vector<1x1xf32>
    %468 = vector.extract_strided_slice %446 {offsets = [8, 0], sizes = [1, 32], strides = [1, 1]} : vector<16x32xf32> to vector<1x32xf32>
    %c0_153 = arith.constant 0 : index
    %c0_154 = arith.constant 0 : index
    %469 = vector.load %arg17[%c0_153, %c0_154] : memref<32x32xbf16, #tpu.memory_space<vmem>>, vector<32x32xbf16>
    %470 = arith.truncf %468 : vector<1x32xf32> to vector<1x32xbf16>
    %cst_155 = arith.constant dense<0.000000e+00> : vector<1x32xf32>
    %471 = tpu.matmul %470, %469, %cst_155 {dimension_numbers = #tpu.dot_dimension_numbers<[1], [0], [0], [1], [0, 0, 1, 1], [], []>} : vector<1x32xbf16>, vector<32x32xbf16>, vector<1x32xf32> -> vector<1x32xf32>
    %c0_156 = arith.constant 0 : index
    %c0_157 = arith.constant 0 : index
    %472 = vector.load %arg18[%c0_156, %c0_157] : memref<1x32xf32, #tpu.memory_space<vmem>>, vector<1x32xf32>
    %473 = arith.addf %471, %472 : vector<1x32xf32>
    %474 = math.tanh %473 : vector<1x32xf32>
    %c0_158 = arith.constant 0 : index
    %c0_159 = arith.constant 0 : index
    %475 = vector.load %arg19[%c0_158, %c0_159] : memref<1x32xbf16, #tpu.memory_space<vmem>>, vector<1x32xbf16>
    %476 = arith.truncf %474 : vector<1x32xf32> to vector<1x32xbf16>
    %477 = arith.extf %476 : vector<1x32xbf16> to vector<1x32xf32>
    %478 = arith.extf %475 : vector<1x32xbf16> to vector<1x32xf32>
    %cst_160 = arith.constant dense<0.000000e+00> : vector<1xf32>
    %479 = arith.mulf %477, %478 : vector<1x32xf32>
    %480 = vector.multi_reduction <add>, %479, %cst_160 [1] : vector<1x32xf32> to vector<1xf32>
    %481 = vector.shape_cast %480 : vector<1xf32> to vector<1x1xf32>
    %c0_161 = arith.constant 0 : index
    %c0_162 = arith.constant 0 : index
    %482 = vector.load %arg20[%c0_161, %c0_162] : memref<1x1xf32, #tpu.memory_space<vmem>>, vector<1x1xf32>
    %483 = arith.addf %481, %482 : vector<1x1xf32>
    %484 = arith.negf %483 : vector<1x1xf32>
    %485 = math.exp %484 : vector<1x1xf32>
    %cst_163 = arith.constant 1.000000e+00 : f32
    %486 = vector.broadcast %cst_163 : f32 to vector<1x1xf32>
    %487 = arith.addf %486, %485 : vector<1x1xf32>
    %488 = arith.divf %486, %487 : vector<1x1xf32>
    %489 = tpu.concatenate %467, %488 in 1 : vector<1x1xf32>, vector<1x1xf32> -> vector<1x2xf32>
    %c0_164 = arith.constant 0 : index
    %c0_165 = arith.constant 0 : index
    %c0_166 = arith.constant 0 : index
    %490 = vector.load %arg21[%c0_164, %c0_165, %c0_166] : memref<1x1x2xf32, #tpu.memory_space<vmem>>, vector<1x1x2xf32>
    %491 = vector.shape_cast %490 : vector<1x1x2xf32> to vector<1x2xf32>
    %492 = vector.shape_cast %489 : vector<1x2xf32> to vector<1x1x2xf32>
    tpu.vector_store %arg21[%c0_164, %c0_165, %c0_166], %492 {strides = array<i32>} : memref<1x1x2xf32, #tpu.memory_space<vmem>>, vector<1x1x2xf32>,
    return
  }
  func.func @transform_0(%arg0: i32) -> (i32, i32) {
    %c0_i32 = arith.constant 0 : i32
    %c0_i32_0 = arith.constant 0 : i32
    return %arg0, %c0_i32 : i32, i32
  }
  func.func @transform_1(%arg0: i32) -> (i32, i32, i32) {
    %c0_i32 = arith.constant 0 : i32
    %c0_i32_0 = arith.constant 0 : i32
    %c0_i32_1 = arith.constant 0 : i32
    return %arg0, %c0_i32, %c0_i32_0 : i32, i32, i32
  }
  func.func @transform_2(%arg0: i32) -> (i32, i32) {
    %c0_i32 = arith.constant 0 : i32
    %c0_i32_0 = arith.constant 0 : i32
    %c0_i32_1 = arith.constant 0 : i32
    return %c0_i32, %c0_i32_0 : i32, i32
  }
  func.func @transform_3(%arg0: i32) -> (i32, i32) {
    %c0_i32 = arith.constant 0 : i32
    %c0_i32_0 = arith.constant 0 : i32
    %c0_i32_1 = arith.constant 0 : i32
    return %c0_i32, %c0_i32_0 : i32, i32
  }
  func.func @transform_4(%arg0: i32) -> (i32, i32, i32) {
    %c0_i32 = arith.constant 0 : i32
    %c0_i32_0 = arith.constant 0 : i32
    %c0_i32_1 = arith.constant 0 : i32
    %c0_i32_2 = arith.constant 0 : i32
    return %c0_i32, %c0_i32_0, %c0_i32_1 : i32, i32, i32
  }
  func.func @transform_5(%arg0: i32) -> (i32, i32, i32) {
    %c0_i32 = arith.constant 0 : i32
    %c0_i32_0 = arith.constant 0 : i32
    %c0_i32_1 = arith.constant 0 : i32
    %c0_i32_2 = arith.constant 0 : i32
    return %c0_i32, %c0_i32_0, %c0_i32_1 : i32, i32, i32
  }
  func.func @transform_6(%arg0: i32) -> (i32, i32, i32) {
    %c0_i32 = arith.constant 0 : i32
    %c0_i32_0 = arith.constant 0 : i32
    %c0_i32_1 = arith.constant 0 : i32
    %c0_i32_2 = arith.constant 0 : i32
    return %c0_i32, %c0_i32_0, %c0_i32_1 : i32, i32, i32
  }
  func.func @transform_7(%arg0: i32) -> (i32, i32, i32) {
    %c0_i32 = arith.constant 0 : i32
    %c0_i32_0 = arith.constant 0 : i32
    %c0_i32_1 = arith.constant 0 : i32
    %c0_i32_2 = arith.constant 0 : i32
    return %c0_i32, %c0_i32_0, %c0_i32_1 : i32, i32, i32
  }
  func.func @transform_8(%arg0: i32) -> (i32, i32, i32) {
    %c0_i32 = arith.constant 0 : i32
    %c0_i32_0 = arith.constant 0 : i32
    %c0_i32_1 = arith.constant 0 : i32
    %c0_i32_2 = arith.constant 0 : i32
    return %c0_i32, %c0_i32_0, %c0_i32_1 : i32, i32, i32
  }
  func.func @transform_9(%arg0: i32) -> (i32, i32, i32) {
    %c0_i32 = arith.constant 0 : i32
    %c0_i32_0 = arith.constant 0 : i32
    %c0_i32_1 = arith.constant 0 : i32
    %c0_i32_2 = arith.constant 0 : i32
    return %c0_i32, %c0_i32_0, %c0_i32_1 : i32, i32, i32
  }
  func.func @transform_10(%arg0: i32) -> (i32, i32, i32) {
    %c0_i32 = arith.constant 0 : i32
    %c0_i32_0 = arith.constant 0 : i32
    %c0_i32_1 = arith.constant 0 : i32
    %c0_i32_2 = arith.constant 0 : i32
    return %c0_i32, %c0_i32_0, %c0_i32_1 : i32, i32, i32
  }
  func.func @transform_11(%arg0: i32) -> (i32, i32, i32) {
    %c0_i32 = arith.constant 0 : i32
    %c0_i32_0 = arith.constant 0 : i32
    %c0_i32_1 = arith.constant 0 : i32
    %c0_i32_2 = arith.constant 0 : i32
    return %c0_i32, %c0_i32_0, %c0_i32_1 : i32, i32, i32
  }
  func.func @transform_12(%arg0: i32) -> (i32, i32, i32) {
    %c0_i32 = arith.constant 0 : i32
    %c0_i32_0 = arith.constant 0 : i32
    %c0_i32_1 = arith.constant 0 : i32
    %c0_i32_2 = arith.constant 0 : i32
    return %c0_i32, %c0_i32_0, %c0_i32_1 : i32, i32, i32
  }
  func.func @transform_13(%arg0: i32) -> (i32, i32, i32) {
    %c0_i32 = arith.constant 0 : i32
    %c0_i32_0 = arith.constant 0 : i32
    %c0_i32_1 = arith.constant 0 : i32
    %c0_i32_2 = arith.constant 0 : i32
    return %c0_i32, %c0_i32_0, %c0_i32_1 : i32, i32, i32
  }
  func.func @transform_14(%arg0: i32) -> (i32, i32, i32) {
    %c0_i32 = arith.constant 0 : i32
    %c0_i32_0 = arith.constant 0 : i32
    %c0_i32_1 = arith.constant 0 : i32
    %c0_i32_2 = arith.constant 0 : i32
    return %c0_i32, %c0_i32_0, %c0_i32_1 : i32, i32, i32
  }
  func.func @transform_15(%arg0: i32) -> (i32, i32, i32) {
    %c0_i32 = arith.constant 0 : i32
    %c0_i32_0 = arith.constant 0 : i32
    %c0_i32_1 = arith.constant 0 : i32
    %c0_i32_2 = arith.constant 0 : i32
    return %c0_i32, %c0_i32_0, %c0_i32_1 : i32, i32, i32
  }
  func.func @transform_16(%arg0: i32) -> (i32, i32) {
    %c0_i32 = arith.constant 0 : i32
    %c0_i32_0 = arith.constant 0 : i32
    %c0_i32_1 = arith.constant 0 : i32
    return %c0_i32, %c0_i32_0 : i32, i32
  }
  func.func @transform_17(%arg0: i32) -> (i32, i32) {
    %c0_i32 = arith.constant 0 : i32
    %c0_i32_0 = arith.constant 0 : i32
    %c0_i32_1 = arith.constant 0 : i32
    return %c0_i32, %c0_i32_0 : i32, i32
  }
  func.func @transform_18(%arg0: i32) -> (i32, i32) {
    %c0_i32 = arith.constant 0 : i32
    %c0_i32_0 = arith.constant 0 : i32
    %c0_i32_1 = arith.constant 0 : i32
    return %c0_i32, %c0_i32_0 : i32, i32
  }
  func.func @transform_19(%arg0: i32) -> (i32, i32) {
    %c0_i32 = arith.constant 0 : i32
    %c0_i32_0 = arith.constant 0 : i32
    %c0_i32_1 = arith.constant 0 : i32
    return %c0_i32, %c0_i32_0 : i32, i32
  }
  func.func @transform_20(%arg0: i32) -> (i32, i32, i32) {
    %c0_i32 = arith.constant 0 : i32
    %c0_i32_0 = arith.constant 0 : i32
    %c0_i32_1 = arith.constant 0 : i32
    return %arg0, %c0_i32, %c0_i32_0 : i32, i32, i32
  }
}

</mosaic_0001>

<llo_original>
// kernel: tpu_custom_call.1
$region0: #{tpu_custom_call.1}
  #allocation0 [shape = 'u32[]', space=smem, size = 0x4, offset = 0x4, fixed_abs, tag = 'smem constant byte address 0x4 - core index']
  #allocation1 [shape = 'u32[144,128]{1,0:T(1,128)}', space=vmem, size = 0x12000, scoped, tag = 'internal scratch']
  #allocation2 [shape = 'f32[1,1]{1,0:T(1,128)S(1)}', space=vmem, size = 0x200, scoped, tag = 'scoped memory for tpu_custom_call.1']
  %s0 = inlined_call_operand.hbm [shape: f32[16,32], index: 0, kind: input, shape index: {}]
  %s1 = inlined_call_operand.hbm [shape: f32[2,1,8], index: 1, kind: input, shape index: {}]
  %s2 = inlined_call_operand.hbm [shape: f32[1,32], index: 2, kind: input, shape index: {}]
  %s3 = inlined_call_operand.hbm [shape: f32[1,32], index: 3, kind: input, shape index: {}]
  %s4 = inlined_call_operand.vmem [shape: bf16[2,32,96], index: 4, kind: input, shape index: {}]
  %s5 = inlined_call_operand.hbm [shape: f32[2,1,96], index: 5, kind: input, shape index: {}]
  %s6 = inlined_call_operand.vmem [shape: bf16[2,32,32], index: 6, kind: input, shape index: {}]
  %s7 = inlined_call_operand.hbm [shape: f32[2,1,32], index: 7, kind: input, shape index: {}]
  %s8 = inlined_call_operand.hbm [shape: f32[2,1,32], index: 8, kind: input, shape index: {}]
  %s9 = inlined_call_operand.vmem [shape: f32[2,1,32], index: 9, kind: input, shape index: {}]
  %s10 = inlined_call_operand.vmem [shape: bf16[2,32,64], index: 10, kind: input, shape index: {}]
  %s11 = inlined_call_operand.vmem [shape: f32[2,1,64], index: 11, kind: input, shape index: {}]
  %s12 = inlined_call_operand.vmem [shape: bf16[2,64,32], index: 12, kind: input, shape index: {}]
  %s13 = inlined_call_operand.vmem [shape: f32[2,1,32], index: 13, kind: input, shape index: {}]
  %s14 = inlined_call_operand.vmem [shape: f32[2,1,32], index: 14, kind: input, shape index: {}]
  %s15 = inlined_call_operand.vmem [shape: f32[2,1,32], index: 15, kind: input, shape index: {}]
  %s16 = inlined_call_operand.vmem [shape: bf16[32,32], index: 16, kind: input, shape index: {}]
  %s17 = inlined_call_operand.vmem [shape: f32[1,32], index: 17, kind: input, shape index: {}]
  %s18 = inlined_call_operand.vmem [shape: bf16[1,32], index: 18, kind: input, shape index: {}]
  %s19 = inlined_call_operand.<no memory space> [shape: f32[1,1], index: 19, kind: input, shape index: {}]
  %s20 = inlined_call_operand.hbm [shape: f32[1,1,2], index: 20, kind: output, shape index: {}]
  %s21 = sld [smem:[#allocation0]]
  $region118: #{tpu_custom_call.1} parent=0
    _
  %s23 = ssub.s32 1, %s21
  %s24 = scalar_select 0, %s23, %s21
  %v25 = vstv %s19
  %26 = vst [vmem:[#allocation2] sm:$0x1] %v25
  $region1: #{tpu_custom_call.1} parent=0
    #allocation3 [shape = 'u8[8192]{0}', space=vmem, size = 0x2000, scoped, tag = 'input window, operand 0, single buffered']
    #allocation4 [shape = 's32[1]{0}', space=sflag, size = 0x4, scoped, tag = 'scoped memory for tpu_custom_call.1']
    #allocation5 [shape = 's32[1]{0}', space=sflag, size = 0x4, scoped, tag = 'scoped memory for tpu_custom_call.1']
    #allocation6 [shape = 'u8[1024]{0}', space=vmem, size = 0x400, scoped, tag = 'input window, operand 1, single buffered']
    #allocation7 [shape = 's32[1]{0}', space=sflag, size = 0x4, scoped, tag = 'scoped memory for tpu_custom_call.1']
    #allocation8 [shape = 'u8[512]{0}', space=vmem, size = 0x400, scoped, tag = 'input window, operand 2, single buffered']
    #allocation9 [shape = 'u8[512]{0}', space=vmem, size = 0x400, scoped, tag = 'input window, operand 3, single buffered']
    #allocation10 [shape = 's32[1]{0}', space=sflag, size = 0x4, scoped, tag = 'scoped memory for tpu_custom_call.1']
    #allocation11 [shape = 'u8[1024]{0}', space=vmem, size = 0x400, scoped, tag = 'input window, operand 5, single buffered']
    #allocation12 [shape = 'u8[1024]{0}', space=vmem, size = 0x400, scoped, tag = 'input window, operand 7, single buffered']
    #allocation13 [shape = 's32[1]{0}', space=sflag, size = 0x4, scoped, tag = 'scoped memory for tpu_custom_call.1']
    #allocation14 [shape = 'u8[1024]{0}', space=vmem, size = 0x400, scoped, tag = 'input window, operand 8, single buffered']
    #allocation15 [shape = 'u8[512]{0}', space=vmem, size = 0x400, scoped, tag = 'output window, operand 0, single buffered']
    %27 = vsyncpa [#allocation4], 0
    %28 = vsyncpa [#allocation7], 0
    %29 = vsyncpa [#allocation10], 0
    %30 = vsyncpa [#allocation13], 0
    %31 = vsyncpa [#allocation5], 0
    // Predicated region
    $region2: #{tpu_custom_call.1} parent=1 // pred_check
      _
    $region3: #{tpu_custom_call.1} parent=1 // pred_check_branch
      %33 = sbr.rel (0) target = $region5
    $region4: #{tpu_custom_call.1} parent=1 // pred_region
      %s35 = ssub.s32 256, 256
      %36 = vsyncadd [#allocation4], %s35
      %s37 = sshll.u32 [#allocation3], 4
      %s38 = int_to_ptr.vmem [resolvable:$true] %s37
      %43 = dma.hbm_to_vmem [thread:$0]  %s0, 256, %s38, [#allocation4], 128, 128, 8
    $region5: #{tpu_custom_call.1} parent=1 // pred_fallthru
      _
    // Predicated region
    $region6: #{tpu_custom_call.1} parent=1 // pred_check
      _
    $region7: #{tpu_custom_call.1} parent=1 // pred_check_branch
      %45 = sbr.rel (0) target = $region9
    $region8: #{tpu_custom_call.1} parent=1 // pred_region
      %s47 = ssub.s32 32, 32
      %48 = vsyncadd [#allocation7], %s47
      %s49 = sshll.u32 [#allocation6], 4
      %s50 = int_to_ptr.vmem [resolvable:$true] %s49
      %55 = dma.hbm_to_vmem [thread:$0]  %s1, 32, %s50, [#allocation7], 16, 16, 1
    $region9: #{tpu_custom_call.1} parent=1 // pred_fallthru
      _
    // Predicated region
    $region10: #{tpu_custom_call.1} parent=1 // pred_check
      _
    $region11: #{tpu_custom_call.1} parent=1 // pred_check_branch
      %57 = sbr.rel (0) target = $region13
    $region12: #{tpu_custom_call.1} parent=1 // pred_region
      %s59 = ssub.s32 16, 16
      %60 = vsyncadd [#allocation7], %s59
      %s62 = sshll.u32 [#allocation8], 4
      %s63 = int_to_ptr.vmem [resolvable:$true] %s62
      %65 = dma.hbm_to_vmem [thread:$0]  %s2, 16, %s63, [#allocation7]
    $region13: #{tpu_custom_call.1} parent=1 // pred_fallthru
      _
    // Predicated region
    $region14: #{tpu_custom_call.1} parent=1 // pred_check
      _
    $region15: #{tpu_custom_call.1} parent=1 // pred_check_branch
      %67 = sbr.rel (0) target = $region17
    $region16: #{tpu_custom_call.1} parent=1 // pred_region
      %s69 = ssub.s32 16, 16
      %70 = vsyncadd [#allocation10], %s69
      %s72 = sshll.u32 [#allocation9], 4
      %s73 = int_to_ptr.vmem [resolvable:$true] %s72
      %75 = dma.hbm_to_vmem [thread:$0]  %s3, 16, %s73, [#allocation10]
    $region17: #{tpu_custom_call.1} parent=1 // pred_fallthru
      _
    // Predicated region
    $region18: #{tpu_custom_call.1} parent=1 // pred_check
      _
    $region19: #{tpu_custom_call.1} parent=1 // pred_check_branch
      %77 = sbr.rel (0) target = $region21
    $region20: #{tpu_custom_call.1} parent=1 // pred_region
      _
    $region21: #{tpu_custom_call.1} parent=1 // pred_fallthru
      _
    // Predicated region
    $region22: #{tpu_custom_call.1} parent=1 // pred_check
      _
    $region23: #{tpu_custom_call.1} parent=1 // pred_check_branch
      %79 = sbr.rel (0) target = $region25
    $region24: #{tpu_custom_call.1} parent=1 // pred_region
      %s81 = ssub.s32 32, 32
      %82 = vsyncadd [#allocation10], %s81
      %s83 = sshll.u32 [#allocation11], 4
      %s84 = int_to_ptr.vmem [resolvable:$true] %s83
      %89 = dma.hbm_to_vmem [thread:$0]  %s5, 32, %s84, [#allocation10], 16, 16, 1
    $region25: #{tpu_custom_call.1} parent=1 // pred_fallthru
      _
    // Predicated region
    $region26: #{tpu_custom_call.1} parent=1 // pred_check
      _
    $region27: #{tpu_custom_call.1} parent=1 // pred_check_branch
      %91 = sbr.rel (0) target = $region29
    $region28: #{tpu_custom_call.1} parent=1 // pred_region
      _
    $region29: #{tpu_custom_call.1} parent=1 // pred_fallthru
      _
    // Predicated region
    $region30: #{tpu_custom_call.1} parent=1 // pred_check
      _
    $region31: #{tpu_custom_call.1} parent=1 // pred_check_branch
      %93 = sbr.rel (0) target = $region33
    $region32: #{tpu_custom_call.1} parent=1 // pred_region
      %s95 = ssub.s32 32, 32
      %96 = vsyncadd [#allocation13], %s95
      %s97 = sshll.u32 [#allocation12], 4
      %s98 = int_to_ptr.vmem [resolvable:$true] %s97
      %103 = dma.hbm_to_vmem [thread:$0]  %s7, 32, %s98, [#allocation13], 16, 16, 1
    $region33: #{tpu_custom_call.1} parent=1 // pred_fallthru
      _
    // Predicated region
    $region34: #{tpu_custom_call.1} parent=1 // pred_check
      _
    $region35: #{tpu_custom_call.1} parent=1 // pred_check_branch
      %105 = sbr.rel (0) target = $region37
    $region36: #{tpu_custom_call.1} parent=1 // pred_region
      %s107 = ssub.s32 32, 32
      %108 = vsyncadd [#allocation13], %s107
      %s109 = sshll.u32 [#allocation14], 4
      %s110 = int_to_ptr.vmem [resolvable:$true] %s109
      %115 = dma.hbm_to_vmem [thread:$0]  %s8, 32, %s110, [#allocation13], 16, 16, 1
    $region37: #{tpu_custom_call.1} parent=1 // pred_fallthru
      _
    // Predicated region
    $region38: #{tpu_custom_call.1} parent=1 // pred_check
      _
    $region39: #{tpu_custom_call.1} parent=1 // pred_check_branch
      %117 = sbr.rel (0) target = $region41
    $region40: #{tpu_custom_call.1} parent=1 // pred_region
      _
    $region41: #{tpu_custom_call.1} parent=1 // pred_fallthru
      _
    // Predicated region
    $region42: #{tpu_custom_call.1} parent=1 // pred_check
      _
    $region43: #{tpu_custom_call.1} parent=1 // pred_check_branch
      %119 = sbr.rel (0) target = $region45
    $region44: #{tpu_custom_call.1} parent=1 // pred_region
      _
    $region45: #{tpu_custom_call.1} parent=1 // pred_fallthru
      _
    // Predicated region
    $region46: #{tpu_custom_call.1} parent=1 // pred_check
      _
    $region47: #{tpu_custom_call.1} parent=1 // pred_check_branch
      %121 = sbr.rel (0) target = $region49
    $region48: #{tpu_custom_call.1} parent=1 // pred_region
      _
    $region49: #{tpu_custom_call.1} parent=1 // pred_fallthru
      _
    // Predicated region
    $region50: #{tpu_custom_call.1} parent=1 // pred_check
      _
    $region51: #{tpu_custom_call.1} parent=1 // pred_check_branch
      %123 = sbr.rel (0) target = $region53
    $region52: #{tpu_custom_call.1} parent=1 // pred_region
      _
    $region53: #{tpu_custom_call.1} parent=1 // pred_fallthru
      _
    // Predicated region
    $region54: #{tpu_custom_call.1} parent=1 // pred_check
      _
    $region55: #{tpu_custom_call.1} parent=1 // pred_check_branch
      %125 = sbr.rel (0) target = $region57
    $region56: #{tpu_custom_call.1} parent=1 // pred_region
      _
    $region57: #{tpu_custom_call.1} parent=1 // pred_fallthru
      _
    // Predicated region
    $region58: #{tpu_custom_call.1} parent=1 // pred_check
      _
    $region59: #{tpu_custom_call.1} parent=1 // pred_check_branch
      %127 = sbr.rel (0) target = $region61
    $region60: #{tpu_custom_call.1} parent=1 // pred_region
      _
    $region61: #{tpu_custom_call.1} parent=1 // pred_fallthru
      _
    // Predicated region
    $region62: #{tpu_custom_call.1} parent=1 // pred_check
      _
    $region63: #{tpu_custom_call.1} parent=1 // pred_check_branch
      %129 = sbr.rel (0) target = $region65
    $region64: #{tpu_custom_call.1} parent=1 // pred_region
      _
    $region65: #{tpu_custom_call.1} parent=1 // pred_fallthru
      _
    // Predicated region
    $region66: #{tpu_custom_call.1} parent=1 // pred_check
      _
    $region67: #{tpu_custom_call.1} parent=1 // pred_check_branch
      %131 = sbr.rel (0) target = $region69
    $region68: #{tpu_custom_call.1} parent=1 // pred_region
      _
    $region69: #{tpu_custom_call.1} parent=1 // pred_fallthru
      _
    // Predicated region
    $region70: #{tpu_custom_call.1} parent=1 // pred_check
      _
    $region71: #{tpu_custom_call.1} parent=1 // pred_check_branch
      %133 = sbr.rel (0) target = $region73
    $region72: #{tpu_custom_call.1} parent=1 // pred_region
      _
    $region73: #{tpu_custom_call.1} parent=1 // pred_fallthru
      _
    // Predicated region
    $region74: #{tpu_custom_call.1} parent=1 // pred_check
      _
    $region75: #{tpu_custom_call.1} parent=1 // pred_check_branch
      %135 = sbr.rel (0) target = $region77
    $region76: #{tpu_custom_call.1} parent=1 // pred_region
      _
    $region77: #{tpu_custom_call.1} parent=1 // pred_fallthru
      _
    // Predicated region
    $region78: #{tpu_custom_call.1} parent=1 // pred_check
      _
    $region79: #{tpu_custom_call.1} parent=1 // pred_check_branch
      %137 = sbr.rel (0) target = $region81
    $region80: #{tpu_custom_call.1} parent=1 // pred_region
      _
    $region81: #{tpu_custom_call.1} parent=1 // pred_fallthru
      _
    // Predicated region
    $region82: #{tpu_custom_call.1} parent=1 // pred_check
      _
    $region83: #{tpu_custom_call.1} parent=1 // pred_check_branch
      %139 = sbr.rel (0) target = $region85
    $region84: #{tpu_custom_call.1} parent=1 // pred_region
      %140 = dma.done [#allocation4], 256
    $region85: #{tpu_custom_call.1} parent=1 // pred_fallthru
      _
    // Predicated region
    $region86: #{tpu_custom_call.1} parent=1 // pred_check
      _
    $region87: #{tpu_custom_call.1} parent=1 // pred_check_branch
      %142 = sbr.rel (0) target = $region89
    $region88: #{tpu_custom_call.1} parent=1 // pred_region
      %143 = dma.done [#allocation7], 32
    $region89: #{tpu_custom_call.1} parent=1 // pred_fallthru
      _
    // Predicated region
    $region90: #{tpu_custom_call.1} parent=1 // pred_check
      _
    $region91: #{tpu_custom_call.1} parent=1 // pred_check_branch
      %145 = sbr.rel (0) target = $region93
    $region92: #{tpu_custom_call.1} parent=1 // pred_region
      %146 = dma.done [#allocation7], 16
    $region93: #{tpu_custom_call.1} parent=1 // pred_fallthru
      _
    // Predicated region
    $region94: #{tpu_custom_call.1} parent=1 // pred_check
      _
    $region95: #{tpu_custom_call.1} parent=1 // pred_check_branch
      %148 = sbr.rel (0) target = $region97
    $region96: #{tpu_custom_call.1} parent=1 // pred_region
      %149 = dma.done [#allocation10], 16
    $region97: #{tpu_custom_call.1} parent=1 // pred_fallthru
      _
    // Predicated region
    $region98: #{tpu_custom_call.1} parent=1 // pred_check
      _
    $region99: #{tpu_custom_call.1} parent=1 // pred_check_branch
      %151 = sbr.rel (0) target = $region101
    $region100: #{tpu_custom_call.1} parent=1 // pred_region
      %152 = dma.done [#allocation10], 32
    $region101: #{tpu_custom_call.1} parent=1 // pred_fallthru
      _
    // Predicated region
    $region102: #{tpu_custom_call.1} parent=1 // pred_check
      _
    $region103: #{tpu_custom_call.1} parent=1 // pred_check_branch
      %154 = sbr.rel (0) target = $region105
    $region104: #{tpu_custom_call.1} parent=1 // pred_region
      %155 = dma.done [#allocation13], 32
    $region105: #{tpu_custom_call.1} parent=1 // pred_fallthru
      _
    // Predicated region
    $region106: #{tpu_custom_call.1} parent=1 // pred_check
      _
    $region107: #{tpu_custom_call.1} parent=1 // pred_check_branch
      %157 = sbr.rel (0) target = $region109
    $region108: #{tpu_custom_call.1} parent=1 // pred_region
      %158 = dma.done [#allocation13], 32
    $region109: #{tpu_custom_call.1} parent=1 // pred_fallthru
      _
    %v160 = vld [vmem:[#allocation6] sm:$0x1]
    %s161 = scalar_lea.vmem [#allocation6], 1
    %v162 = vld [vmem:[%s161] sm:$0x1]
    %v163 = vld [vmem:[#allocation3] sm:$0xff]
    %v164 = vld [vmem:[#allocation3 + $0x8] sm:$0xff]
    %v165 = vld [vmem:[#allocation8] sm:$0x1]
    %v166 = vld [vmem:[#allocation9] sm:$0x1]
    %vm167 = vcmask 261120
    %v168 = vsel %vm167, %v163, 0.0
    %169 = vadd.xlane.f32.xlu0 %v168
    %v170 = vpop.xlane.xlu0 %169
    %v171 = vsel %vm167, %v164, 0.0
    %172 = vadd.xlane.f32.xlu0 %v171
    %v173 = vpop.xlane.xlu0 %172
    %v174 = vrcp.pop 32.0
    %v175 = vmul.f32 %v170, %v174
    %v176 = vmul.f32 %v173, %v174
    %v177 = vsub.f32 %v163, %v175
    %v178 = vsub.f32 %v164, %v176
    %v179 = vmul.f32 %v177, %v177
    %v180 = vmul.f32 %v178, %v178
    %v181 = vsel %vm167, %v179, 0.0
    %182 = vadd.xlane.f32.xlu0 %v181
    %v183 = vpop.xlane.xlu0 %182
    %v184 = vsel %vm167, %v180, 0.0
    %185 = vadd.xlane.f32.xlu0 %v184
    %v186 = vpop.xlane.xlu0 %185
    %v187 = vmul.f32 %v183, %v174
    %v188 = vmul.f32 %v186, %v174
    %v189 = vadd.f32 %v187, 1e-12
    %v190 = vadd.f32 %v188, 1e-12
    %v191 = vrsqrt.pop %v189
    %v192 = vrsqrt.pop %v190
    %v193 = vmul.f32 %v177, %v191
    %v194 = vmul.f32 %v178, %v192
    %v196 = vlaneseq
    %v197 = vshrl.u32 %v196, 7
    %v198 = vsub.s32 0, %v197
    %v199 = vrot.slane %v165, %v198
    %v201 = vmul.f32 %v193, %v199
    %v202 = vmul.f32 %v194, %v199
    %v204 = vlaneseq
    %v205 = vshrl.u32 %v204, 7
    %v206 = vsub.s32 0, %v205
    %v207 = vrot.slane %v166, %v206
    %v209 = vadd.f32 %v201, %v207
    %v210 = vadd.f32 %v202, %v207
    %v211 = vld [vmem:[%s4] sm:$0xf]
    %v212 = vld [vmem:[%s4 + $0x4] sm:$0xf]
    %v213 = vld [vmem:[%s4 + $0x8] sm:$0xf]
    %v214 = vld [vmem:[%s4 + $0xc] sm:$0xf]
    %v215 = vpack.c.bf16 %v210, %v209
    %v216 = vld [vmem:[#allocation11] sm:$0x1]
    %v218 = vlaneseq
    %v219 = vshrl.u32 %v218, 7
    %v220 = vsub.s32 0, %v219
    %v221 = vrot.slane %v216, %v220
    %v227 = vunpack.c.l.b16 %v211
    %v228 = vunpack.c.l.b16 %v212
    %v229 = vunpack.c.l.b16 %v213
    %v230 = vunpack.c.l.b16 %v214
    %v231 = vpack.c.b16 %v228, %v227
    %v232 = vpack.c.b16 %v230, %v229
    %v236 = vsel %vm167, %v215, 0
    %238 = vmatprep.subr.bf16.mxu0 0
    %239 = vmatpush1.bf16.msra.mxu0 0
    %240 = vmatprep.subr.bf16.mxu0 0
    %241 = vmatpush1.bf16.msra.mxu0 0
    %242 = vmatprep.subr.bf16.mxu0 0
    %243 = vmatpush1.bf16.msra.mxu0 0
    %244 = vmatprep.subr.bf16.mxu0 0
    %245 = vmatpush1.bf16.msra.mxu0 0
    %246 = vmatprep.subr.bf16.mxu0 0
    %247 = vmatpush1.bf16.msra.mxu0 0
    %248 = vmatprep.subr.bf16.mxu0 0
    %249 = vmatpush1.bf16.msra.mxu0 0
    %250 = vmatprep.subr.bf16.mxu0 0
    %251 = vmatpush1.bf16.msra.mxu0 %v232
    %252 = vmatprep.subr.bf16.mxu0 0
    %253 = vmatpush1.bf16.msra.mxu0 %v231
    %254 = vmatprep.subr.bf16.mxu0 0
    %255 = vmatpush2.bf16.msra.mxu0 0
    %256 = vmatprep.subr.bf16.mxu0 0
    %257 = vmatpush2.bf16.msra.mxu0 0
    %258 = vmatprep.subr.bf16.mxu0 0
    %259 = vmatpush2.bf16.msra.mxu0 0
    %260 = vmatprep.subr.bf16.mxu0 0
    %261 = vmatpush2.bf16.msra.mxu0 0
    %262 = vmatprep.subr.bf16.mxu0 0
    %263 = vmatpush2.bf16.msra.mxu0 0
    %264 = vmatprep.subr.bf16.mxu0 0
    %265 = vmatpush2.bf16.msra.mxu0 0
    %266 = vmatprep.subr.bf16.mxu0 0
    %267 = vmatpush2.bf16.msra.mxu0 0
    %268 = vmatprep.subr.bf16.mxu0 0
    %269 = vmatpush2.bf16.msra.mxu0 0
    %270 = vmatprep.mubr.bf16.mxu0 0
    %271 = vmatmul.mubr.bf16.gmra.mxu0 %v236
    %v272 = vpop.f32.mrf.mxu0
    %v273 = vadd.f32 %v221, %v272
    %v274 = vpop.f32.mrf.mxu0
    %v275 = vpop.f32.mrf.mxu0
    %v276 = vadd.f32 %v221, %v275
    %v277 = vpop.f32.mrf.mxu0
    %278 = vdwg.mxu0
    %v279 = vpack.c.bf16 %v276, %v273
    %281 = vrot.lane.b32.xlu0 %v279, 120
    %v282 = vpop.permute.xlu0 %281
    %283 = vrot.lane.b32.xlu0 %v279, 112
    %v284 = vpop.permute.xlu0 %283
    %285 = vrot.lane.b32.xlu0 %v279, 104
    %v286 = vpop.permute.xlu0 %285
    %287 = vrot.lane.b32.xlu0 %v279, 96
    %v288 = vpop.permute.xlu0 %287
    %vm289 = vcmask 64512
    %v291 = vsel %vm289, %v279, 0
    %v294 = vsel %vm289, %v288, 0
    %296 = vmatprep.subr.bf16.mxu0 0
    %297 = vmatpush1.bf16.xpose.msra.mxu0 0
    %298 = vmatprep.subr.bf16.mxu0 0
    %299 = vmatpush1.bf16.xpose.msra.mxu0 0
    %300 = vmatprep.subr.bf16.mxu0 0
    %301 = vmatpush1.bf16.xpose.msra.mxu0 0
    %302 = vmatprep.subr.bf16.mxu0 0
    %303 = vmatpush1.bf16.xpose.msra.mxu0 0
    %304 = vmatprep.subr.bf16.mxu0 0
    %305 = vmatpush1.bf16.xpose.msra.mxu0 0
    %306 = vmatprep.subr.bf16.mxu0 0
    %307 = vmatpush1.bf16.xpose.msra.mxu0 0
    %308 = vmatprep.subr.bf16.mxu0 0
    %309 = vmatpush1.bf16.xpose.msra.mxu0 0
    %310 = vmatprep.subr.bf16.mxu0 0
    %311 = vmatpush1.bf16.xpose.msra.mxu0 %v294
    %312 = vmatprep.subr.bf16.mxu0 0
    %313 = vmatpush2.bf16.xpose.msra.mxu0 0
    %314 = vmatprep.subr.bf16.mxu0 0
    %315 = vmatpush2.bf16.xpose.msra.mxu0 0
    %316 = vmatprep.subr.bf16.mxu0 0
    %317 = vmatpush2.bf16.xpose.msra.mxu0 0
    %318 = vmatprep.subr.bf16.mxu0 0
    %319 = vmatpush2.bf16.xpose.msra.mxu0 0
    %320 = vmatprep.subr.bf16.mxu0 0
    %321 = vmatpush2.bf16.xpose.msra.mxu0 0
    %322 = vmatprep.subr.bf16.mxu0 0
    %323 = vmatpush2.bf16.xpose.msra.mxu0 0
    %324 = vmatprep.subr.bf16.mxu0 0
    %325 = vmatpush2.bf16.xpose.msra.mxu0 0
    %326 = vmatprep.subr.bf16.mxu0 0
    %327 = vmatpush2.bf16.xpose.msra.mxu0 0
    %328 = vmatprep.mubr.bf16.mxu0 0
    %329 = vmatmul.mubr.bf16.gmra.mxu0 %v291
    %v330 = vpop.f32.mrf.mxu0
    %v331 = vadd.f32 0.0, %v330
    %v332 = vpop.f32.mrf.mxu0
    %v333 = vpop.f32.mrf.mxu0
    %v334 = vpop.f32.mrf.mxu0
    %335 = vdwg.mxu0
    %336 = vrot.lane.b32.xlu0 %v282, 96
    %v337 = vpop.permute.xlu0 %336
    %v339 = vsel %vm289, %v282, 0
    %v342 = vsel %vm289, %v337, 0
    %344 = vmatprep.subr.bf16.mxu0 0
    %345 = vmatpush1.bf16.xpose.msra.mxu0 0
    %346 = vmatprep.subr.bf16.mxu0 0
    %347 = vmatpush1.bf16.xpose.msra.mxu0 0
    %348 = vmatprep.subr.bf16.mxu0 0
    %349 = vmatpush1.bf16.xpose.msra.mxu0 0
    %350 = vmatprep.subr.bf16.mxu0 0
    %351 = vmatpush1.bf16.xpose.msra.mxu0 0
    %352 = vmatprep.subr.bf16.mxu0 0
    %353 = vmatpush1.bf16.xpose.msra.mxu0 0
    %354 = vmatprep.subr.bf16.mxu0 0
    %355 = vmatpush1.bf16.xpose.msra.mxu0 0
    %356 = vmatprep.subr.bf16.mxu0 0
    %357 = vmatpush1.bf16.xpose.msra.mxu0 0
    %358 = vmatprep.subr.bf16.mxu0 0
    %359 = vmatpush1.bf16.xpose.msra.mxu0 %v342
    %360 = vmatprep.subr.bf16.mxu0 0
    %361 = vmatpush2.bf16.xpose.msra.mxu0 0
    %362 = vmatprep.subr.bf16.mxu0 0
    %363 = vmatpush2.bf16.xpose.msra.mxu0 0
    %364 = vmatprep.subr.bf16.mxu0 0
    %365 = vmatpush2.bf16.xpose.msra.mxu0 0
    %366 = vmatprep.subr.bf16.mxu0 0
    %367 = vmatpush2.bf16.xpose.msra.mxu0 0
    %368 = vmatprep.subr.bf16.mxu0 0
    %369 = vmatpush2.bf16.xpose.msra.mxu0 0
    %370 = vmatprep.subr.bf16.mxu0 0
    %371 = vmatpush2.bf16.xpose.msra.mxu0 0
    %372 = vmatprep.subr.bf16.mxu0 0
    %373 = vmatpush2.bf16.xpose.msra.mxu0 0
    %374 = vmatprep.subr.bf16.mxu0 0
    %375 = vmatpush2.bf16.xpose.msra.mxu0 0
    %376 = vmatprep.mubr.bf16.mxu0 0
    %377 = vmatmul.mubr.bf16.gmra.mxu0 %v339
    %v378 = vpop.f32.mrf.mxu0
    %v379 = vadd.f32 0.0, %v378
    %v380 = vpop.f32.mrf.mxu0
    %v381 = vpop.f32.mrf.mxu0
    %v382 = vpop.f32.mrf.mxu0
    %383 = vdwg.mxu0
    %384 = vrot.lane.b32.xlu0 %v284, 96
    %v385 = vpop.permute.xlu0 %384
    %v387 = vsel %vm289, %v284, 0
    %v390 = vsel %vm289, %v385, 0
    %392 = vmatprep.subr.bf16.mxu0 0
    %393 = vmatpush1.bf16.xpose.msra.mxu0 0
    %394 = vmatprep.subr.bf16.mxu0 0
    %395 = vmatpush1.bf16.xpose.msra.mxu0 0
    %396 = vmatprep.subr.bf16.mxu0 0
    %397 = vmatpush1.bf16.xpose.msra.mxu0 0
    %398 = vmatprep.subr.bf16.mxu0 0
    %399 = vmatpush1.bf16.xpose.msra.mxu0 0
    %400 = vmatprep.subr.bf16.mxu0 0
    %401 = vmatpush1.bf16.xpose.msra.mxu0 0
    %402 = vmatprep.subr.bf16.mxu0 0
    %403 = vmatpush1.bf16.xpose.msra.mxu0 0
    %404 = vmatprep.subr.bf16.mxu0 0
    %405 = vmatpush1.bf16.xpose.msra.mxu0 0
    %406 = vmatprep.subr.bf16.mxu0 0
    %407 = vmatpush1.bf16.xpose.msra.mxu0 %v390
    %408 = vmatprep.subr.bf16.mxu0 0
    %409 = vmatpush2.bf16.xpose.msra.mxu0 0
    %410 = vmatprep.subr.bf16.mxu0 0
    %411 = vmatpush2.bf16.xpose.msra.mxu0 0
    %412 = vmatprep.subr.bf16.mxu0 0
    %413 = vmatpush2.bf16.xpose.msra.mxu0 0
    %414 = vmatprep.subr.bf16.mxu0 0
    %415 = vmatpush2.bf16.xpose.msra.mxu0 0
    %416 = vmatprep.subr.bf16.mxu0 0
    %417 = vmatpush2.bf16.xpose.msra.mxu0 0
    %418 = vmatprep.subr.bf16.mxu0 0
    %419 = vmatpush2.bf16.xpose.msra.mxu0 0
    %420 = vmatprep.subr.bf16.mxu0 0
    %421 = vmatpush2.bf16.xpose.msra.mxu0 0
    %422 = vmatprep.subr.bf16.mxu0 0
    %423 = vmatpush2.bf16.xpose.msra.mxu0 0
    %424 = vmatprep.mubr.bf16.mxu0 0
    %425 = vmatmul.mubr.bf16.gmra.mxu0 %v387
    %v426 = vpop.f32.mrf.mxu0
    %v427 = vadd.f32 0.0, %v426
    %v428 = vpop.f32.mrf.mxu0
    %v429 = vpop.f32.mrf.mxu0
    %v430 = vpop.f32.mrf.mxu0
    %431 = vdwg.mxu0
    %432 = vrot.lane.b32.xlu0 %v286, 96
    %v433 = vpop.permute.xlu0 %432
    %v435 = vsel %vm289, %v286, 0
    %v438 = vsel %vm289, %v433, 0
    %440 = vmatprep.subr.bf16.mxu0 0
    %441 = vmatpush1.bf16.xpose.msra.mxu0 0
    %442 = vmatprep.subr.bf16.mxu0 0
    %443 = vmatpush1.bf16.xpose.msra.mxu0 0
    %444 = vmatprep.subr.bf16.mxu0 0
    %445 = vmatpush1.bf16.xpose.msra.mxu0 0
    %446 = vmatprep.subr.bf16.mxu0 0
    %447 = vmatpush1.bf16.xpose.msra.mxu0 0
    %448 = vmatprep.subr.bf16.mxu0 0
    %449 = vmatpush1.bf16.xpose.msra.mxu0 0
    %450 = vmatprep.subr.bf16.mxu0 0
    %451 = vmatpush1.bf16.xpose.msra.mxu0 0
    %452 = vmatprep.subr.bf16.mxu0 0
    %453 = vmatpush1.bf16.xpose.msra.mxu0 0
    %454 = vmatprep.subr.bf16.mxu0 0
    %455 = vmatpush1.bf16.xpose.msra.mxu0 %v438
    %456 = vmatprep.subr.bf16.mxu0 0
    %457 = vmatpush2.bf16.xpose.msra.mxu0 0
    %458 = vmatprep.subr.bf16.mxu0 0
    %459 = vmatpush2.bf16.xpose.msra.mxu0 0
    %460 = vmatprep.subr.bf16.mxu0 0
    %461 = vmatpush2.bf16.xpose.msra.mxu0 0
    %462 = vmatprep.subr.bf16.mxu0 0
    %463 = vmatpush2.bf16.xpose.msra.mxu0 0
    %464 = vmatprep.subr.bf16.mxu0 0
    %465 = vmatpush2.bf16.xpose.msra.mxu0 0
    %466 = vmatprep.subr.bf16.mxu0 0
    %467 = vmatpush2.bf16.xpose.msra.mxu0 0
    %468 = vmatprep.subr.bf16.mxu0 0
    %469 = vmatpush2.bf16.xpose.msra.mxu0 0
    %470 = vmatprep.subr.bf16.mxu0 0
    %471 = vmatpush2.bf16.xpose.msra.mxu0 0
    %472 = vmatprep.mubr.bf16.mxu0 0
    %473 = vmatmul.mubr.bf16.gmra.mxu0 %v435
    %v474 = vpop.f32.mrf.mxu0
    %v475 = vadd.f32 0.0, %v474
    %v476 = vpop.f32.mrf.mxu0
    %v477 = vpop.f32.mrf.mxu0
    %v478 = vpop.f32.mrf.mxu0
    %479 = vdwg.mxu0
    %v480 = vmul.f32 %v331, 0.35355338
    %v481 = vmul.f32 %v379, 0.35355338
    %v482 = vmul.f32 %v427, 0.35355338
    %v483 = vmul.f32 %v475, 0.35355338
    %v485 = vlaneseq
    %v486 = vshrl.u32 %v485, 7
    %v487 = vsub.s32 0, %v486
    %v488 = vrot.slane %v160, %v487
    %v490 = vadd.f32 %v480, %v488
    %v491 = vadd.f32 %v481, %v488
    %v492 = vadd.f32 %v482, %v488
    %v493 = vadd.f32 %v483, %v488
    %v494 = vsel %vm289, %v490, -inf
    %495 = vmax.xlane.f32.xlu0 %v494
    %v496 = vpop.xlane.xlu0 %495
    %v497 = vsel %vm289, %v491, -inf
    %498 = vmax.xlane.f32.xlu0 %v497
    %v499 = vpop.xlane.xlu0 %498
    %v500 = vsel %vm289, %v492, -inf
    %501 = vmax.xlane.f32.xlu0 %v500
    %v502 = vpop.xlane.xlu0 %501
    %v503 = vsel %vm289, %v493, -inf
    %504 = vmax.xlane.f32.xlu0 %v503
    %v505 = vpop.xlane.xlu0 %504
    %v506 = vsub.f32 %v490, %v496
    %v507 = vsub.f32 %v491, %v499
    %v508 = vsub.f32 %v492, %v502
    %v509 = vsub.f32 %v493, %v505
    %v510 = vmul.f32 %v506, 1.442695
    %v511 = vpow.pop %v510
    %v512 = vmul.f32 %v507, 1.442695
    %v513 = vpow.pop %v512
    %v514 = vmul.f32 %v508, 1.442695
    %v515 = vpow.pop %v514
    %v516 = vmul.f32 %v509, 1.442695
    %v517 = vpow.pop %v516
    %v518 = vsel %vm289, %v511, 0.0
    %519 = vadd.xlane.f32.xlu0 %v518
    %v520 = vpop.xlane.xlu0 %519
    %v521 = vsel %vm289, %v513, 0.0
    %522 = vadd.xlane.f32.xlu0 %v521
    %v523 = vpop.xlane.xlu0 %522
    %v524 = vsel %vm289, %v515, 0.0
    %525 = vadd.xlane.f32.xlu0 %v524
    %v526 = vpop.xlane.xlu0 %525
    %v527 = vsel %vm289, %v517, 0.0
    %528 = vadd.xlane.f32.xlu0 %v527
    %v529 = vpop.xlane.xlu0 %528
    %v530 = vrcp.pop %v520
    %v531 = vrcp.pop %v523
    %v532 = vrcp.pop %v526
    %v533 = vrcp.pop %v529
    %v534 = vmul.f32 %v511, %v530
    %v535 = vmul.f32 %v513, %v531
    %v536 = vmul.f32 %v515, %v532
    %v537 = vmul.f32 %v517, %v533
    %v538 = vpack.c.bf16 %v534, %v534
    %v539 = vpack.c.bf16 %v535, %v535
    %v540 = vpack.c.bf16 %v536, %v536
    %v541 = vpack.c.bf16 %v537, %v537
    %542 = vrot.lane.b32.xlu0 %v279, 64
    %v543 = vpop.permute.xlu0 %542
    %v545 = vsel %vm289, %v538, 0
    %vm547 = vcmask 1043456
    %v549 = vsel %vm547, %v543, 0
    %551 = vmatprep.subr.bf16.mxu0 0
    %552 = vmatpush1.bf16.msra.mxu0 0
    %553 = vmatprep.subr.bf16.mxu0 0
    %554 = vmatpush1.bf16.msra.mxu0 0
    %555 = vmatprep.subr.bf16.mxu0 0
    %556 = vmatpush1.bf16.msra.mxu0 0
    %557 = vmatprep.subr.bf16.mxu0 0
    %558 = vmatpush1.bf16.msra.mxu0 0
    %559 = vmatprep.subr.bf16.mxu0 0
    %560 = vmatpush1.bf16.msra.mxu0 0
    %561 = vmatprep.subr.bf16.mxu0 0
    %562 = vmatpush1.bf16.msra.mxu0 0
    %563 = vmatprep.subr.bf16.mxu0 0
    %564 = vmatpush1.bf16.msra.mxu0 0
    %565 = vmatprep.subr.bf16.mxu0 0
    %566 = vmatpush1.bf16.msra.mxu0 %v549
    %567 = vmatprep.subr.bf16.mxu0 0
    %568 = vmatpush2.bf16.msra.mxu0 0
    %569 = vmatprep.subr.bf16.mxu0 0
    %570 = vmatpush2.bf16.msra.mxu0 0
    %571 = vmatprep.subr.bf16.mxu0 0
    %572 = vmatpush2.bf16.msra.mxu0 0
    %573 = vmatprep.subr.bf16.mxu0 0
    %574 = vmatpush2.bf16.msra.mxu0 0
    %575 = vmatprep.subr.bf16.mxu0 0
    %576 = vmatpush2.bf16.msra.mxu0 0
    %577 = vmatprep.subr.bf16.mxu0 0
    %578 = vmatpush2.bf16.msra.mxu0 0
    %579 = vmatprep.subr.bf16.mxu0 0
    %580 = vmatpush2.bf16.msra.mxu0 0
    %581 = vmatprep.subr.bf16.mxu0 0
    %582 = vmatpush2.bf16.msra.mxu0 0
    %583 = vmatprep.mubr.bf16.mxu0 0
    %584 = vmatmul.mubr.bf16.gmra.mxu0 %v545
    %v585 = vpop.f32.mrf.mxu0
    %v586 = vadd.f32 0.0, %v585
    %v587 = vpop.f32.mrf.mxu0
    %v588 = vpop.f32.mrf.mxu0
    %v589 = vpop.f32.mrf.mxu0
    %590 = vdwg.mxu0
    %591 = vrot.lane.b32.xlu0 %v282, 64
    %v592 = vpop.permute.xlu0 %591
    %v594 = vsel %vm289, %v539, 0
    %v597 = vsel %vm547, %v592, 0
    %599 = vmatprep.subr.bf16.mxu0 0
    %600 = vmatpush1.bf16.msra.mxu0 0
    %601 = vmatprep.subr.bf16.mxu0 0
    %602 = vmatpush1.bf16.msra.mxu0 0
    %603 = vmatprep.subr.bf16.mxu0 0
    %604 = vmatpush1.bf16.msra.mxu0 0
    %605 = vmatprep.subr.bf16.mxu0 0
    %606 = vmatpush1.bf16.msra.mxu0 0
    %607 = vmatprep.subr.bf16.mxu0 0
    %608 = vmatpush1.bf16.msra.mxu0 0
    %609 = vmatprep.subr.bf16.mxu0 0
    %610 = vmatpush1.bf16.msra.mxu0 0
    %611 = vmatprep.subr.bf16.mxu0 0
    %612 = vmatpush1.bf16.msra.mxu0 0
    %613 = vmatprep.subr.bf16.mxu0 0
    %614 = vmatpush1.bf16.msra.mxu0 %v597
    %615 = vmatprep.subr.bf16.mxu0 0
    %616 = vmatpush2.bf16.msra.mxu0 0
    %617 = vmatprep.subr.bf16.mxu0 0
    %618 = vmatpush2.bf16.msra.mxu0 0
    %619 = vmatprep.subr.bf16.mxu0 0
    %620 = vmatpush2.bf16.msra.mxu0 0
    %621 = vmatprep.subr.bf16.mxu0 0
    %622 = vmatpush2.bf16.msra.mxu0 0
    %623 = vmatprep.subr.bf16.mxu0 0
    %624 = vmatpush2.bf16.msra.mxu0 0
    %625 = vmatprep.subr.bf16.mxu0 0
    %626 = vmatpush2.bf16.msra.mxu0 0
    %627 = vmatprep.subr.bf16.mxu0 0
    %628 = vmatpush2.bf16.msra.mxu0 0
    %629 = vmatprep.subr.bf16.mxu0 0
    %630 = vmatpush2.bf16.msra.mxu0 0
    %631 = vmatprep.mubr.bf16.mxu0 0
    %632 = vmatmul.mubr.bf16.gmra.mxu0 %v594
    %v633 = vpop.f32.mrf.mxu0
    %v634 = vadd.f32 0.0, %v633
    %v635 = vpop.f32.mrf.mxu0
    %v636 = vpop.f32.mrf.mxu0
    %v637 = vpop.f32.mrf.mxu0
    %638 = vdwg.mxu0
    %639 = vrot.lane.b32.xlu0 %v284, 64
    %v640 = vpop.permute.xlu0 %639
    %v642 = vsel %vm289, %v540, 0
    %v645 = vsel %vm547, %v640, 0
    %647 = vmatprep.subr.bf16.mxu0 0
    %648 = vmatpush1.bf16.msra.mxu0 0
    %649 = vmatprep.subr.bf16.mxu0 0
    %650 = vmatpush1.bf16.msra.mxu0 0
    %651 = vmatprep.subr.bf16.mxu0 0
    %652 = vmatpush1.bf16.msra.mxu0 0
    %653 = vmatprep.subr.bf16.mxu0 0
    %654 = vmatpush1.bf16.msra.mxu0 0
    %655 = vmatprep.subr.bf16.mxu0 0
    %656 = vmatpush1.bf16.msra.mxu0 0
    %657 = vmatprep.subr.bf16.mxu0 0
    %658 = vmatpush1.bf16.msra.mxu0 0
    %659 = vmatprep.subr.bf16.mxu0 0
    %660 = vmatpush1.bf16.msra.mxu0 0
    %661 = vmatprep.subr.bf16.mxu0 0
    %662 = vmatpush1.bf16.msra.mxu0 %v645
    %663 = vmatprep.subr.bf16.mxu0 0
    %664 = vmatpush2.bf16.msra.mxu0 0
    %665 = vmatprep.subr.bf16.mxu0 0
    %666 = vmatpush2.bf16.msra.mxu0 0
    %667 = vmatprep.subr.bf16.mxu0 0
    %668 = vmatpush2.bf16.msra.mxu0 0
    %669 = vmatprep.subr.bf16.mxu0 0
    %670 = vmatpush2.bf16.msra.mxu0 0
    %671 = vmatprep.subr.bf16.mxu0 0
    %672 = vmatpush2.bf16.msra.mxu0 0
    %673 = vmatprep.subr.bf16.mxu0 0
    %674 = vmatpush2.bf16.msra.mxu0 0
    %675 = vmatprep.subr.bf16.mxu0 0
    %676 = vmatpush2.bf16.msra.mxu0 0
    %677 = vmatprep.subr.bf16.mxu0 0
    %678 = vmatpush2.bf16.msra.mxu0 0
    %679 = vmatprep.mubr.bf16.mxu0 0
    %680 = vmatmul.mubr.bf16.gmra.mxu0 %v642
    %v681 = vpop.f32.mrf.mxu0
    %v682 = vadd.f32 0.0, %v681
    %v683 = vpop.f32.mrf.mxu0
    %v684 = vpop.f32.mrf.mxu0
    %v685 = vpop.f32.mrf.mxu0
    %686 = vdwg.mxu0
    %687 = vrot.lane.b32.xlu0 %v286, 64
    %v688 = vpop.permute.xlu0 %687
    %v690 = vsel %vm289, %v541, 0
    %v693 = vsel %vm547, %v688, 0
    %695 = vmatprep.subr.bf16.mxu0 0
    %696 = vmatpush1.bf16.msra.mxu0 0
    %697 = vmatprep.subr.bf16.mxu0 0
    %698 = vmatpush1.bf16.msra.mxu0 0
    %699 = vmatprep.subr.bf16.mxu0 0
    %700 = vmatpush1.bf16.msra.mxu0 0
    %701 = vmatprep.subr.bf16.mxu0 0
    %702 = vmatpush1.bf16.msra.mxu0 0
    %703 = vmatprep.subr.bf16.mxu0 0
    %704 = vmatpush1.bf16.msra.mxu0 0
    %705 = vmatprep.subr.bf16.mxu0 0
    %706 = vmatpush1.bf16.msra.mxu0 0
    %707 = vmatprep.subr.bf16.mxu0 0
    %708 = vmatpush1.bf16.msra.mxu0 0
    %709 = vmatprep.subr.bf16.mxu0 0
    %710 = vmatpush1.bf16.msra.mxu0 %v693
    %711 = vmatprep.subr.bf16.mxu0 0
    %712 = vmatpush2.bf16.msra.mxu0 0
    %713 = vmatprep.subr.bf16.mxu0 0
    %714 = vmatpush2.bf16.msra.mxu0 0
    %715 = vmatprep.subr.bf16.mxu0 0
    %716 = vmatpush2.bf16.msra.mxu0 0
    %717 = vmatprep.subr.bf16.mxu0 0
    %718 = vmatpush2.bf16.msra.mxu0 0
    %719 = vmatprep.subr.bf16.mxu0 0
    %720 = vmatpush2.bf16.msra.mxu0 0
    %721 = vmatprep.subr.bf16.mxu0 0
    %722 = vmatpush2.bf16.msra.mxu0 0
    %723 = vmatprep.subr.bf16.mxu0 0
    %724 = vmatpush2.bf16.msra.mxu0 0
    %725 = vmatprep.subr.bf16.mxu0 0
    %726 = vmatpush2.bf16.msra.mxu0 0
    %727 = vmatprep.mubr.bf16.mxu0 0
    %728 = vmatmul.mubr.bf16.gmra.mxu0 %v690
    %v729 = vpop.f32.mrf.mxu0
    %v730 = vadd.f32 0.0, %v729
    %v731 = vpop.f32.mrf.mxu0
    %v732 = vpop.f32.mrf.mxu0
    %v733 = vpop.f32.mrf.mxu0
    %734 = vdwg.mxu0
    %736 = vrot.lane.b32.xlu0 %v634, 8
    %v737 = vpop.permute.xlu0 %736
    %740 = vrot.lane.b32.xlu0 %v682, 16
    %v741 = vpop.permute.xlu0 %740
    %744 = vrot.lane.b32.xlu0 %v730, 24
    %v745 = vpop.permute.xlu0 %744
    %v747 = vsel %vm289, %v586, %v737
    %vm748 = vcmask 130048
    %v749 = vsel %vm748, %v747, %v741
    %vm750 = vcmask 195584
    %v751 = vsel %vm750, %v749, %v745
    %v752 = vrot.slane %v279, 4
    %753 = vrot.lane.b32.xlu0 %v752, 96
    %v754 = vpop.permute.xlu0 %753
    %v756 = vsel %vm289, %v752, 0
    %v759 = vsel %vm289, %v754, 0
    %761 = vmatprep.subr.bf16.mxu0 0
    %762 = vmatpush1.bf16.xpose.msra.mxu0 0
    %763 = vmatprep.subr.bf16.mxu0 0
    %764 = vmatpush1.bf16.xpose.msra.mxu0 0
    %765 = vmatprep.subr.bf16.mxu0 0
    %766 = vmatpush1.bf16.xpose.msra.mxu0 0
    %767 = vmatprep.subr.bf16.mxu0 0
    %768 = vmatpush1.bf16.xpose.msra.mxu0 0
    %769 = vmatprep.subr.bf16.mxu0 0
    %770 = vmatpush1.bf16.xpose.msra.mxu0 0
    %771 = vmatprep.subr.bf16.mxu0 0
    %772 = vmatpush1.bf16.xpose.msra.mxu0 0
    %773 = vmatprep.subr.bf16.mxu0 0
    %774 = vmatpush1.bf16.xpose.msra.mxu0 0
    %775 = vmatprep.subr.bf16.mxu0 0
    %776 = vmatpush1.bf16.xpose.msra.mxu0 %v759
    %777 = vmatprep.subr.bf16.mxu0 0
    %778 = vmatpush2.bf16.xpose.msra.mxu0 0
    %779 = vmatprep.subr.bf16.mxu0 0
    %780 = vmatpush2.bf16.xpose.msra.mxu0 0
    %781 = vmatprep.subr.bf16.mxu0 0
    %782 = vmatpush2.bf16.xpose.msra.mxu0 0
    %783 = vmatprep.subr.bf16.mxu0 0
    %784 = vmatpush2.bf16.xpose.msra.mxu0 0
    %785 = vmatprep.subr.bf16.mxu0 0
    %786 = vmatpush2.bf16.xpose.msra.mxu0 0
    %787 = vmatprep.subr.bf16.mxu0 0
    %788 = vmatpush2.bf16.xpose.msra.mxu0 0
    %789 = vmatprep.subr.bf16.mxu0 0
    %790 = vmatpush2.bf16.xpose.msra.mxu0 0
    %791 = vmatprep.subr.bf16.mxu0 0
    %792 = vmatpush2.bf16.xpose.msra.mxu0 0
    %793 = vmatprep.mubr.bf16.mxu0 0
    %794 = vmatmul.mubr.bf16.gmra.mxu0 %v756
    %v795 = vpop.f32.mrf.mxu0
    %v796 = vadd.f32 0.0, %v795
    %v797 = vpop.f32.mrf.mxu0
    %v798 = vpop.f32.mrf.mxu0
    %v799 = vpop.f32.mrf.mxu0
    %800 = vdwg.mxu0
    %v801 = vrot.slane %v282, 4
    %802 = vrot.lane.b32.xlu0 %v801, 96
    %v803 = vpop.permute.xlu0 %802
    %v805 = vsel %vm289, %v801, 0
    %v808 = vsel %vm289, %v803, 0
    %810 = vmatprep.subr.bf16.mxu0 0
    %811 = vmatpush1.bf16.xpose.msra.mxu0 0
    %812 = vmatprep.subr.bf16.mxu0 0
    %813 = vmatpush1.bf16.xpose.msra.mxu0 0
    %814 = vmatprep.subr.bf16.mxu0 0
    %815 = vmatpush1.bf16.xpose.msra.mxu0 0
    %816 = vmatprep.subr.bf16.mxu0 0
    %817 = vmatpush1.bf16.xpose.msra.mxu0 0
    %818 = vmatprep.subr.bf16.mxu0 0
    %819 = vmatpush1.bf16.xpose.msra.mxu0 0
    %820 = vmatprep.subr.bf16.mxu0 0
    %821 = vmatpush1.bf16.xpose.msra.mxu0 0
    %822 = vmatprep.subr.bf16.mxu0 0
    %823 = vmatpush1.bf16.xpose.msra.mxu0 0
    %824 = vmatprep.subr.bf16.mxu0 0
    %825 = vmatpush1.bf16.xpose.msra.mxu0 %v808
    %826 = vmatprep.subr.bf16.mxu0 0
    %827 = vmatpush2.bf16.xpose.msra.mxu0 0
    %828 = vmatprep.subr.bf16.mxu0 0
    %829 = vmatpush2.bf16.xpose.msra.mxu0 0
    %830 = vmatprep.subr.bf16.mxu0 0
    %831 = vmatpush2.bf16.xpose.msra.mxu0 0
    %832 = vmatprep.subr.bf16.mxu0 0
    %833 = vmatpush2.bf16.xpose.msra.mxu0 0
    %834 = vmatprep.subr.bf16.mxu0 0
    %835 = vmatpush2.bf16.xpose.msra.mxu0 0
    %836 = vmatprep.subr.bf16.mxu0 0
    %837 = vmatpush2.bf16.xpose.msra.mxu0 0
    %838 = vmatprep.subr.bf16.mxu0 0
    %839 = vmatpush2.bf16.xpose.msra.mxu0 0
    %840 = vmatprep.subr.bf16.mxu0 0
    %841 = vmatpush2.bf16.xpose.msra.mxu0 0
    %842 = vmatprep.mubr.bf16.mxu0 0
    %843 = vmatmul.mubr.bf16.gmra.mxu0 %v805
    %v844 = vpop.f32.mrf.mxu0
    %v845 = vadd.f32 0.0, %v844
    %v846 = vpop.f32.mrf.mxu0
    %v847 = vpop.f32.mrf.mxu0
    %v848 = vpop.f32.mrf.mxu0
    %849 = vdwg.mxu0
    %v850 = vrot.slane %v284, 4
    %851 = vrot.lane.b32.xlu0 %v850, 96
    %v852 = vpop.permute.xlu0 %851
    %v854 = vsel %vm289, %v850, 0
    %v857 = vsel %vm289, %v852, 0
    %859 = vmatprep.subr.bf16.mxu0 0
    %860 = vmatpush1.bf16.xpose.msra.mxu0 0
    %861 = vmatprep.subr.bf16.mxu0 0
    %862 = vmatpush1.bf16.xpose.msra.mxu0 0
    %863 = vmatprep.subr.bf16.mxu0 0
    %864 = vmatpush1.bf16.xpose.msra.mxu0 0
    %865 = vmatprep.subr.bf16.mxu0 0
    %866 = vmatpush1.bf16.xpose.msra.mxu0 0
    %867 = vmatprep.subr.bf16.mxu0 0
    %868 = vmatpush1.bf16.xpose.msra.mxu0 0
    %869 = vmatprep.subr.bf16.mxu0 0
    %870 = vmatpush1.bf16.xpose.msra.mxu0 0
    %871 = vmatprep.subr.bf16.mxu0 0
    %872 = vmatpush1.bf16.xpose.msra.mxu0 0
    %873 = vmatprep.subr.bf16.mxu0 0
    %874 = vmatpush1.bf16.xpose.msra.mxu0 %v857
    %875 = vmatprep.subr.bf16.mxu0 0
    %876 = vmatpush2.bf16.xpose.msra.mxu0 0
    %877 = vmatprep.subr.bf16.mxu0 0
    %878 = vmatpush2.bf16.xpose.msra.mxu0 0
    %879 = vmatprep.subr.bf16.mxu0 0
    %880 = vmatpush2.bf16.xpose.msra.mxu0 0
    %881 = vmatprep.subr.bf16.mxu0 0
    %882 = vmatpush2.bf16.xpose.msra.mxu0 0
    %883 = vmatprep.subr.bf16.mxu0 0
    %884 = vmatpush2.bf16.xpose.msra.mxu0 0
    %885 = vmatprep.subr.bf16.mxu0 0
    %886 = vmatpush2.bf16.xpose.msra.mxu0 0
    %887 = vmatprep.subr.bf16.mxu0 0
    %888 = vmatpush2.bf16.xpose.msra.mxu0 0
    %889 = vmatprep.subr.bf16.mxu0 0
    %890 = vmatpush2.bf16.xpose.msra.mxu0 0
    %891 = vmatprep.mubr.bf16.mxu0 0
    %892 = vmatmul.mubr.bf16.gmra.mxu0 %v854
    %v893 = vpop.f32.mrf.mxu0
    %v894 = vadd.f32 0.0, %v893
    %v895 = vpop.f32.mrf.mxu0
    %v896 = vpop.f32.mrf.mxu0
    %v897 = vpop.f32.mrf.mxu0
    %898 = vdwg.mxu0
    %v899 = vrot.slane %v286, 4
    %900 = vrot.lane.b32.xlu0 %v899, 96
    %v901 = vpop.permute.xlu0 %900
    %v903 = vsel %vm289, %v899, 0
    %v906 = vsel %vm289, %v901, 0
    %908 = vmatprep.subr.bf16.mxu0 0
    %909 = vmatpush1.bf16.xpose.msra.mxu0 0
    %910 = vmatprep.subr.bf16.mxu0 0
    %911 = vmatpush1.bf16.xpose.msra.mxu0 0
    %912 = vmatprep.subr.bf16.mxu0 0
    %913 = vmatpush1.bf16.xpose.msra.mxu0 0
    %914 = vmatprep.subr.bf16.mxu0 0
    %915 = vmatpush1.bf16.xpose.msra.mxu0 0
    %916 = vmatprep.subr.bf16.mxu0 0
    %917 = vmatpush1.bf16.xpose.msra.mxu0 0
    %918 = vmatprep.subr.bf16.mxu0 0
    %919 = vmatpush1.bf16.xpose.msra.mxu0 0
    %920 = vmatprep.subr.bf16.mxu0 0
    %921 = vmatpush1.bf16.xpose.msra.mxu0 0
    %922 = vmatprep.subr.bf16.mxu0 0
    %923 = vmatpush1.bf16.xpose.msra.mxu0 %v906
    %924 = vmatprep.subr.bf16.mxu0 0
    %925 = vmatpush2.bf16.xpose.msra.mxu0 0
    %926 = vmatprep.subr.bf16.mxu0 0
    %927 = vmatpush2.bf16.xpose.msra.mxu0 0
    %928 = vmatprep.subr.bf16.mxu0 0
    %929 = vmatpush2.bf16.xpose.msra.mxu0 0
    %930 = vmatprep.subr.bf16.mxu0 0
    %931 = vmatpush2.bf16.xpose.msra.mxu0 0
    %932 = vmatprep.subr.bf16.mxu0 0
    %933 = vmatpush2.bf16.xpose.msra.mxu0 0
    %934 = vmatprep.subr.bf16.mxu0 0
    %935 = vmatpush2.bf16.xpose.msra.mxu0 0
    %936 = vmatprep.subr.bf16.mxu0 0
    %937 = vmatpush2.bf16.xpose.msra.mxu0 0
    %938 = vmatprep.subr.bf16.mxu0 0
    %939 = vmatpush2.bf16.xpose.msra.mxu0 0
    %940 = vmatprep.mubr.bf16.mxu0 0
    %941 = vmatmul.mubr.bf16.gmra.mxu0 %v903
    %v942 = vpop.f32.mrf.mxu0
    %v943 = vadd.f32 0.0, %v942
    %v944 = vpop.f32.mrf.mxu0
    %v945 = vpop.f32.mrf.mxu0
    %v946 = vpop.f32.mrf.mxu0
    %947 = vdwg.mxu0
    %v948 = vmul.f32 %v796, 0.35355338
    %v949 = vmul.f32 %v845, 0.35355338
    %v950 = vmul.f32 %v894, 0.35355338
    %v951 = vmul.f32 %v943, 0.35355338
    %v953 = vlaneseq
    %v954 = vshrl.u32 %v953, 7
    %v955 = vsub.s32 0, %v954
    %v956 = vrot.slane %v162, %v955
    %v958 = vadd.f32 %v948, %v956
    %v959 = vadd.f32 %v949, %v956
    %v960 = vadd.f32 %v950, %v956
    %v961 = vadd.f32 %v951, %v956
    %v962 = vsel %vm289, %v958, -inf
    %963 = vmax.xlane.f32.xlu0 %v962
    %v964 = vpop.xlane.xlu0 %963
    %v965 = vsel %vm289, %v959, -inf
    %966 = vmax.xlane.f32.xlu0 %v965
    %v967 = vpop.xlane.xlu0 %966
    %v968 = vsel %vm289, %v960, -inf
    %969 = vmax.xlane.f32.xlu0 %v968
    %v970 = vpop.xlane.xlu0 %969
    %v971 = vsel %vm289, %v961, -inf
    %972 = vmax.xlane.f32.xlu0 %v971
    %v973 = vpop.xlane.xlu0 %972
    %v974 = vsub.f32 %v958, %v964
    %v975 = vsub.f32 %v959, %v967
    %v976 = vsub.f32 %v960, %v970
    %v977 = vsub.f32 %v961, %v973
    %v978 = vmul.f32 %v974, 1.442695
    %v979 = vpow.pop %v978
    %v980 = vmul.f32 %v975, 1.442695
    %v981 = vpow.pop %v980
    %v982 = vmul.f32 %v976, 1.442695
    %v983 = vpow.pop %v982
    %v984 = vmul.f32 %v977, 1.442695
    %v985 = vpow.pop %v984
    %v986 = vsel %vm289, %v979, 0.0
    %987 = vadd.xlane.f32.xlu0 %v986
    %v988 = vpop.xlane.xlu0 %987
    %v989 = vsel %vm289, %v981, 0.0
    %990 = vadd.xlane.f32.xlu0 %v989
    %v991 = vpop.xlane.xlu0 %990
    %v992 = vsel %vm289, %v983, 0.0
    %993 = vadd.xlane.f32.xlu0 %v992
    %v994 = vpop.xlane.xlu0 %993
    %v995 = vsel %vm289, %v985, 0.0
    %996 = vadd.xlane.f32.xlu0 %v995
    %v997 = vpop.xlane.xlu0 %996
    %v998 = vrcp.pop %v988
    %v999 = vrcp.pop %v991
    %v1000 = vrcp.pop %v994
    %v1001 = vrcp.pop %v997
    %v1002 = vmul.f32 %v979, %v998
    %v1003 = vmul.f32 %v981, %v999
    %v1004 = vmul.f32 %v983, %v1000
    %v1005 = vmul.f32 %v985, %v1001
    %v1006 = vpack.c.bf16 %v1002, %v1002
    %v1007 = vpack.c.bf16 %v1003, %v1003
    %v1008 = vpack.c.bf16 %v1004, %v1004
    %v1009 = vpack.c.bf16 %v1005, %v1005
    %1010 = vrot.lane.b32.xlu0 %v752, 64
    %v1011 = vpop.permute.xlu0 %1010
    %v1013 = vsel %vm289, %v1006, 0
    %v1016 = vsel %vm547, %v1011, 0
    %1018 = vmatprep.subr.bf16.mxu0 0
    %1019 = vmatpush1.bf16.msra.mxu0 0
    %1020 = vmatprep.subr.bf16.mxu0 0
    %1021 = vmatpush1.bf16.msra.mxu0 0
    %1022 = vmatprep.subr.bf16.mxu0 0
    %1023 = vmatpush1.bf16.msra.mxu0 0
    %1024 = vmatprep.subr.bf16.mxu0 0
    %1025 = vmatpush1.bf16.msra.mxu0 0
    %1026 = vmatprep.subr.bf16.mxu0 0
    %1027 = vmatpush1.bf16.msra.mxu0 0
    %1028 = vmatprep.subr.bf16.mxu0 0
    %1029 = vmatpush1.bf16.msra.mxu0 0
    %1030 = vmatprep.subr.bf16.mxu0 0
    %1031 = vmatpush1.bf16.msra.mxu0 0
    %1032 = vmatprep.subr.bf16.mxu0 0
    %1033 = vmatpush1.bf16.msra.mxu0 %v1016
    %1034 = vmatprep.subr.bf16.mxu0 0
    %1035 = vmatpush2.bf16.msra.mxu0 0
    %1036 = vmatprep.subr.bf16.mxu0 0
    %1037 = vmatpush2.bf16.msra.mxu0 0
    %1038 = vmatprep.subr.bf16.mxu0 0
    %1039 = vmatpush2.bf16.msra.mxu0 0
    %1040 = vmatprep.subr.bf16.mxu0 0
    %1041 = vmatpush2.bf16.msra.mxu0 0
    %1042 = vmatprep.subr.bf16.mxu0 0
    %1043 = vmatpush2.bf16.msra.mxu0 0
    %1044 = vmatprep.subr.bf16.mxu0 0
    %1045 = vmatpush2.bf16.msra.mxu0 0
    %1046 = vmatprep.subr.bf16.mxu0 0
    %1047 = vmatpush2.bf16.msra.mxu0 0
    %1048 = vmatprep.subr.bf16.mxu0 0
    %1049 = vmatpush2.bf16.msra.mxu0 0
    %1050 = vmatprep.mubr.bf16.mxu0 0
    %1051 = vmatmul.mubr.bf16.gmra.mxu0 %v1013
    %v1052 = vpop.f32.mrf.mxu0
    %v1053 = vadd.f32 0.0, %v1052
    %v1054 = vpop.f32.mrf.mxu0
    %v1055 = vpop.f32.mrf.mxu0
    %v1056 = vpop.f32.mrf.mxu0
    %1057 = vdwg.mxu0
    %1058 = vrot.lane.b32.xlu0 %v801, 64
    %v1059 = vpop.permute.xlu0 %1058
    %v1061 = vsel %vm289, %v1007, 0
    %v1064 = vsel %vm547, %v1059, 0
    %1066 = vmatprep.subr.bf16.mxu0 0
    %1067 = vmatpush1.bf16.msra.mxu0 0
    %1068 = vmatprep.subr.bf16.mxu0 0
    %1069 = vmatpush1.bf16.msra.mxu0 0
    %1070 = vmatprep.subr.bf16.mxu0 0
    %1071 = vmatpush1.bf16.msra.mxu0 0
    %1072 = vmatprep.subr.bf16.mxu0 0
    %1073 = vmatpush1.bf16.msra.mxu0 0
    %1074 = vmatprep.subr.bf16.mxu0 0
    %1075 = vmatpush1.bf16.msra.mxu0 0
    %1076 = vmatprep.subr.bf16.mxu0 0
    %1077 = vmatpush1.bf16.msra.mxu0 0
    %1078 = vmatprep.subr.bf16.mxu0 0
    %1079 = vmatpush1.bf16.msra.mxu0 0
    %1080 = vmatprep.subr.bf16.mxu0 0
    %1081 = vmatpush1.bf16.msra.mxu0 %v1064
    %1082 = vmatprep.subr.bf16.mxu0 0
    %1083 = vmatpush2.bf16.msra.mxu0 0
    %1084 = vmatprep.subr.bf16.mxu0 0
    %1085 = vmatpush2.bf16.msra.mxu0 0
    %1086 = vmatprep.subr.bf16.mxu0 0
    %1087 = vmatpush2.bf16.msra.mxu0 0
    %1088 = vmatprep.subr.bf16.mxu0 0
    %1089 = vmatpush2.bf16.msra.mxu0 0
    %1090 = vmatprep.subr.bf16.mxu0 0
    %1091 = vmatpush2.bf16.msra.mxu0 0
    %1092 = vmatprep.subr.bf16.mxu0 0
    %1093 = vmatpush2.bf16.msra.mxu0 0
    %1094 = vmatprep.subr.bf16.mxu0 0
    %1095 = vmatpush2.bf16.msra.mxu0 0
    %1096 = vmatprep.subr.bf16.mxu0 0
    %1097 = vmatpush2.bf16.msra.mxu0 0
    %1098 = vmatprep.mubr.bf16.mxu0 0
    %1099 = vmatmul.mubr.bf16.gmra.mxu0 %v1061
    %v1100 = vpop.f32.mrf.mxu0
    %v1101 = vadd.f32 0.0, %v1100
    %v1102 = vpop.f32.mrf.mxu0
    %v1103 = vpop.f32.mrf.mxu0
    %v1104 = vpop.f32.mrf.mxu0
    %1105 = vdwg.mxu0
    %1106 = vrot.lane.b32.xlu0 %v850, 64
    %v1107 = vpop.permute.xlu0 %1106
    %v1109 = vsel %vm289, %v1008, 0
    %v1112 = vsel %vm547, %v1107, 0
    %1114 = vmatprep.subr.bf16.mxu0 0
    %1115 = vmatpush1.bf16.msra.mxu0 0
    %1116 = vmatprep.subr.bf16.mxu0 0
    %1117 = vmatpush1.bf16.msra.mxu0 0
    %1118 = vmatprep.subr.bf16.mxu0 0
    %1119 = vmatpush1.bf16.msra.mxu0 0
    %1120 = vmatprep.subr.bf16.mxu0 0
    %1121 = vmatpush1.bf16.msra.mxu0 0
    %1122 = vmatprep.subr.bf16.mxu0 0
    %1123 = vmatpush1.bf16.msra.mxu0 0
    %1124 = vmatprep.subr.bf16.mxu0 0
    %1125 = vmatpush1.bf16.msra.mxu0 0
    %1126 = vmatprep.subr.bf16.mxu0 0
    %1127 = vmatpush1.bf16.msra.mxu0 0
    %1128 = vmatprep.subr.bf16.mxu0 0
    %1129 = vmatpush1.bf16.msra.mxu0 %v1112
    %1130 = vmatprep.subr.bf16.mxu0 0
    %1131 = vmatpush2.bf16.msra.mxu0 0
    %1132 = vmatprep.subr.bf16.mxu0 0
    %1133 = vmatpush2.bf16.msra.mxu0 0
    %1134 = vmatprep.subr.bf16.mxu0 0
    %1135 = vmatpush2.bf16.msra.mxu0 0
    %1136 = vmatprep.subr.bf16.mxu0 0
    %1137 = vmatpush2.bf16.msra.mxu0 0
    %1138 = vmatprep.subr.bf16.mxu0 0
    %1139 = vmatpush2.bf16.msra.mxu0 0
    %1140 = vmatprep.subr.bf16.mxu0 0
    %1141 = vmatpush2.bf16.msra.mxu0 0
    %1142 = vmatprep.subr.bf16.mxu0 0
    %1143 = vmatpush2.bf16.msra.mxu0 0
    %1144 = vmatprep.subr.bf16.mxu0 0
    %1145 = vmatpush2.bf16.msra.mxu0 0
    %1146 = vmatprep.mubr.bf16.mxu0 0
    %1147 = vmatmul.mubr.bf16.gmra.mxu0 %v1109
    %v1148 = vpop.f32.mrf.mxu0
    %v1149 = vadd.f32 0.0, %v1148
    %v1150 = vpop.f32.mrf.mxu0
    %v1151 = vpop.f32.mrf.mxu0
    %v1152 = vpop.f32.mrf.mxu0
    %1153 = vdwg.mxu0
    %1154 = vrot.lane.b32.xlu0 %v899, 64
    %v1155 = vpop.permute.xlu0 %1154
    %v1157 = vsel %vm289, %v1009, 0
    %v1160 = vsel %vm547, %v1155, 0
    %1162 = vmatprep.subr.bf16.mxu0 0
    %1163 = vmatpush1.bf16.msra.mxu0 0
    %1164 = vmatprep.subr.bf16.mxu0 0
    %1165 = vmatpush1.bf16.msra.mxu0 0
    %1166 = vmatprep.subr.bf16.mxu0 0
    %1167 = vmatpush1.bf16.msra.mxu0 0
    %1168 = vmatprep.subr.bf16.mxu0 0
    %1169 = vmatpush1.bf16.msra.mxu0 0
    %1170 = vmatprep.subr.bf16.mxu0 0
    %1171 = vmatpush1.bf16.msra.mxu0 0
    %1172 = vmatprep.subr.bf16.mxu0 0
    %1173 = vmatpush1.bf16.msra.mxu0 0
    %1174 = vmatprep.subr.bf16.mxu0 0
    %1175 = vmatpush1.bf16.msra.mxu0 0
    %1176 = vmatprep.subr.bf16.mxu0 0
    %1177 = vmatpush1.bf16.msra.mxu0 %v1160
    %1178 = vmatprep.subr.bf16.mxu0 0
    %1179 = vmatpush2.bf16.msra.mxu0 0
    %1180 = vmatprep.subr.bf16.mxu0 0
    %1181 = vmatpush2.bf16.msra.mxu0 0
    %1182 = vmatprep.subr.bf16.mxu0 0
    %1183 = vmatpush2.bf16.msra.mxu0 0
    %1184 = vmatprep.subr.bf16.mxu0 0
    %1185 = vmatpush2.bf16.msra.mxu0 0
    %1186 = vmatprep.subr.bf16.mxu0 0
    %1187 = vmatpush2.bf16.msra.mxu0 0
    %1188 = vmatprep.subr.bf16.mxu0 0
    %1189 = vmatpush2.bf16.msra.mxu0 0
    %1190 = vmatprep.subr.bf16.mxu0 0
    %1191 = vmatpush2.bf16.msra.mxu0 0
    %1192 = vmatprep.subr.bf16.mxu0 0
    %1193 = vmatpush2.bf16.msra.mxu0 0
    %1194 = vmatprep.mubr.bf16.mxu0 0
    %1195 = vmatmul.mubr.bf16.gmra.mxu0 %v1157
    %v1196 = vpop.f32.mrf.mxu0
    %v1197 = vadd.f32 0.0, %v1196
    %v1198 = vpop.f32.mrf.mxu0
    %v1199 = vpop.f32.mrf.mxu0
    %v1200 = vpop.f32.mrf.mxu0
    %1201 = vdwg.mxu0
    %1203 = vrot.lane.b32.xlu0 %v1101, 8
    %v1204 = vpop.permute.xlu0 %1203
    %1207 = vrot.lane.b32.xlu0 %v1149, 16
    %v1208 = vpop.permute.xlu0 %1207
    %1211 = vrot.lane.b32.xlu0 %v1197, 24
    %v1212 = vpop.permute.xlu0 %1211
    %v1214 = vsel %vm289, %v1053, %v1204
    %v1215 = vsel %vm748, %v1214, %v1208
    %v1216 = vsel %vm750, %v1215, %v1212
    %v1217 = vld [vmem:[%s6] sm:$0xf]
    %v1218 = vld [vmem:[%s6 + $0x4] sm:$0xf]
    %v1219 = vld [vmem:[%s6 + $0x8] sm:$0xf]
    %v1220 = vld [vmem:[%s6 + $0xc] sm:$0xf]
    %v1221 = vpack.c.bf16 %v1216, %v751
    %v1222 = vld [vmem:[#allocation12] sm:$0x1]
    %v1224 = vlaneseq
    %v1225 = vshrl.u32 %v1224, 7
    %v1226 = vsub.s32 0, %v1225
    %v1227 = vrot.slane %v1222, %v1226
    %v1233 = vunpack.c.l.b16 %v1217
    %v1234 = vunpack.c.l.b16 %v1218
    %v1235 = vunpack.c.l.b16 %v1219
    %v1236 = vunpack.c.l.b16 %v1220
    %v1237 = vpack.c.b16 %v1234, %v1233
    %v1238 = vpack.c.b16 %v1236, %v1235
    %v1242 = vsel %vm167, %v1221, 0
    %1244 = vmatprep.subr.bf16.mxu0 0
    %1245 = vmatpush1.bf16.msra.mxu0 0
    %1246 = vmatprep.subr.bf16.mxu0 0
    %1247 = vmatpush1.bf16.msra.mxu0 0
    %1248 = vmatprep.subr.bf16.mxu0 0
    %1249 = vmatpush1.bf16.msra.mxu0 0
    %1250 = vmatprep.subr.bf16.mxu0 0
    %1251 = vmatpush1.bf16.msra.mxu0 0
    %1252 = vmatprep.subr.bf16.mxu0 0
    %1253 = vmatpush1.bf16.msra.mxu0 0
    %1254 = vmatprep.subr.bf16.mxu0 0
    %1255 = vmatpush1.bf16.msra.mxu0 0
    %1256 = vmatprep.subr.bf16.mxu0 0
    %1257 = vmatpush1.bf16.msra.mxu0 %v1238
    %1258 = vmatprep.subr.bf16.mxu0 0
    %1259 = vmatpush1.bf16.msra.mxu0 %v1237
    %1260 = vmatprep.subr.bf16.mxu0 0
    %1261 = vmatpush2.bf16.msra.mxu0 0
    %1262 = vmatprep.subr.bf16.mxu0 0
    %1263 = vmatpush2.bf16.msra.mxu0 0
    %1264 = vmatprep.subr.bf16.mxu0 0
    %1265 = vmatpush2.bf16.msra.mxu0 0
    %1266 = vmatprep.subr.bf16.mxu0 0
    %1267 = vmatpush2.bf16.msra.mxu0 0
    %1268 = vmatprep.subr.bf16.mxu0 0
    %1269 = vmatpush2.bf16.msra.mxu0 0
    %1270 = vmatprep.subr.bf16.mxu0 0
    %1271 = vmatpush2.bf16.msra.mxu0 0
    %1272 = vmatprep.subr.bf16.mxu0 0
    %1273 = vmatpush2.bf16.msra.mxu0 0
    %1274 = vmatprep.subr.bf16.mxu0 0
    %1275 = vmatpush2.bf16.msra.mxu0 0
    %1276 = vmatprep.mubr.bf16.mxu0 0
    %1277 = vmatmul.mubr.bf16.gmra.mxu0 %v1242
    %v1278 = vpop.f32.mrf.mxu0
    %v1279 = vadd.f32 %v1227, %v1278
    %v1280 = vpop.f32.mrf.mxu0
    %v1281 = vpop.f32.mrf.mxu0
    %v1282 = vadd.f32 %v1227, %v1281
    %v1283 = vpop.f32.mrf.mxu0
    %1284 = vdwg.mxu0
    %v1285 = vadd.f32 %v209, %v1279
    %v1286 = vadd.f32 %v210, %v1282
    %v1287 = vld [vmem:[#allocation14] sm:$0x1]
    %v1288 = vld [vmem:[%s9] sm:$0x1]
    %v1289 = vsel %vm167, %v1285, 0.0
    %1290 = vadd.xlane.f32.xlu0 %v1289
    %v1291 = vpop.xlane.xlu0 %1290
    %v1292 = vsel %vm167, %v1286, 0.0
    %1293 = vadd.xlane.f32.xlu0 %v1292
    %v1294 = vpop.xlane.xlu0 %1293
    %v1295 = vmul.f32 %v1291, %v174
    %v1296 = vmul.f32 %v1294, %v174
    %v1297 = vsub.f32 %v1285, %v1295
    %v1298 = vsub.f32 %v1286, %v1296
    %v1299 = vmul.f32 %v1297, %v1297
    %v1300 = vmul.f32 %v1298, %v1298
    %v1301 = vsel %vm167, %v1299, 0.0
    %1302 = vadd.xlane.f32.xlu0 %v1301
    %v1303 = vpop.xlane.xlu0 %1302
    %v1304 = vsel %vm167, %v1300, 0.0
    %1305 = vadd.xlane.f32.xlu0 %v1304
    %v1306 = vpop.xlane.xlu0 %1305
    %v1307 = vmul.f32 %v1303, %v174
    %v1308 = vmul.f32 %v1306, %v174
    %v1309 = vadd.f32 %v1307, 1e-12
    %v1310 = vadd.f32 %v1308, 1e-12
    %v1311 = vrsqrt.pop %v1309
    %v1312 = vrsqrt.pop %v1310
    %v1313 = vmul.f32 %v1297, %v1311
    %v1314 = vmul.f32 %v1298, %v1312
    %v1316 = vlaneseq
    %v1317 = vshrl.u32 %v1316, 7
    %v1318 = vsub.s32 0, %v1317
    %v1319 = vrot.slane %v1287, %v1318
    %v1321 = vmul.f32 %v1313, %v1319
    %v1322 = vmul.f32 %v1314, %v1319
    %v1324 = vlaneseq
    %v1325 = vshrl.u32 %v1324, 7
    %v1326 = vsub.s32 0, %v1325
    %v1327 = vrot.slane %v1288, %v1326
    %v1329 = vadd.f32 %v1321, %v1327
    %v1330 = vadd.f32 %v1322, %v1327
    %v1331 = vld [vmem:[%s10] sm:$0xf]
    %v1332 = vld [vmem:[%s10 + $0x4] sm:$0xf]
    %v1333 = vld [vmem:[%s10 + $0x8] sm:$0xf]
    %v1334 = vld [vmem:[%s10 + $0xc] sm:$0xf]
    %v1335 = vpack.c.bf16 %v1330, %v1329
    %v1336 = vld [vmem:[%s11] sm:$0x1]
    %v1338 = vlaneseq
    %v1339 = vshrl.u32 %v1338, 7
    %v1340 = vsub.s32 0, %v1339
    %v1341 = vrot.slane %v1336, %v1340
    %v1347 = vunpack.c.l.b16 %v1331
    %v1348 = vunpack.c.l.b16 %v1332
    %v1349 = vunpack.c.l.b16 %v1333
    %v1350 = vunpack.c.l.b16 %v1334
    %v1351 = vpack.c.b16 %v1348, %v1347
    %v1352 = vpack.c.b16 %v1350, %v1349
    %v1356 = vsel %vm167, %v1335, 0
    %1358 = vmatprep.subr.bf16.mxu0 0
    %1359 = vmatpush1.bf16.msra.mxu0 0
    %1360 = vmatprep.subr.bf16.mxu0 0
    %1361 = vmatpush1.bf16.msra.mxu0 0
    %1362 = vmatprep.subr.bf16.mxu0 0
    %1363 = vmatpush1.bf16.msra.mxu0 0
    %1364 = vmatprep.subr.bf16.mxu0 0
    %1365 = vmatpush1.bf16.msra.mxu0 0
    %1366 = vmatprep.subr.bf16.mxu0 0
    %1367 = vmatpush1.bf16.msra.mxu0 0
    %1368 = vmatprep.subr.bf16.mxu0 0
    %1369 = vmatpush1.bf16.msra.mxu0 0
    %1370 = vmatprep.subr.bf16.mxu0 0
    %1371 = vmatpush1.bf16.msra.mxu0 %v1352
    %1372 = vmatprep.subr.bf16.mxu0 0
    %1373 = vmatpush1.bf16.msra.mxu0 %v1351
    %1374 = vmatprep.subr.bf16.mxu0 0
    %1375 = vmatpush2.bf16.msra.mxu0 0
    %1376 = vmatprep.subr.bf16.mxu0 0
    %1377 = vmatpush2.bf16.msra.mxu0 0
    %1378 = vmatprep.subr.bf16.mxu0 0
    %1379 = vmatpush2.bf16.msra.mxu0 0
    %1380 = vmatprep.subr.bf16.mxu0 0
    %1381 = vmatpush2.bf16.msra.mxu0 0
    %1382 = vmatprep.subr.bf16.mxu0 0
    %1383 = vmatpush2.bf16.msra.mxu0 0
    %1384 = vmatprep.subr.bf16.mxu0 0
    %1385 = vmatpush2.bf16.msra.mxu0 0
    %1386 = vmatprep.subr.bf16.mxu0 0
    %1387 = vmatpush2.bf16.msra.mxu0 0
    %1388 = vmatprep.subr.bf16.mxu0 0
    %1389 = vmatpush2.bf16.msra.mxu0 0
    %1390 = vmatprep.mubr.bf16.mxu0 0
    %1391 = vmatmul.mubr.bf16.gmra.mxu0 %v1356
    %v1392 = vpop.f32.mrf.mxu0
    %v1393 = vadd.f32 %v1341, %v1392
    %v1394 = vpop.f32.mrf.mxu0
    %v1395 = vpop.f32.mrf.mxu0
    %v1396 = vadd.f32 %v1341, %v1395
    %v1397 = vpop.f32.mrf.mxu0
    %1398 = vdwg.mxu0
    %v1399 = vmul.f32 %v1393, %v1393
    %v1400 = vmul.f32 %v1396, %v1396
    %v1401 = vmul.f32 %v1393, %v1399
    %v1402 = vmul.f32 %v1396, %v1400
    %v1403 = vmul.f32 %v1401, 0.044715
    %v1404 = vmul.f32 %v1402, 0.044715
    %v1405 = vadd.f32 %v1393, %v1403
    %v1406 = vadd.f32 %v1396, %v1404
    %v1407 = vmul.f32 %v1405, 0.7978846
    %v1408 = vmul.f32 %v1406, 0.7978846
    %v1409 = vtanh.pop %v1407
    %v1410 = vtanh.pop %v1408
    %v1411 = vadd.f32 %v1409, 1.0
    %v1412 = vadd.f32 %v1410, 1.0
    %v1413 = vmul.f32 %v1411, 0.5
    %v1414 = vmul.f32 %v1412, 0.5
    %v1415 = vmul.f32 %v1393, %v1413
    %v1416 = vmul.f32 %v1396, %v1414
    %v1417 = vld [vmem:[%s12] sm:$0xf]
    %v1418 = vld [vmem:[%s12 + $0x4] sm:$0xf]
    %v1419 = vld [vmem:[%s12 + $0x8] sm:$0xf]
    %v1420 = vld [vmem:[%s12 + $0xc] sm:$0xf]
    %v1421 = vld [vmem:[%s12 + $0x10] sm:$0xf]
    %v1422 = vld [vmem:[%s12 + $0x14] sm:$0xf]
    %v1423 = vld [vmem:[%s12 + $0x18] sm:$0xf]
    %v1424 = vld [vmem:[%s12 + $0x1c] sm:$0xf]
    %v1425 = vpack.c.bf16 %v1416, %v1415
    %v1426 = vld [vmem:[%s13] sm:$0x1]
    %v1428 = vlaneseq
    %v1429 = vshrl.u32 %v1428, 7
    %v1430 = vsub.s32 0, %v1429
    %v1431 = vrot.slane %v1426, %v1430
    %v1441 = vunpack.c.l.b16 %v1417
    %v1442 = vunpack.c.l.b16 %v1418
    %v1443 = vunpack.c.l.b16 %v1419
    %v1444 = vunpack.c.l.b16 %v1420
    %v1445 = vunpack.c.l.b16 %v1421
    %v1446 = vunpack.c.l.b16 %v1422
    %v1447 = vunpack.c.l.b16 %v1423
    %v1448 = vunpack.c.l.b16 %v1424
    %v1449 = vpack.c.b16 %v1442, %v1441
    %v1450 = vpack.c.b16 %v1444, %v1443
    %v1451 = vpack.c.b16 %v1446, %v1445
    %v1452 = vpack.c.b16 %v1448, %v1447
    %vm1457 = vcmask 523264
    %v1459 = vsel %vm1457, %v1425, 0
    %1461 = vmatprep.subr.bf16.mxu0 0
    %1462 = vmatpush1.bf16.msra.mxu0 0
    %1463 = vmatprep.subr.bf16.mxu0 0
    %1464 = vmatpush1.bf16.msra.mxu0 0
    %1465 = vmatprep.subr.bf16.mxu0 0
    %1466 = vmatpush1.bf16.msra.mxu0 0
    %1467 = vmatprep.subr.bf16.mxu0 0
    %1468 = vmatpush1.bf16.msra.mxu0 0
    %1469 = vmatprep.subr.bf16.mxu0 0
    %1470 = vmatpush1.bf16.msra.mxu0 %v1452
    %1471 = vmatprep.subr.bf16.mxu0 0
    %1472 = vmatpush1.bf16.msra.mxu0 %v1451
    %1473 = vmatprep.subr.bf16.mxu0 0
    %1474 = vmatpush1.bf16.msra.mxu0 %v1450
    %1475 = vmatprep.subr.bf16.mxu0 0
    %1476 = vmatpush1.bf16.msra.mxu0 %v1449
    %1477 = vmatprep.subr.bf16.mxu0 0
    %1478 = vmatpush2.bf16.msra.mxu0 0
    %1479 = vmatprep.subr.bf16.mxu0 0
    %1480 = vmatpush2.bf16.msra.mxu0 0
    %1481 = vmatprep.subr.bf16.mxu0 0
    %1482 = vmatpush2.bf16.msra.mxu0 0
    %1483 = vmatprep.subr.bf16.mxu0 0
    %1484 = vmatpush2.bf16.msra.mxu0 0
    %1485 = vmatprep.subr.bf16.mxu0 0
    %1486 = vmatpush2.bf16.msra.mxu0 0
    %1487 = vmatprep.subr.bf16.mxu0 0
    %1488 = vmatpush2.bf16.msra.mxu0 0
    %1489 = vmatprep.subr.bf16.mxu0 0
    %1490 = vmatpush2.bf16.msra.mxu0 0
    %1491 = vmatprep.subr.bf16.mxu0 0
    %1492 = vmatpush2.bf16.msra.mxu0 0
    %1493 = vmatprep.mubr.bf16.mxu0 0
    %1494 = vmatmul.mubr.bf16.gmra.mxu0 %v1459
    %v1495 = vpop.f32.mrf.mxu0
    %v1496 = vadd.f32 %v1431, %v1495
    %v1497 = vpop.f32.mrf.mxu0
    %v1498 = vpop.f32.mrf.mxu0
    %v1499 = vadd.f32 %v1431, %v1498
    %v1500 = vpop.f32.mrf.mxu0
    %1501 = vdwg.mxu0
    %v1502 = vadd.f32 %v1329, %v1496
    %v1503 = vadd.f32 %v1330, %v1499
    %v1504 = vld [vmem:[%s14] sm:$0x1]
    %v1505 = vld [vmem:[%s15] sm:$0x1]
    %v1506 = vsel %vm167, %v1502, 0.0
    %1507 = vadd.xlane.f32.xlu0 %v1506
    %v1508 = vpop.xlane.xlu0 %1507
    %v1509 = vsel %vm167, %v1503, 0.0
    %1510 = vadd.xlane.f32.xlu0 %v1509
    %v1511 = vpop.xlane.xlu0 %1510
    %v1512 = vmul.f32 %v1508, %v174
    %v1513 = vmul.f32 %v1511, %v174
    %v1514 = vsub.f32 %v1502, %v1512
    %v1515 = vsub.f32 %v1503, %v1513
    %v1516 = vmul.f32 %v1514, %v1514
    %v1517 = vmul.f32 %v1515, %v1515
    %v1518 = vsel %vm167, %v1516, 0.0
    %1519 = vadd.xlane.f32.xlu0 %v1518
    %v1520 = vpop.xlane.xlu0 %1519
    %v1521 = vsel %vm167, %v1517, 0.0
    %1522 = vadd.xlane.f32.xlu0 %v1521
    %v1523 = vpop.xlane.xlu0 %1522
    %v1524 = vmul.f32 %v1520, %v174
    %v1525 = vmul.f32 %v1523, %v174
    %v1526 = vadd.f32 %v1524, 1e-12
    %v1527 = vadd.f32 %v1525, 1e-12
    %v1528 = vrsqrt.pop %v1526
    %v1529 = vrsqrt.pop %v1527
    %v1530 = vmul.f32 %v1514, %v1528
    %v1531 = vmul.f32 %v1515, %v1529
    %v1533 = vlaneseq
    %v1534 = vshrl.u32 %v1533, 7
    %v1535 = vsub.s32 0, %v1534
    %v1536 = vrot.slane %v1504, %v1535
    %v1538 = vmul.f32 %v1530, %v1536
    %v1539 = vmul.f32 %v1531, %v1536
    %v1541 = vlaneseq
    %v1542 = vshrl.u32 %v1541, 7
    %v1543 = vsub.s32 0, %v1542
    %v1544 = vrot.slane %v1505, %v1543
    %v1546 = vadd.f32 %v1538, %v1544
    %v1547 = vadd.f32 %v1539, %v1544
    %s1548 = scalar_lea.vmem %s4, 16
    %v1549 = vld [vmem:[%s1548] sm:$0xf]
    %v1550 = vld [vmem:[%s1548 + $0x4] sm:$0xf]
    %v1551 = vld [vmem:[%s1548 + $0x8] sm:$0xf]
    %v1552 = vld [vmem:[%s1548 + $0xc] sm:$0xf]
    %v1553 = vpack.c.bf16 %v1547, %v1546
    %s1554 = scalar_lea.vmem [#allocation11], 1
    %v1555 = vld [vmem:[%s1554] sm:$0x1]
    %v1557 = vlaneseq
    %v1558 = vshrl.u32 %v1557, 7
    %v1559 = vsub.s32 0, %v1558
    %v1560 = vrot.slane %v1555, %v1559
    %v1566 = vunpack.c.l.b16 %v1549
    %v1567 = vunpack.c.l.b16 %v1550
    %v1568 = vunpack.c.l.b16 %v1551
    %v1569 = vunpack.c.l.b16 %v1552
    %v1570 = vpack.c.b16 %v1567, %v1566
    %v1571 = vpack.c.b16 %v1569, %v1568
    %v1575 = vsel %vm167, %v1553, 0
    %1577 = vmatprep.subr.bf16.mxu0 0
    %1578 = vmatpush1.bf16.msra.mxu0 0
    %1579 = vmatprep.subr.bf16.mxu0 0
    %1580 = vmatpush1.bf16.msra.mxu0 0
    %1581 = vmatprep.subr.bf16.mxu0 0
    %1582 = vmatpush1.bf16.msra.mxu0 0
    %1583 = vmatprep.subr.bf16.mxu0 0
    %1584 = vmatpush1.bf16.msra.mxu0 0
    %1585 = vmatprep.subr.bf16.mxu0 0
    %1586 = vmatpush1.bf16.msra.mxu0 0
    %1587 = vmatprep.subr.bf16.mxu0 0
    %1588 = vmatpush1.bf16.msra.mxu0 0
    %1589 = vmatprep.subr.bf16.mxu0 0
    %1590 = vmatpush1.bf16.msra.mxu0 %v1571
    %1591 = vmatprep.subr.bf16.mxu0 0
    %1592 = vmatpush1.bf16.msra.mxu0 %v1570
    %1593 = vmatprep.subr.bf16.mxu0 0
    %1594 = vmatpush2.bf16.msra.mxu0 0
    %1595 = vmatprep.subr.bf16.mxu0 0
    %1596 = vmatpush2.bf16.msra.mxu0 0
    %1597 = vmatprep.subr.bf16.mxu0 0
    %1598 = vmatpush2.bf16.msra.mxu0 0
    %1599 = vmatprep.subr.bf16.mxu0 0
    %1600 = vmatpush2.bf16.msra.mxu0 0
    %1601 = vmatprep.subr.bf16.mxu0 0
    %1602 = vmatpush2.bf16.msra.mxu0 0
    %1603 = vmatprep.subr.bf16.mxu0 0
    %1604 = vmatpush2.bf16.msra.mxu0 0
    %1605 = vmatprep.subr.bf16.mxu0 0
    %1606 = vmatpush2.bf16.msra.mxu0 0
    %1607 = vmatprep.subr.bf16.mxu0 0
    %1608 = vmatpush2.bf16.msra.mxu0 0
    %1609 = vmatprep.mubr.bf16.mxu0 0
    %1610 = vmatmul.mubr.bf16.gmra.mxu0 %v1575
    %v1611 = vpop.f32.mrf.mxu0
    %v1612 = vadd.f32 %v1560, %v1611
    %v1613 = vpop.f32.mrf.mxu0
    %v1614 = vpop.f32.mrf.mxu0
    %v1615 = vadd.f32 %v1560, %v1614
    %v1616 = vpop.f32.mrf.mxu0
    %1617 = vdwg.mxu0
    %v1618 = vpack.c.bf16 %v1615, %v1612
    %1620 = vrot.lane.b32.xlu0 %v1618, 120
    %v1621 = vpop.permute.xlu0 %1620
    %1622 = vrot.lane.b32.xlu0 %v1618, 112
    %v1623 = vpop.permute.xlu0 %1622
    %1624 = vrot.lane.b32.xlu0 %v1618, 104
    %v1625 = vpop.permute.xlu0 %1624
    %1626 = vrot.lane.b32.xlu0 %v1618, 96
    %v1627 = vpop.permute.xlu0 %1626
    %v1629 = vsel %vm289, %v1618, 0
    %v1632 = vsel %vm289, %v1627, 0
    %1634 = vmatprep.subr.bf16.mxu0 0
    %1635 = vmatpush1.bf16.xpose.msra.mxu0 0
    %1636 = vmatprep.subr.bf16.mxu0 0
    %1637 = vmatpush1.bf16.xpose.msra.mxu0 0
    %1638 = vmatprep.subr.bf16.mxu0 0
    %1639 = vmatpush1.bf16.xpose.msra.mxu0 0
    %1640 = vmatprep.subr.bf16.mxu0 0
    %1641 = vmatpush1.bf16.xpose.msra.mxu0 0
    %1642 = vmatprep.subr.bf16.mxu0 0
    %1643 = vmatpush1.bf16.xpose.msra.mxu0 0
    %1644 = vmatprep.subr.bf16.mxu0 0
    %1645 = vmatpush1.bf16.xpose.msra.mxu0 0
    %1646 = vmatprep.subr.bf16.mxu0 0
    %1647 = vmatpush1.bf16.xpose.msra.mxu0 0
    %1648 = vmatprep.subr.bf16.mxu0 0
    %1649 = vmatpush1.bf16.xpose.msra.mxu0 %v1632
    %1650 = vmatprep.subr.bf16.mxu0 0
    %1651 = vmatpush2.bf16.xpose.msra.mxu0 0
    %1652 = vmatprep.subr.bf16.mxu0 0
    %1653 = vmatpush2.bf16.xpose.msra.mxu0 0
    %1654 = vmatprep.subr.bf16.mxu0 0
    %1655 = vmatpush2.bf16.xpose.msra.mxu0 0
    %1656 = vmatprep.subr.bf16.mxu0 0
    %1657 = vmatpush2.bf16.xpose.msra.mxu0 0
    %1658 = vmatprep.subr.bf16.mxu0 0
    %1659 = vmatpush2.bf16.xpose.msra.mxu0 0
    %1660 = vmatprep.subr.bf16.mxu0 0
    %1661 = vmatpush2.bf16.xpose.msra.mxu0 0
    %1662 = vmatprep.subr.bf16.mxu0 0
    %1663 = vmatpush2.bf16.xpose.msra.mxu0 0
    %1664 = vmatprep.subr.bf16.mxu0 0
    %1665 = vmatpush2.bf16.xpose.msra.mxu0 0
    %1666 = vmatprep.mubr.bf16.mxu0 0
    %1667 = vmatmul.mubr.bf16.gmra.mxu0 %v1629
    %v1668 = vpop.f32.mrf.mxu0
    %v1669 = vadd.f32 0.0, %v1668
    %v1670 = vpop.f32.mrf.mxu0
    %v1671 = vpop.f32.mrf.mxu0
    %v1672 = vpop.f32.mrf.mxu0
    %1673 = vdwg.mxu0
    %1674 = vrot.lane.b32.xlu0 %v1621, 96
    %v1675 = vpop.permute.xlu0 %1674
    %v1677 = vsel %vm289, %v1621, 0
    %v1680 = vsel %vm289, %v1675, 0
    %1682 = vmatprep.subr.bf16.mxu0 0
    %1683 = vmatpush1.bf16.xpose.msra.mxu0 0
    %1684 = vmatprep.subr.bf16.mxu0 0
    %1685 = vmatpush1.bf16.xpose.msra.mxu0 0
    %1686 = vmatprep.subr.bf16.mxu0 0
    %1687 = vmatpush1.bf16.xpose.msra.mxu0 0
    %1688 = vmatprep.subr.bf16.mxu0 0
    %1689 = vmatpush1.bf16.xpose.msra.mxu0 0
    %1690 = vmatprep.subr.bf16.mxu0 0
    %1691 = vmatpush1.bf16.xpose.msra.mxu0 0
    %1692 = vmatprep.subr.bf16.mxu0 0
    %1693 = vmatpush1.bf16.xpose.msra.mxu0 0
    %1694 = vmatprep.subr.bf16.mxu0 0
    %1695 = vmatpush1.bf16.xpose.msra.mxu0 0
    %1696 = vmatprep.subr.bf16.mxu0 0
    %1697 = vmatpush1.bf16.xpose.msra.mxu0 %v1680
    %1698 = vmatprep.subr.bf16.mxu0 0
    %1699 = vmatpush2.bf16.xpose.msra.mxu0 0
    %1700 = vmatprep.subr.bf16.mxu0 0
    %1701 = vmatpush2.bf16.xpose.msra.mxu0 0
    %1702 = vmatprep.subr.bf16.mxu0 0
    %1703 = vmatpush2.bf16.xpose.msra.mxu0 0
    %1704 = vmatprep.subr.bf16.mxu0 0
    %1705 = vmatpush2.bf16.xpose.msra.mxu0 0
    %1706 = vmatprep.subr.bf16.mxu0 0
    %1707 = vmatpush2.bf16.xpose.msra.mxu0 0
    %1708 = vmatprep.subr.bf16.mxu0 0
    %1709 = vmatpush2.bf16.xpose.msra.mxu0 0
    %1710 = vmatprep.subr.bf16.mxu0 0
    %1711 = vmatpush2.bf16.xpose.msra.mxu0 0
    %1712 = vmatprep.subr.bf16.mxu0 0
    %1713 = vmatpush2.bf16.xpose.msra.mxu0 0
    %1714 = vmatprep.mubr.bf16.mxu0 0
    %1715 = vmatmul.mubr.bf16.gmra.mxu0 %v1677
    %v1716 = vpop.f32.mrf.mxu0
    %v1717 = vadd.f32 0.0, %v1716
    %v1718 = vpop.f32.mrf.mxu0
    %v1719 = vpop.f32.mrf.mxu0
    %v1720 = vpop.f32.mrf.mxu0
    %1721 = vdwg.mxu0
    %1722 = vrot.lane.b32.xlu0 %v1623, 96
    %v1723 = vpop.permute.xlu0 %1722
    %v1725 = vsel %vm289, %v1623, 0
    %v1728 = vsel %vm289, %v1723, 0
    %1730 = vmatprep.subr.bf16.mxu0 0
    %1731 = vmatpush1.bf16.xpose.msra.mxu0 0
    %1732 = vmatprep.subr.bf16.mxu0 0
    %1733 = vmatpush1.bf16.xpose.msra.mxu0 0
    %1734 = vmatprep.subr.bf16.mxu0 0
    %1735 = vmatpush1.bf16.xpose.msra.mxu0 0
    %1736 = vmatprep.subr.bf16.mxu0 0
    %1737 = vmatpush1.bf16.xpose.msra.mxu0 0
    %1738 = vmatprep.subr.bf16.mxu0 0
    %1739 = vmatpush1.bf16.xpose.msra.mxu0 0
    %1740 = vmatprep.subr.bf16.mxu0 0
    %1741 = vmatpush1.bf16.xpose.msra.mxu0 0
    %1742 = vmatprep.subr.bf16.mxu0 0
    %1743 = vmatpush1.bf16.xpose.msra.mxu0 0
    %1744 = vmatprep.subr.bf16.mxu0 0
    %1745 = vmatpush1.bf16.xpose.msra.mxu0 %v1728
    %1746 = vmatprep.subr.bf16.mxu0 0
    %1747 = vmatpush2.bf16.xpose.msra.mxu0 0
    %1748 = vmatprep.subr.bf16.mxu0 0
    %1749 = vmatpush2.bf16.xpose.msra.mxu0 0
    %1750 = vmatprep.subr.bf16.mxu0 0
    %1751 = vmatpush2.bf16.xpose.msra.mxu0 0
    %1752 = vmatprep.subr.bf16.mxu0 0
    %1753 = vmatpush2.bf16.xpose.msra.mxu0 0
    %1754 = vmatprep.subr.bf16.mxu0 0
    %1755 = vmatpush2.bf16.xpose.msra.mxu0 0
    %1756 = vmatprep.subr.bf16.mxu0 0
    %1757 = vmatpush2.bf16.xpose.msra.mxu0 0
    %1758 = vmatprep.subr.bf16.mxu0 0
    %1759 = vmatpush2.bf16.xpose.msra.mxu0 0
    %1760 = vmatprep.subr.bf16.mxu0 0
    %1761 = vmatpush2.bf16.xpose.msra.mxu0 0
    %1762 = vmatprep.mubr.bf16.mxu0 0
    %1763 = vmatmul.mubr.bf16.gmra.mxu0 %v1725
    %v1764 = vpop.f32.mrf.mxu0
    %v1765 = vadd.f32 0.0, %v1764
    %v1766 = vpop.f32.mrf.mxu0
    %v1767 = vpop.f32.mrf.mxu0
    %v1768 = vpop.f32.mrf.mxu0
    %1769 = vdwg.mxu0
    %1770 = vrot.lane.b32.xlu0 %v1625, 96
    %v1771 = vpop.permute.xlu0 %1770
    %v1773 = vsel %vm289, %v1625, 0
    %v1776 = vsel %vm289, %v1771, 0
    %1778 = vmatprep.subr.bf16.mxu0 0
    %1779 = vmatpush1.bf16.xpose.msra.mxu0 0
    %1780 = vmatprep.subr.bf16.mxu0 0
    %1781 = vmatpush1.bf16.xpose.msra.mxu0 0
    %1782 = vmatprep.subr.bf16.mxu0 0
    %1783 = vmatpush1.bf16.xpose.msra.mxu0 0
    %1784 = vmatprep.subr.bf16.mxu0 0
    %1785 = vmatpush1.bf16.xpose.msra.mxu0 0
    %1786 = vmatprep.subr.bf16.mxu0 0
    %1787 = vmatpush1.bf16.xpose.msra.mxu0 0
    %1788 = vmatprep.subr.bf16.mxu0 0
    %1789 = vmatpush1.bf16.xpose.msra.mxu0 0
    %1790 = vmatprep.subr.bf16.mxu0 0
    %1791 = vmatpush1.bf16.xpose.msra.mxu0 0
    %1792 = vmatprep.subr.bf16.mxu0 0
    %1793 = vmatpush1.bf16.xpose.msra.mxu0 %v1776
    %1794 = vmatprep.subr.bf16.mxu0 0
    %1795 = vmatpush2.bf16.xpose.msra.mxu0 0
    %1796 = vmatprep.subr.bf16.mxu0 0
    %1797 = vmatpush2.bf16.xpose.msra.mxu0 0
    %1798 = vmatprep.subr.bf16.mxu0 0
    %1799 = vmatpush2.bf16.xpose.msra.mxu0 0
    %1800 = vmatprep.subr.bf16.mxu0 0
    %1801 = vmatpush2.bf16.xpose.msra.mxu0 0
    %1802 = vmatprep.subr.bf16.mxu0 0
    %1803 = vmatpush2.bf16.xpose.msra.mxu0 0
    %1804 = vmatprep.subr.bf16.mxu0 0
    %1805 = vmatpush2.bf16.xpose.msra.mxu0 0
    %1806 = vmatprep.subr.bf16.mxu0 0
    %1807 = vmatpush2.bf16.xpose.msra.mxu0 0
    %1808 = vmatprep.subr.bf16.mxu0 0
    %1809 = vmatpush2.bf16.xpose.msra.mxu0 0
    %1810 = vmatprep.mubr.bf16.mxu0 0
    %1811 = vmatmul.mubr.bf16.gmra.mxu0 %v1773
    %v1812 = vpop.f32.mrf.mxu0
    %v1813 = vadd.f32 0.0, %v1812
    %v1814 = vpop.f32.mrf.mxu0
    %v1815 = vpop.f32.mrf.mxu0
    %v1816 = vpop.f32.mrf.mxu0
    %1817 = vdwg.mxu0
    %v1818 = vmul.f32 %v1669, 0.35355338
    %v1819 = vmul.f32 %v1717, 0.35355338
    %v1820 = vmul.f32 %v1765, 0.35355338
    %v1821 = vmul.f32 %v1813, 0.35355338
    %v1822 = vadd.f32 %v1818, %v488
    %v1823 = vadd.f32 %v1819, %v488
    %v1824 = vadd.f32 %v1820, %v488
    %v1825 = vadd.f32 %v1821, %v488
    %v1826 = vsel %vm289, %v1822, -inf
    %1827 = vmax.xlane.f32.xlu0 %v1826
    %v1828 = vpop.xlane.xlu0 %1827
    %v1829 = vsel %vm289, %v1823, -inf
    %1830 = vmax.xlane.f32.xlu0 %v1829
    %v1831 = vpop.xlane.xlu0 %1830
    %v1832 = vsel %vm289, %v1824, -inf
    %1833 = vmax.xlane.f32.xlu0 %v1832
    %v1834 = vpop.xlane.xlu0 %1833
    %v1835 = vsel %vm289, %v1825, -inf
    %1836 = vmax.xlane.f32.xlu0 %v1835
    %v1837 = vpop.xlane.xlu0 %1836
    %v1838 = vsub.f32 %v1822, %v1828
    %v1839 = vsub.f32 %v1823, %v1831
    %v1840 = vsub.f32 %v1824, %v1834
    %v1841 = vsub.f32 %v1825, %v1837
    %v1842 = vmul.f32 %v1838, 1.442695
    %v1843 = vpow.pop %v1842
    %v1844 = vmul.f32 %v1839, 1.442695
    %v1845 = vpow.pop %v1844
    %v1846 = vmul.f32 %v1840, 1.442695
    %v1847 = vpow.pop %v1846
    %v1848 = vmul.f32 %v1841, 1.442695
    %v1849 = vpow.pop %v1848
    %v1850 = vsel %vm289, %v1843, 0.0
    %1851 = vadd.xlane.f32.xlu0 %v1850
    %v1852 = vpop.xlane.xlu0 %1851
    %v1853 = vsel %vm289, %v1845, 0.0
    %1854 = vadd.xlane.f32.xlu0 %v1853
    %v1855 = vpop.xlane.xlu0 %1854
    %v1856 = vsel %vm289, %v1847, 0.0
    %1857 = vadd.xlane.f32.xlu0 %v1856
    %v1858 = vpop.xlane.xlu0 %1857
    %v1859 = vsel %vm289, %v1849, 0.0
    %1860 = vadd.xlane.f32.xlu0 %v1859
    %v1861 = vpop.xlane.xlu0 %1860
    %v1862 = vrcp.pop %v1852
    %v1863 = vrcp.pop %v1855
    %v1864 = vrcp.pop %v1858
    %v1865 = vrcp.pop %v1861
    %v1866 = vmul.f32 %v1843, %v1862
    %v1867 = vmul.f32 %v1845, %v1863
    %v1868 = vmul.f32 %v1847, %v1864
    %v1869 = vmul.f32 %v1849, %v1865
    %v1870 = vpack.c.bf16 %v1866, %v1866
    %v1871 = vpack.c.bf16 %v1867, %v1867
    %v1872 = vpack.c.bf16 %v1868, %v1868
    %v1873 = vpack.c.bf16 %v1869, %v1869
    %1874 = vrot.lane.b32.xlu0 %v1618, 64
    %v1875 = vpop.permute.xlu0 %1874
    %v1877 = vsel %vm289, %v1870, 0
    %v1880 = vsel %vm547, %v1875, 0
    %1882 = vmatprep.subr.bf16.mxu0 0
    %1883 = vmatpush1.bf16.msra.mxu0 0
    %1884 = vmatprep.subr.bf16.mxu0 0
    %1885 = vmatpush1.bf16.msra.mxu0 0
    %1886 = vmatprep.subr.bf16.mxu0 0
    %1887 = vmatpush1.bf16.msra.mxu0 0
    %1888 = vmatprep.subr.bf16.mxu0 0
    %1889 = vmatpush1.bf16.msra.mxu0 0
    %1890 = vmatprep.subr.bf16.mxu0 0
    %1891 = vmatpush1.bf16.msra.mxu0 0
    %1892 = vmatprep.subr.bf16.mxu0 0
    %1893 = vmatpush1.bf16.msra.mxu0 0
    %1894 = vmatprep.subr.bf16.mxu0 0
    %1895 = vmatpush1.bf16.msra.mxu0 0
    %1896 = vmatprep.subr.bf16.mxu0 0
    %1897 = vmatpush1.bf16.msra.mxu0 %v1880
    %1898 = vmatprep.subr.bf16.mxu0 0
    %1899 = vmatpush2.bf16.msra.mxu0 0
    %1900 = vmatprep.subr.bf16.mxu0 0
    %1901 = vmatpush2.bf16.msra.mxu0 0
    %1902 = vmatprep.subr.bf16.mxu0 0
    %1903 = vmatpush2.bf16.msra.mxu0 0
    %1904 = vmatprep.subr.bf16.mxu0 0
    %1905 = vmatpush2.bf16.msra.mxu0 0
    %1906 = vmatprep.subr.bf16.mxu0 0
    %1907 = vmatpush2.bf16.msra.mxu0 0
    %1908 = vmatprep.subr.bf16.mxu0 0
    %1909 = vmatpush2.bf16.msra.mxu0 0
    %1910 = vmatprep.subr.bf16.mxu0 0
    %1911 = vmatpush2.bf16.msra.mxu0 0
    %1912 = vmatprep.subr.bf16.mxu0 0
    %1913 = vmatpush2.bf16.msra.mxu0 0
    %1914 = vmatprep.mubr.bf16.mxu0 0
    %1915 = vmatmul.mubr.bf16.gmra.mxu0 %v1877
    %v1916 = vpop.f32.mrf.mxu0
    %v1917 = vadd.f32 0.0, %v1916
    %v1918 = vpop.f32.mrf.mxu0
    %v1919 = vpop.f32.mrf.mxu0
    %v1920 = vpop.f32.mrf.mxu0
    %1921 = vdwg.mxu0
    %1922 = vrot.lane.b32.xlu0 %v1621, 64
    %v1923 = vpop.permute.xlu0 %1922
    %v1925 = vsel %vm289, %v1871, 0
    %v1928 = vsel %vm547, %v1923, 0
    %1930 = vmatprep.subr.bf16.mxu0 0
    %1931 = vmatpush1.bf16.msra.mxu0 0
    %1932 = vmatprep.subr.bf16.mxu0 0
    %1933 = vmatpush1.bf16.msra.mxu0 0
    %1934 = vmatprep.subr.bf16.mxu0 0
    %1935 = vmatpush1.bf16.msra.mxu0 0
    %1936 = vmatprep.subr.bf16.mxu0 0
    %1937 = vmatpush1.bf16.msra.mxu0 0
    %1938 = vmatprep.subr.bf16.mxu0 0
    %1939 = vmatpush1.bf16.msra.mxu0 0
    %1940 = vmatprep.subr.bf16.mxu0 0
    %1941 = vmatpush1.bf16.msra.mxu0 0
    %1942 = vmatprep.subr.bf16.mxu0 0
    %1943 = vmatpush1.bf16.msra.mxu0 0
    %1944 = vmatprep.subr.bf16.mxu0 0
    %1945 = vmatpush1.bf16.msra.mxu0 %v1928
    %1946 = vmatprep.subr.bf16.mxu0 0
    %1947 = vmatpush2.bf16.msra.mxu0 0
    %1948 = vmatprep.subr.bf16.mxu0 0
    %1949 = vmatpush2.bf16.msra.mxu0 0
    %1950 = vmatprep.subr.bf16.mxu0 0
    %1951 = vmatpush2.bf16.msra.mxu0 0
    %1952 = vmatprep.subr.bf16.mxu0 0
    %1953 = vmatpush2.bf16.msra.mxu0 0
    %1954 = vmatprep.subr.bf16.mxu0 0
    %1955 = vmatpush2.bf16.msra.mxu0 0
    %1956 = vmatprep.subr.bf16.mxu0 0
    %1957 = vmatpush2.bf16.msra.mxu0 0
    %1958 = vmatprep.subr.bf16.mxu0 0
    %1959 = vmatpush2.bf16.msra.mxu0 0
    %1960 = vmatprep.subr.bf16.mxu0 0
    %1961 = vmatpush2.bf16.msra.mxu0 0
    %1962 = vmatprep.mubr.bf16.mxu0 0
    %1963 = vmatmul.mubr.bf16.gmra.mxu0 %v1925
    %v1964 = vpop.f32.mrf.mxu0
    %v1965 = vadd.f32 0.0, %v1964
    %v1966 = vpop.f32.mrf.mxu0
    %v1967 = vpop.f32.mrf.mxu0
    %v1968 = vpop.f32.mrf.mxu0
    %1969 = vdwg.mxu0
    %1970 = vrot.lane.b32.xlu0 %v1623, 64
    %v1971 = vpop.permute.xlu0 %1970
    %v1973 = vsel %vm289, %v1872, 0
    %v1976 = vsel %vm547, %v1971, 0
    %1978 = vmatprep.subr.bf16.mxu0 0
    %1979 = vmatpush1.bf16.msra.mxu0 0
    %1980 = vmatprep.subr.bf16.mxu0 0
    %1981 = vmatpush1.bf16.msra.mxu0 0
    %1982 = vmatprep.subr.bf16.mxu0 0
    %1983 = vmatpush1.bf16.msra.mxu0 0
    %1984 = vmatprep.subr.bf16.mxu0 0
    %1985 = vmatpush1.bf16.msra.mxu0 0
    %1986 = vmatprep.subr.bf16.mxu0 0
    %1987 = vmatpush1.bf16.msra.mxu0 0
    %1988 = vmatprep.subr.bf16.mxu0 0
    %1989 = vmatpush1.bf16.msra.mxu0 0
    %1990 = vmatprep.subr.bf16.mxu0 0
    %1991 = vmatpush1.bf16.msra.mxu0 0
    %1992 = vmatprep.subr.bf16.mxu0 0
    %1993 = vmatpush1.bf16.msra.mxu0 %v1976
    %1994 = vmatprep.subr.bf16.mxu0 0
    %1995 = vmatpush2.bf16.msra.mxu0 0
    %1996 = vmatprep.subr.bf16.mxu0 0
    %1997 = vmatpush2.bf16.msra.mxu0 0
    %1998 = vmatprep.subr.bf16.mxu0 0
    %1999 = vmatpush2.bf16.msra.mxu0 0
    %2000 = vmatprep.subr.bf16.mxu0 0
    %2001 = vmatpush2.bf16.msra.mxu0 0
    %2002 = vmatprep.subr.bf16.mxu0 0
    %2003 = vmatpush2.bf16.msra.mxu0 0
    %2004 = vmatprep.subr.bf16.mxu0 0
    %2005 = vmatpush2.bf16.msra.mxu0 0
    %2006 = vmatprep.subr.bf16.mxu0 0
    %2007 = vmatpush2.bf16.msra.mxu0 0
    %2008 = vmatprep.subr.bf16.mxu0 0
    %2009 = vmatpush2.bf16.msra.mxu0 0
    %2010 = vmatprep.mubr.bf16.mxu0 0
    %2011 = vmatmul.mubr.bf16.gmra.mxu0 %v1973
    %v2012 = vpop.f32.mrf.mxu0
    %v2013 = vadd.f32 0.0, %v2012
    %v2014 = vpop.f32.mrf.mxu0
    %v2015 = vpop.f32.mrf.mxu0
    %v2016 = vpop.f32.mrf.mxu0
    %2017 = vdwg.mxu0
    %2018 = vrot.lane.b32.xlu0 %v1625, 64
    %v2019 = vpop.permute.xlu0 %2018
    %v2021 = vsel %vm289, %v1873, 0
    %v2024 = vsel %vm547, %v2019, 0
    %2026 = vmatprep.subr.bf16.mxu0 0
    %2027 = vmatpush1.bf16.msra.mxu0 0
    %2028 = vmatprep.subr.bf16.mxu0 0
    %2029 = vmatpush1.bf16.msra.mxu0 0
    %2030 = vmatprep.subr.bf16.mxu0 0
    %2031 = vmatpush1.bf16.msra.mxu0 0
    %2032 = vmatprep.subr.bf16.mxu0 0
    %2033 = vmatpush1.bf16.msra.mxu0 0
    %2034 = vmatprep.subr.bf16.mxu0 0
    %2035 = vmatpush1.bf16.msra.mxu0 0
    %2036 = vmatprep.subr.bf16.mxu0 0
    %2037 = vmatpush1.bf16.msra.mxu0 0
    %2038 = vmatprep.subr.bf16.mxu0 0
    %2039 = vmatpush1.bf16.msra.mxu0 0
    %2040 = vmatprep.subr.bf16.mxu0 0
    %2041 = vmatpush1.bf16.msra.mxu0 %v2024
    %2042 = vmatprep.subr.bf16.mxu0 0
    %2043 = vmatpush2.bf16.msra.mxu0 0
    %2044 = vmatprep.subr.bf16.mxu0 0
    %2045 = vmatpush2.bf16.msra.mxu0 0
    %2046 = vmatprep.subr.bf16.mxu0 0
    %2047 = vmatpush2.bf16.msra.mxu0 0
    %2048 = vmatprep.subr.bf16.mxu0 0
    %2049 = vmatpush2.bf16.msra.mxu0 0
    %2050 = vmatprep.subr.bf16.mxu0 0
    %2051 = vmatpush2.bf16.msra.mxu0 0
    %2052 = vmatprep.subr.bf16.mxu0 0
    %2053 = vmatpush2.bf16.msra.mxu0 0
    %2054 = vmatprep.subr.bf16.mxu0 0
    %2055 = vmatpush2.bf16.msra.mxu0 0
    %2056 = vmatprep.subr.bf16.mxu0 0
    %2057 = vmatpush2.bf16.msra.mxu0 0
    %2058 = vmatprep.mubr.bf16.mxu0 0
    %2059 = vmatmul.mubr.bf16.gmra.mxu0 %v2021
    %v2060 = vpop.f32.mrf.mxu0
    %v2061 = vadd.f32 0.0, %v2060
    %v2062 = vpop.f32.mrf.mxu0
    %v2063 = vpop.f32.mrf.mxu0
    %v2064 = vpop.f32.mrf.mxu0
    %2065 = vdwg.mxu0
    %2067 = vrot.lane.b32.xlu0 %v1965, 8
    %v2068 = vpop.permute.xlu0 %2067
    %2071 = vrot.lane.b32.xlu0 %v2013, 16
    %v2072 = vpop.permute.xlu0 %2071
    %2075 = vrot.lane.b32.xlu0 %v2061, 24
    %v2076 = vpop.permute.xlu0 %2075
    %v2078 = vsel %vm289, %v1917, %v2068
    %v2079 = vsel %vm748, %v2078, %v2072
    %v2080 = vsel %vm750, %v2079, %v2076
    %v2081 = vrot.slane %v1618, 4
    %2082 = vrot.lane.b32.xlu0 %v2081, 96
    %v2083 = vpop.permute.xlu0 %2082
    %v2085 = vsel %vm289, %v2081, 0
    %v2088 = vsel %vm289, %v2083, 0
    %2090 = vmatprep.subr.bf16.mxu0 0
    %2091 = vmatpush1.bf16.xpose.msra.mxu0 0
    %2092 = vmatprep.subr.bf16.mxu0 0
    %2093 = vmatpush1.bf16.xpose.msra.mxu0 0
    %2094 = vmatprep.subr.bf16.mxu0 0
    %2095 = vmatpush1.bf16.xpose.msra.mxu0 0
    %2096 = vmatprep.subr.bf16.mxu0 0
    %2097 = vmatpush1.bf16.xpose.msra.mxu0 0
    %2098 = vmatprep.subr.bf16.mxu0 0
    %2099 = vmatpush1.bf16.xpose.msra.mxu0 0
    %2100 = vmatprep.subr.bf16.mxu0 0
    %2101 = vmatpush1.bf16.xpose.msra.mxu0 0
    %2102 = vmatprep.subr.bf16.mxu0 0
    %2103 = vmatpush1.bf16.xpose.msra.mxu0 0
    %2104 = vmatprep.subr.bf16.mxu0 0
    %2105 = vmatpush1.bf16.xpose.msra.mxu0 %v2088
    %2106 = vmatprep.subr.bf16.mxu0 0
    %2107 = vmatpush2.bf16.xpose.msra.mxu0 0
    %2108 = vmatprep.subr.bf16.mxu0 0
    %2109 = vmatpush2.bf16.xpose.msra.mxu0 0
    %2110 = vmatprep.subr.bf16.mxu0 0
    %2111 = vmatpush2.bf16.xpose.msra.mxu0 0
    %2112 = vmatprep.subr.bf16.mxu0 0
    %2113 = vmatpush2.bf16.xpose.msra.mxu0 0
    %2114 = vmatprep.subr.bf16.mxu0 0
    %2115 = vmatpush2.bf16.xpose.msra.mxu0 0
    %2116 = vmatprep.subr.bf16.mxu0 0
    %2117 = vmatpush2.bf16.xpose.msra.mxu0 0
    %2118 = vmatprep.subr.bf16.mxu0 0
    %2119 = vmatpush2.bf16.xpose.msra.mxu0 0
    %2120 = vmatprep.subr.bf16.mxu0 0
    %2121 = vmatpush2.bf16.xpose.msra.mxu0 0
    %2122 = vmatprep.mubr.bf16.mxu0 0
    %2123 = vmatmul.mubr.bf16.gmra.mxu0 %v2085
    %v2124 = vpop.f32.mrf.mxu0
    %v2125 = vadd.f32 0.0, %v2124
    %v2126 = vpop.f32.mrf.mxu0
    %v2127 = vpop.f32.mrf.mxu0
    %v2128 = vpop.f32.mrf.mxu0
    %2129 = vdwg.mxu0
    %v2130 = vrot.slane %v1621, 4
    %2131 = vrot.lane.b32.xlu0 %v2130, 96
    %v2132 = vpop.permute.xlu0 %2131
    %v2134 = vsel %vm289, %v2130, 0
    %v2137 = vsel %vm289, %v2132, 0
    %2139 = vmatprep.subr.bf16.mxu0 0
    %2140 = vmatpush1.bf16.xpose.msra.mxu0 0
    %2141 = vmatprep.subr.bf16.mxu0 0
    %2142 = vmatpush1.bf16.xpose.msra.mxu0 0
    %2143 = vmatprep.subr.bf16.mxu0 0
    %2144 = vmatpush1.bf16.xpose.msra.mxu0 0
    %2145 = vmatprep.subr.bf16.mxu0 0
    %2146 = vmatpush1.bf16.xpose.msra.mxu0 0
    %2147 = vmatprep.subr.bf16.mxu0 0
    %2148 = vmatpush1.bf16.xpose.msra.mxu0 0
    %2149 = vmatprep.subr.bf16.mxu0 0
    %2150 = vmatpush1.bf16.xpose.msra.mxu0 0
    %2151 = vmatprep.subr.bf16.mxu0 0
    %2152 = vmatpush1.bf16.xpose.msra.mxu0 0
    %2153 = vmatprep.subr.bf16.mxu0 0
    %2154 = vmatpush1.bf16.xpose.msra.mxu0 %v2137
    %2155 = vmatprep.subr.bf16.mxu0 0
    %2156 = vmatpush2.bf16.xpose.msra.mxu0 0
    %2157 = vmatprep.subr.bf16.mxu0 0
    %2158 = vmatpush2.bf16.xpose.msra.mxu0 0
    %2159 = vmatprep.subr.bf16.mxu0 0
    %2160 = vmatpush2.bf16.xpose.msra.mxu0 0
    %2161 = vmatprep.subr.bf16.mxu0 0
    %2162 = vmatpush2.bf16.xpose.msra.mxu0 0
    %2163 = vmatprep.subr.bf16.mxu0 0
    %2164 = vmatpush2.bf16.xpose.msra.mxu0 0
    %2165 = vmatprep.subr.bf16.mxu0 0
    %2166 = vmatpush2.bf16.xpose.msra.mxu0 0
    %2167 = vmatprep.subr.bf16.mxu0 0
    %2168 = vmatpush2.bf16.xpose.msra.mxu0 0
    %2169 = vmatprep.subr.bf16.mxu0 0
    %2170 = vmatpush2.bf16.xpose.msra.mxu0 0
    %2171 = vmatprep.mubr.bf16.mxu0 0
    %2172 = vmatmul.mubr.bf16.gmra.mxu0 %v2134
    %v2173 = vpop.f32.mrf.mxu0
    %v2174 = vadd.f32 0.0, %v2173
    %v2175 = vpop.f32.mrf.mxu0
    %v2176 = vpop.f32.mrf.mxu0
    %v2177 = vpop.f32.mrf.mxu0
    %2178 = vdwg.mxu0
    %v2179 = vrot.slane %v1623, 4
    %2180 = vrot.lane.b32.xlu0 %v2179, 96
    %v2181 = vpop.permute.xlu0 %2180
    %v2183 = vsel %vm289, %v2179, 0
    %v2186 = vsel %vm289, %v2181, 0
    %2188 = vmatprep.subr.bf16.mxu0 0
    %2189 = vmatpush1.bf16.xpose.msra.mxu0 0
    %2190 = vmatprep.subr.bf16.mxu0 0
    %2191 = vmatpush1.bf16.xpose.msra.mxu0 0
    %2192 = vmatprep.subr.bf16.mxu0 0
    %2193 = vmatpush1.bf16.xpose.msra.mxu0 0
    %2194 = vmatprep.subr.bf16.mxu0 0
    %2195 = vmatpush1.bf16.xpose.msra.mxu0 0
    %2196 = vmatprep.subr.bf16.mxu0 0
    %2197 = vmatpush1.bf16.xpose.msra.mxu0 0
    %2198 = vmatprep.subr.bf16.mxu0 0
    %2199 = vmatpush1.bf16.xpose.msra.mxu0 0
    %2200 = vmatprep.subr.bf16.mxu0 0
    %2201 = vmatpush1.bf16.xpose.msra.mxu0 0
    %2202 = vmatprep.subr.bf16.mxu0 0
    %2203 = vmatpush1.bf16.xpose.msra.mxu0 %v2186
    %2204 = vmatprep.subr.bf16.mxu0 0
    %2205 = vmatpush2.bf16.xpose.msra.mxu0 0
    %2206 = vmatprep.subr.bf16.mxu0 0
    %2207 = vmatpush2.bf16.xpose.msra.mxu0 0
    %2208 = vmatprep.subr.bf16.mxu0 0
    %2209 = vmatpush2.bf16.xpose.msra.mxu0 0
    %2210 = vmatprep.subr.bf16.mxu0 0
    %2211 = vmatpush2.bf16.xpose.msra.mxu0 0
    %2212 = vmatprep.subr.bf16.mxu0 0
    %2213 = vmatpush2.bf16.xpose.msra.mxu0 0
    %2214 = vmatprep.subr.bf16.mxu0 0
    %2215 = vmatpush2.bf16.xpose.msra.mxu0 0
    %2216 = vmatprep.subr.bf16.mxu0 0
    %2217 = vmatpush2.bf16.xpose.msra.mxu0 0
    %2218 = vmatprep.subr.bf16.mxu0 0
    %2219 = vmatpush2.bf16.xpose.msra.mxu0 0
    %2220 = vmatprep.mubr.bf16.mxu0 0
    %2221 = vmatmul.mubr.bf16.gmra.mxu0 %v2183
    %v2222 = vpop.f32.mrf.mxu0
    %v2223 = vadd.f32 0.0, %v2222
    %v2224 = vpop.f32.mrf.mxu0
    %v2225 = vpop.f32.mrf.mxu0
    %v2226 = vpop.f32.mrf.mxu0
    %2227 = vdwg.mxu0
    %v2228 = vrot.slane %v1625, 4
    %2229 = vrot.lane.b32.xlu0 %v2228, 96
    %v2230 = vpop.permute.xlu0 %2229
    %v2232 = vsel %vm289, %v2228, 0
    %v2235 = vsel %vm289, %v2230, 0
    %2237 = vmatprep.subr.bf16.mxu0 0
    %2238 = vmatpush1.bf16.xpose.msra.mxu0 0
    %2239 = vmatprep.subr.bf16.mxu0 0
    %2240 = vmatpush1.bf16.xpose.msra.mxu0 0
    %2241 = vmatprep.subr.bf16.mxu0 0
    %2242 = vmatpush1.bf16.xpose.msra.mxu0 0
    %2243 = vmatprep.subr.bf16.mxu0 0
    %2244 = vmatpush1.bf16.xpose.msra.mxu0 0
    %2245 = vmatprep.subr.bf16.mxu0 0
    %2246 = vmatpush1.bf16.xpose.msra.mxu0 0
    %2247 = vmatprep.subr.bf16.mxu0 0
    %2248 = vmatpush1.bf16.xpose.msra.mxu0 0
    %2249 = vmatprep.subr.bf16.mxu0 0
    %2250 = vmatpush1.bf16.xpose.msra.mxu0 0
    %2251 = vmatprep.subr.bf16.mxu0 0
    %2252 = vmatpush1.bf16.xpose.msra.mxu0 %v2235
    %2253 = vmatprep.subr.bf16.mxu0 0
    %2254 = vmatpush2.bf16.xpose.msra.mxu0 0
    %2255 = vmatprep.subr.bf16.mxu0 0
    %2256 = vmatpush2.bf16.xpose.msra.mxu0 0
    %2257 = vmatprep.subr.bf16.mxu0 0
    %2258 = vmatpush2.bf16.xpose.msra.mxu0 0
    %2259 = vmatprep.subr.bf16.mxu0 0
    %2260 = vmatpush2.bf16.xpose.msra.mxu0 0
    %2261 = vmatprep.subr.bf16.mxu0 0
    %2262 = vmatpush2.bf16.xpose.msra.mxu0 0
    %2263 = vmatprep.subr.bf16.mxu0 0
    %2264 = vmatpush2.bf16.xpose.msra.mxu0 0
    %2265 = vmatprep.subr.bf16.mxu0 0
    %2266 = vmatpush2.bf16.xpose.msra.mxu0 0
    %2267 = vmatprep.subr.bf16.mxu0 0
    %2268 = vmatpush2.bf16.xpose.msra.mxu0 0
    %2269 = vmatprep.mubr.bf16.mxu0 0
    %2270 = vmatmul.mubr.bf16.gmra.mxu0 %v2232
    %v2271 = vpop.f32.mrf.mxu0
    %v2272 = vadd.f32 0.0, %v2271
    %v2273 = vpop.f32.mrf.mxu0
    %v2274 = vpop.f32.mrf.mxu0
    %v2275 = vpop.f32.mrf.mxu0
    %2276 = vdwg.mxu0
    %v2277 = vmul.f32 %v2125, 0.35355338
    %v2278 = vmul.f32 %v2174, 0.35355338
    %v2279 = vmul.f32 %v2223, 0.35355338
    %v2280 = vmul.f32 %v2272, 0.35355338
    %v2281 = vadd.f32 %v2277, %v956
    %v2282 = vadd.f32 %v2278, %v956
    %v2283 = vadd.f32 %v2279, %v956
    %v2284 = vadd.f32 %v2280, %v956
    %v2285 = vsel %vm289, %v2281, -inf
    %2286 = vmax.xlane.f32.xlu0 %v2285
    %v2287 = vpop.xlane.xlu0 %2286
    %v2288 = vsel %vm289, %v2282, -inf
    %2289 = vmax.xlane.f32.xlu0 %v2288
    %v2290 = vpop.xlane.xlu0 %2289
    %v2291 = vsel %vm289, %v2283, -inf
    %2292 = vmax.xlane.f32.xlu0 %v2291
    %v2293 = vpop.xlane.xlu0 %2292
    %v2294 = vsel %vm289, %v2284, -inf
    %2295 = vmax.xlane.f32.xlu0 %v2294
    %v2296 = vpop.xlane.xlu0 %2295
    %v2297 = vsub.f32 %v2281, %v2287
    %v2298 = vsub.f32 %v2282, %v2290
    %v2299 = vsub.f32 %v2283, %v2293
    %v2300 = vsub.f32 %v2284, %v2296
    %v2301 = vmul.f32 %v2297, 1.442695
    %v2302 = vpow.pop %v2301
    %v2303 = vmul.f32 %v2298, 1.442695
    %v2304 = vpow.pop %v2303
    %v2305 = vmul.f32 %v2299, 1.442695
    %v2306 = vpow.pop %v2305
    %v2307 = vmul.f32 %v2300, 1.442695
    %v2308 = vpow.pop %v2307
    %v2309 = vsel %vm289, %v2302, 0.0
    %2310 = vadd.xlane.f32.xlu0 %v2309
    %v2311 = vpop.xlane.xlu0 %2310
    %v2312 = vsel %vm289, %v2304, 0.0
    %2313 = vadd.xlane.f32.xlu0 %v2312
    %v2314 = vpop.xlane.xlu0 %2313
    %v2315 = vsel %vm289, %v2306, 0.0
    %2316 = vadd.xlane.f32.xlu0 %v2315
    %v2317 = vpop.xlane.xlu0 %2316
    %v2318 = vsel %vm289, %v2308, 0.0
    %2319 = vadd.xlane.f32.xlu0 %v2318
    %v2320 = vpop.xlane.xlu0 %2319
    %v2321 = vrcp.pop %v2311
    %v2322 = vrcp.pop %v2314
    %v2323 = vrcp.pop %v2317
    %v2324 = vrcp.pop %v2320
    %v2325 = vmul.f32 %v2302, %v2321
    %v2326 = vmul.f32 %v2304, %v2322
    %v2327 = vmul.f32 %v2306, %v2323
    %v2328 = vmul.f32 %v2308, %v2324
    %v2329 = vpack.c.bf16 %v2325, %v2325
    %v2330 = vpack.c.bf16 %v2326, %v2326
    %v2331 = vpack.c.bf16 %v2327, %v2327
    %v2332 = vpack.c.bf16 %v2328, %v2328
    %2333 = vrot.lane.b32.xlu0 %v2081, 64
    %v2334 = vpop.permute.xlu0 %2333
    %v2336 = vsel %vm289, %v2329, 0
    %v2339 = vsel %vm547, %v2334, 0
    %2341 = vmatprep.subr.bf16.mxu0 0
    %2342 = vmatpush1.bf16.msra.mxu0 0
    %2343 = vmatprep.subr.bf16.mxu0 0
    %2344 = vmatpush1.bf16.msra.mxu0 0
    %2345 = vmatprep.subr.bf16.mxu0 0
    %2346 = vmatpush1.bf16.msra.mxu0 0
    %2347 = vmatprep.subr.bf16.mxu0 0
    %2348 = vmatpush1.bf16.msra.mxu0 0
    %2349 = vmatprep.subr.bf16.mxu0 0
    %2350 = vmatpush1.bf16.msra.mxu0 0
    %2351 = vmatprep.subr.bf16.mxu0 0
    %2352 = vmatpush1.bf16.msra.mxu0 0
    %2353 = vmatprep.subr.bf16.mxu0 0
    %2354 = vmatpush1.bf16.msra.mxu0 0
    %2355 = vmatprep.subr.bf16.mxu0 0
    %2356 = vmatpush1.bf16.msra.mxu0 %v2339
    %2357 = vmatprep.subr.bf16.mxu0 0
    %2358 = vmatpush2.bf16.msra.mxu0 0
    %2359 = vmatprep.subr.bf16.mxu0 0
    %2360 = vmatpush2.bf16.msra.mxu0 0
    %2361 = vmatprep.subr.bf16.mxu0 0
    %2362 = vmatpush2.bf16.msra.mxu0 0
    %2363 = vmatprep.subr.bf16.mxu0 0
    %2364 = vmatpush2.bf16.msra.mxu0 0
    %2365 = vmatprep.subr.bf16.mxu0 0
    %2366 = vmatpush2.bf16.msra.mxu0 0
    %2367 = vmatprep.subr.bf16.mxu0 0
    %2368 = vmatpush2.bf16.msra.mxu0 0
    %2369 = vmatprep.subr.bf16.mxu0 0
    %2370 = vmatpush2.bf16.msra.mxu0 0
    %2371 = vmatprep.subr.bf16.mxu0 0
    %2372 = vmatpush2.bf16.msra.mxu0 0
    %2373 = vmatprep.mubr.bf16.mxu0 0
    %2374 = vmatmul.mubr.bf16.gmra.mxu0 %v2336
    %v2375 = vpop.f32.mrf.mxu0
    %v2376 = vadd.f32 0.0, %v2375
    %v2377 = vpop.f32.mrf.mxu0
    %v2378 = vpop.f32.mrf.mxu0
    %v2379 = vpop.f32.mrf.mxu0
    %2380 = vdwg.mxu0
    %2381 = vrot.lane.b32.xlu0 %v2130, 64
    %v2382 = vpop.permute.xlu0 %2381
    %v2384 = vsel %vm289, %v2330, 0
    %v2387 = vsel %vm547, %v2382, 0
    %2389 = vmatprep.subr.bf16.mxu0 0
    %2390 = vmatpush1.bf16.msra.mxu0 0
    %2391 = vmatprep.subr.bf16.mxu0 0
    %2392 = vmatpush1.bf16.msra.mxu0 0
    %2393 = vmatprep.subr.bf16.mxu0 0
    %2394 = vmatpush1.bf16.msra.mxu0 0
    %2395 = vmatprep.subr.bf16.mxu0 0
    %2396 = vmatpush1.bf16.msra.mxu0 0
    %2397 = vmatprep.subr.bf16.mxu0 0
    %2398 = vmatpush1.bf16.msra.mxu0 0
    %2399 = vmatprep.subr.bf16.mxu0 0
    %2400 = vmatpush1.bf16.msra.mxu0 0
    %2401 = vmatprep.subr.bf16.mxu0 0
    %2402 = vmatpush1.bf16.msra.mxu0 0
    %2403 = vmatprep.subr.bf16.mxu0 0
    %2404 = vmatpush1.bf16.msra.mxu0 %v2387
    %2405 = vmatprep.subr.bf16.mxu0 0
    %2406 = vmatpush2.bf16.msra.mxu0 0
    %2407 = vmatprep.subr.bf16.mxu0 0
    %2408 = vmatpush2.bf16.msra.mxu0 0
    %2409 = vmatprep.subr.bf16.mxu0 0
    %2410 = vmatpush2.bf16.msra.mxu0 0
    %2411 = vmatprep.subr.bf16.mxu0 0
    %2412 = vmatpush2.bf16.msra.mxu0 0
    %2413 = vmatprep.subr.bf16.mxu0 0
    %2414 = vmatpush2.bf16.msra.mxu0 0
    %2415 = vmatprep.subr.bf16.mxu0 0
    %2416 = vmatpush2.bf16.msra.mxu0 0
    %2417 = vmatprep.subr.bf16.mxu0 0
    %2418 = vmatpush2.bf16.msra.mxu0 0
    %2419 = vmatprep.subr.bf16.mxu0 0
    %2420 = vmatpush2.bf16.msra.mxu0 0
    %2421 = vmatprep.mubr.bf16.mxu0 0
    %2422 = vmatmul.mubr.bf16.gmra.mxu0 %v2384
    %v2423 = vpop.f32.mrf.mxu0
    %v2424 = vadd.f32 0.0, %v2423
    %v2425 = vpop.f32.mrf.mxu0
    %v2426 = vpop.f32.mrf.mxu0
    %v2427 = vpop.f32.mrf.mxu0
    %2428 = vdwg.mxu0
    %2429 = vrot.lane.b32.xlu0 %v2179, 64
    %v2430 = vpop.permute.xlu0 %2429
    %v2432 = vsel %vm289, %v2331, 0
    %v2435 = vsel %vm547, %v2430, 0
    %2437 = vmatprep.subr.bf16.mxu0 0
    %2438 = vmatpush1.bf16.msra.mxu0 0
    %2439 = vmatprep.subr.bf16.mxu0 0
    %2440 = vmatpush1.bf16.msra.mxu0 0
    %2441 = vmatprep.subr.bf16.mxu0 0
    %2442 = vmatpush1.bf16.msra.mxu0 0
    %2443 = vmatprep.subr.bf16.mxu0 0
    %2444 = vmatpush1.bf16.msra.mxu0 0
    %2445 = vmatprep.subr.bf16.mxu0 0
    %2446 = vmatpush1.bf16.msra.mxu0 0
    %2447 = vmatprep.subr.bf16.mxu0 0
    %2448 = vmatpush1.bf16.msra.mxu0 0
    %2449 = vmatprep.subr.bf16.mxu0 0
    %2450 = vmatpush1.bf16.msra.mxu0 0
    %2451 = vmatprep.subr.bf16.mxu0 0
    %2452 = vmatpush1.bf16.msra.mxu0 %v2435
    %2453 = vmatprep.subr.bf16.mxu0 0
    %2454 = vmatpush2.bf16.msra.mxu0 0
    %2455 = vmatprep.subr.bf16.mxu0 0
    %2456 = vmatpush2.bf16.msra.mxu0 0
    %2457 = vmatprep.subr.bf16.mxu0 0
    %2458 = vmatpush2.bf16.msra.mxu0 0
    %2459 = vmatprep.subr.bf16.mxu0 0
    %2460 = vmatpush2.bf16.msra.mxu0 0
    %2461 = vmatprep.subr.bf16.mxu0 0
    %2462 = vmatpush2.bf16.msra.mxu0 0
    %2463 = vmatprep.subr.bf16.mxu0 0
    %2464 = vmatpush2.bf16.msra.mxu0 0
    %2465 = vmatprep.subr.bf16.mxu0 0
    %2466 = vmatpush2.bf16.msra.mxu0 0
    %2467 = vmatprep.subr.bf16.mxu0 0
    %2468 = vmatpush2.bf16.msra.mxu0 0
    %2469 = vmatprep.mubr.bf16.mxu0 0
    %2470 = vmatmul.mubr.bf16.gmra.mxu0 %v2432
    %v2471 = vpop.f32.mrf.mxu0
    %v2472 = vadd.f32 0.0, %v2471
    %v2473 = vpop.f32.mrf.mxu0
    %v2474 = vpop.f32.mrf.mxu0
    %v2475 = vpop.f32.mrf.mxu0
    %2476 = vdwg.mxu0
    %2477 = vrot.lane.b32.xlu0 %v2228, 64
    %v2478 = vpop.permute.xlu0 %2477
    %v2480 = vsel %vm289, %v2332, 0
    %v2483 = vsel %vm547, %v2478, 0
    %2485 = vmatprep.subr.bf16.mxu0 0
    %2486 = vmatpush1.bf16.msra.mxu0 0
    %2487 = vmatprep.subr.bf16.mxu0 0
    %2488 = vmatpush1.bf16.msra.mxu0 0
    %2489 = vmatprep.subr.bf16.mxu0 0
    %2490 = vmatpush1.bf16.msra.mxu0 0
    %2491 = vmatprep.subr.bf16.mxu0 0
    %2492 = vmatpush1.bf16.msra.mxu0 0
    %2493 = vmatprep.subr.bf16.mxu0 0
    %2494 = vmatpush1.bf16.msra.mxu0 0
    %2495 = vmatprep.subr.bf16.mxu0 0
    %2496 = vmatpush1.bf16.msra.mxu0 0
    %2497 = vmatprep.subr.bf16.mxu0 0
    %2498 = vmatpush1.bf16.msra.mxu0 0
    %2499 = vmatprep.subr.bf16.mxu0 0
    %2500 = vmatpush1.bf16.msra.mxu0 %v2483
    %2501 = vmatprep.subr.bf16.mxu0 0
    %2502 = vmatpush2.bf16.msra.mxu0 0
    %2503 = vmatprep.subr.bf16.mxu0 0
    %2504 = vmatpush2.bf16.msra.mxu0 0
    %2505 = vmatprep.subr.bf16.mxu0 0
    %2506 = vmatpush2.bf16.msra.mxu0 0
    %2507 = vmatprep.subr.bf16.mxu0 0
    %2508 = vmatpush2.bf16.msra.mxu0 0
    %2509 = vmatprep.subr.bf16.mxu0 0
    %2510 = vmatpush2.bf16.msra.mxu0 0
    %2511 = vmatprep.subr.bf16.mxu0 0
    %2512 = vmatpush2.bf16.msra.mxu0 0
    %2513 = vmatprep.subr.bf16.mxu0 0
    %2514 = vmatpush2.bf16.msra.mxu0 0
    %2515 = vmatprep.subr.bf16.mxu0 0
    %2516 = vmatpush2.bf16.msra.mxu0 0
    %2517 = vmatprep.mubr.bf16.mxu0 0
    %2518 = vmatmul.mubr.bf16.gmra.mxu0 %v2480
    %v2519 = vpop.f32.mrf.mxu0
    %v2520 = vadd.f32 0.0, %v2519
    %v2521 = vpop.f32.mrf.mxu0
    %v2522 = vpop.f32.mrf.mxu0
    %v2523 = vpop.f32.mrf.mxu0
    %2524 = vdwg.mxu0
    %2526 = vrot.lane.b32.xlu0 %v2424, 8
    %v2527 = vpop.permute.xlu0 %2526
    %2530 = vrot.lane.b32.xlu0 %v2472, 16
    %v2531 = vpop.permute.xlu0 %2530
    %2534 = vrot.lane.b32.xlu0 %v2520, 24
    %v2535 = vpop.permute.xlu0 %2534
    %v2537 = vsel %vm289, %v2376, %v2527
    %v2538 = vsel %vm748, %v2537, %v2531
    %v2539 = vsel %vm750, %v2538, %v2535
    %s2540 = scalar_lea.vmem %s6, 16
    %v2541 = vld [vmem:[%s2540] sm:$0xf]
    %v2542 = vld [vmem:[%s2540 + $0x4] sm:$0xf]
    %v2543 = vld [vmem:[%s2540 + $0x8] sm:$0xf]
    %v2544 = vld [vmem:[%s2540 + $0xc] sm:$0xf]
    %v2545 = vpack.c.bf16 %v2539, %v2080
    %s2546 = scalar_lea.vmem [#allocation12], 1
    %v2547 = vld [vmem:[%s2546] sm:$0x1]
    %v2549 = vlaneseq
    %v2550 = vshrl.u32 %v2549, 7
    %v2551 = vsub.s32 0, %v2550
    %v2552 = vrot.slane %v2547, %v2551
    %v2558 = vunpack.c.l.b16 %v2541
    %v2559 = vunpack.c.l.b16 %v2542
    %v2560 = vunpack.c.l.b16 %v2543
    %v2561 = vunpack.c.l.b16 %v2544
    %v2562 = vpack.c.b16 %v2559, %v2558
    %v2563 = vpack.c.b16 %v2561, %v2560
    %v2567 = vsel %vm167, %v2545, 0
    %2569 = vmatprep.subr.bf16.mxu0 0
    %2570 = vmatpush1.bf16.msra.mxu0 0
    %2571 = vmatprep.subr.bf16.mxu0 0
    %2572 = vmatpush1.bf16.msra.mxu0 0
    %2573 = vmatprep.subr.bf16.mxu0 0
    %2574 = vmatpush1.bf16.msra.mxu0 0
    %2575 = vmatprep.subr.bf16.mxu0 0
    %2576 = vmatpush1.bf16.msra.mxu0 0
    %2577 = vmatprep.subr.bf16.mxu0 0
    %2578 = vmatpush1.bf16.msra.mxu0 0
    %2579 = vmatprep.subr.bf16.mxu0 0
    %2580 = vmatpush1.bf16.msra.mxu0 0
    %2581 = vmatprep.subr.bf16.mxu0 0
    %2582 = vmatpush1.bf16.msra.mxu0 %v2563
    %2583 = vmatprep.subr.bf16.mxu0 0
    %2584 = vmatpush1.bf16.msra.mxu0 %v2562
    %2585 = vmatprep.subr.bf16.mxu0 0
    %2586 = vmatpush2.bf16.msra.mxu0 0
    %2587 = vmatprep.subr.bf16.mxu0 0
    %2588 = vmatpush2.bf16.msra.mxu0 0
    %2589 = vmatprep.subr.bf16.mxu0 0
    %2590 = vmatpush2.bf16.msra.mxu0 0
    %2591 = vmatprep.subr.bf16.mxu0 0
    %2592 = vmatpush2.bf16.msra.mxu0 0
    %2593 = vmatprep.subr.bf16.mxu0 0
    %2594 = vmatpush2.bf16.msra.mxu0 0
    %2595 = vmatprep.subr.bf16.mxu0 0
    %2596 = vmatpush2.bf16.msra.mxu0 0
    %2597 = vmatprep.subr.bf16.mxu0 0
    %2598 = vmatpush2.bf16.msra.mxu0 0
    %2599 = vmatprep.subr.bf16.mxu0 0
    %2600 = vmatpush2.bf16.msra.mxu0 0
    %2601 = vmatprep.mubr.bf16.mxu0 0
    %2602 = vmatmul.mubr.bf16.gmra.mxu0 %v2567
    %v2603 = vpop.f32.mrf.mxu0
    %v2604 = vadd.f32 %v2552, %v2603
    %v2605 = vpop.f32.mrf.mxu0
    %v2606 = vpop.f32.mrf.mxu0
    %v2607 = vadd.f32 %v2552, %v2606
    %v2608 = vpop.f32.mrf.mxu0
    %2609 = vdwg.mxu0
    %v2610 = vadd.f32 %v1546, %v2604
    %v2611 = vadd.f32 %v1547, %v2607
    %s2612 = scalar_lea.vmem [#allocation14], 1
    %v2613 = vld [vmem:[%s2612] sm:$0x1]
    %s2614 = scalar_lea.vmem %s9, 1
    %v2615 = vld [vmem:[%s2614] sm:$0x1]
    %v2616 = vsel %vm167, %v2610, 0.0
    %2617 = vadd.xlane.f32.xlu0 %v2616
    %v2618 = vpop.xlane.xlu0 %2617
    %v2619 = vsel %vm167, %v2611, 0.0
    %2620 = vadd.xlane.f32.xlu0 %v2619
    %v2621 = vpop.xlane.xlu0 %2620
    %v2622 = vmul.f32 %v2618, %v174
    %v2623 = vmul.f32 %v2621, %v174
    %v2624 = vsub.f32 %v2610, %v2622
    %v2625 = vsub.f32 %v2611, %v2623
    %v2626 = vmul.f32 %v2624, %v2624
    %v2627 = vmul.f32 %v2625, %v2625
    %v2628 = vsel %vm167, %v2626, 0.0
    %2629 = vadd.xlane.f32.xlu0 %v2628
    %v2630 = vpop.xlane.xlu0 %2629
    %v2631 = vsel %vm167, %v2627, 0.0
    %2632 = vadd.xlane.f32.xlu0 %v2631
    %v2633 = vpop.xlane.xlu0 %2632
    %v2634 = vmul.f32 %v2630, %v174
    %v2635 = vmul.f32 %v2633, %v174
    %v2636 = vadd.f32 %v2634, 1e-12
    %v2637 = vadd.f32 %v2635, 1e-12
    %v2638 = vrsqrt.pop %v2636
    %v2639 = vrsqrt.pop %v2637
    %v2640 = vmul.f32 %v2624, %v2638
    %v2641 = vmul.f32 %v2625, %v2639
    %v2643 = vlaneseq
    %v2644 = vshrl.u32 %v2643, 7
    %v2645 = vsub.s32 0, %v2644
    %v2646 = vrot.slane %v2613, %v2645
    %v2648 = vmul.f32 %v2640, %v2646
    %v2649 = vmul.f32 %v2641, %v2646
    %v2651 = vlaneseq
    %v2652 = vshrl.u32 %v2651, 7
    %v2653 = vsub.s32 0, %v2652
    %v2654 = vrot.slane %v2615, %v2653
    %v2656 = vadd.f32 %v2648, %v2654
    %v2657 = vadd.f32 %v2649, %v2654
    %s2658 = scalar_lea.vmem %s10, 16
    %v2659 = vld [vmem:[%s2658] sm:$0xf]
    %v2660 = vld [vmem:[%s2658 + $0x4] sm:$0xf]
    %v2661 = vld [vmem:[%s2658 + $0x8] sm:$0xf]
    %v2662 = vld [vmem:[%s2658 + $0xc] sm:$0xf]
    %v2663 = vpack.c.bf16 %v2657, %v2656
    %s2664 = scalar_lea.vmem %s11, 1
    %v2665 = vld [vmem:[%s2664] sm:$0x1]
    %v2667 = vlaneseq
    %v2668 = vshrl.u32 %v2667, 7
    %v2669 = vsub.s32 0, %v2668
    %v2670 = vrot.slane %v2665, %v2669
    %v2676 = vunpack.c.l.b16 %v2659
    %v2677 = vunpack.c.l.b16 %v2660
    %v2678 = vunpack.c.l.b16 %v2661
    %v2679 = vunpack.c.l.b16 %v2662
    %v2680 = vpack.c.b16 %v2677, %v2676
    %v2681 = vpack.c.b16 %v2679, %v2678
    %v2685 = vsel %vm167, %v2663, 0
    %2687 = vmatprep.subr.bf16.mxu0 0
    %2688 = vmatpush1.bf16.msra.mxu0 0
    %2689 = vmatprep.subr.bf16.mxu0 0
    %2690 = vmatpush1.bf16.msra.mxu0 0
    %2691 = vmatprep.subr.bf16.mxu0 0
    %2692 = vmatpush1.bf16.msra.mxu0 0
    %2693 = vmatprep.subr.bf16.mxu0 0
    %2694 = vmatpush1.bf16.msra.mxu0 0
    %2695 = vmatprep.subr.bf16.mxu0 0
    %2696 = vmatpush1.bf16.msra.mxu0 0
    %2697 = vmatprep.subr.bf16.mxu0 0
    %2698 = vmatpush1.bf16.msra.mxu0 0
    %2699 = vmatprep.subr.bf16.mxu0 0
    %2700 = vmatpush1.bf16.msra.mxu0 %v2681
    %2701 = vmatprep.subr.bf16.mxu0 0
    %2702 = vmatpush1.bf16.msra.mxu0 %v2680
    %2703 = vmatprep.subr.bf16.mxu0 0
    %2704 = vmatpush2.bf16.msra.mxu0 0
    %2705 = vmatprep.subr.bf16.mxu0 0
    %2706 = vmatpush2.bf16.msra.mxu0 0
    %2707 = vmatprep.subr.bf16.mxu0 0
    %2708 = vmatpush2.bf16.msra.mxu0 0
    %2709 = vmatprep.subr.bf16.mxu0 0
    %2710 = vmatpush2.bf16.msra.mxu0 0
    %2711 = vmatprep.subr.bf16.mxu0 0
    %2712 = vmatpush2.bf16.msra.mxu0 0
    %2713 = vmatprep.subr.bf16.mxu0 0
    %2714 = vmatpush2.bf16.msra.mxu0 0
    %2715 = vmatprep.subr.bf16.mxu0 0
    %2716 = vmatpush2.bf16.msra.mxu0 0
    %2717 = vmatprep.subr.bf16.mxu0 0
    %2718 = vmatpush2.bf16.msra.mxu0 0
    %2719 = vmatprep.mubr.bf16.mxu0 0
    %2720 = vmatmul.mubr.bf16.gmra.mxu0 %v2685
    %v2721 = vpop.f32.mrf.mxu0
    %v2722 = vadd.f32 %v2670, %v2721
    %v2723 = vpop.f32.mrf.mxu0
    %v2724 = vpop.f32.mrf.mxu0
    %v2725 = vadd.f32 %v2670, %v2724
    %v2726 = vpop.f32.mrf.mxu0
    %2727 = vdwg.mxu0
    %v2728 = vmul.f32 %v2722, %v2722
    %v2729 = vmul.f32 %v2725, %v2725
    %v2730 = vmul.f32 %v2722, %v2728
    %v2731 = vmul.f32 %v2725, %v2729
    %v2732 = vmul.f32 %v2730, 0.044715
    %v2733 = vmul.f32 %v2731, 0.044715
    %v2734 = vadd.f32 %v2722, %v2732
    %v2735 = vadd.f32 %v2725, %v2733
    %v2736 = vmul.f32 %v2734, 0.7978846
    %v2737 = vmul.f32 %v2735, 0.7978846
    %v2738 = vtanh.pop %v2736
    %v2739 = vtanh.pop %v2737
    %v2740 = vadd.f32 %v2738, 1.0
    %v2741 = vadd.f32 %v2739, 1.0
    %v2742 = vmul.f32 %v2740, 0.5
    %v2743 = vmul.f32 %v2741, 0.5
    %v2744 = vmul.f32 %v2722, %v2742
    %v2745 = vmul.f32 %v2725, %v2743
    %s2746 = scalar_lea.vmem %s12, 32
    %v2747 = vld [vmem:[%s2746] sm:$0xf]
    %v2748 = vld [vmem:[%s2746 + $0x4] sm:$0xf]
    %v2749 = vld [vmem:[%s2746 + $0x8] sm:$0xf]
    %v2750 = vld [vmem:[%s2746 + $0xc] sm:$0xf]
    %v2751 = vld [vmem:[%s2746 + $0x10] sm:$0xf]
    %v2752 = vld [vmem:[%s2746 + $0x14] sm:$0xf]
    %v2753 = vld [vmem:[%s2746 + $0x18] sm:$0xf]
    %v2754 = vld [vmem:[%s2746 + $0x1c] sm:$0xf]
    %v2755 = vpack.c.bf16 %v2745, %v2744
    %s2756 = scalar_lea.vmem %s13, 1
    %v2757 = vld [vmem:[%s2756] sm:$0x1]
    %v2759 = vlaneseq
    %v2760 = vshrl.u32 %v2759, 7
    %v2761 = vsub.s32 0, %v2760
    %v2762 = vrot.slane %v2757, %v2761
    %v2772 = vunpack.c.l.b16 %v2747
    %v2773 = vunpack.c.l.b16 %v2748
    %v2774 = vunpack.c.l.b16 %v2749
    %v2775 = vunpack.c.l.b16 %v2750
    %v2776 = vunpack.c.l.b16 %v2751
    %v2777 = vunpack.c.l.b16 %v2752
    %v2778 = vunpack.c.l.b16 %v2753
    %v2779 = vunpack.c.l.b16 %v2754
    %v2780 = vpack.c.b16 %v2773, %v2772
    %v2781 = vpack.c.b16 %v2775, %v2774
    %v2782 = vpack.c.b16 %v2777, %v2776
    %v2783 = vpack.c.b16 %v2779, %v2778
    %v2789 = vsel %vm1457, %v2755, 0
    %2791 = vmatprep.subr.bf16.mxu0 0
    %2792 = vmatpush1.bf16.msra.mxu0 0
    %2793 = vmatprep.subr.bf16.mxu0 0
    %2794 = vmatpush1.bf16.msra.mxu0 0
    %2795 = vmatprep.subr.bf16.mxu0 0
    %2796 = vmatpush1.bf16.msra.mxu0 0
    %2797 = vmatprep.subr.bf16.mxu0 0
    %2798 = vmatpush1.bf16.msra.mxu0 0
    %2799 = vmatprep.subr.bf16.mxu0 0
    %2800 = vmatpush1.bf16.msra.mxu0 %v2783
    %2801 = vmatprep.subr.bf16.mxu0 0
    %2802 = vmatpush1.bf16.msra.mxu0 %v2782
    %2803 = vmatprep.subr.bf16.mxu0 0
    %2804 = vmatpush1.bf16.msra.mxu0 %v2781
    %2805 = vmatprep.subr.bf16.mxu0 0
    %2806 = vmatpush1.bf16.msra.mxu0 %v2780
    %2807 = vmatprep.subr.bf16.mxu0 0
    %2808 = vmatpush2.bf16.msra.mxu0 0
    %2809 = vmatprep.subr.bf16.mxu0 0
    %2810 = vmatpush2.bf16.msra.mxu0 0
    %2811 = vmatprep.subr.bf16.mxu0 0
    %2812 = vmatpush2.bf16.msra.mxu0 0
    %2813 = vmatprep.subr.bf16.mxu0 0
    %2814 = vmatpush2.bf16.msra.mxu0 0
    %2815 = vmatprep.subr.bf16.mxu0 0
    %2816 = vmatpush2.bf16.msra.mxu0 0
    %2817 = vmatprep.subr.bf16.mxu0 0
    %2818 = vmatpush2.bf16.msra.mxu0 0
    %2819 = vmatprep.subr.bf16.mxu0 0
    %2820 = vmatpush2.bf16.msra.mxu0 0
    %2821 = vmatprep.subr.bf16.mxu0 0
    %2822 = vmatpush2.bf16.msra.mxu0 0
    %2823 = vmatprep.mubr.bf16.mxu0 0
    %2824 = vmatmul.mubr.bf16.gmra.mxu0 %v2789
    %v2825 = vpop.f32.mrf.mxu0
    %v2826 = vadd.f32 %v2762, %v2825
    %v2827 = vpop.f32.mrf.mxu0
    %v2828 = vpop.f32.mrf.mxu0
    %v2829 = vadd.f32 %v2762, %v2828
    %v2830 = vpop.f32.mrf.mxu0
    %2831 = vdwg.mxu0
    %v2832 = vadd.f32 %v2656, %v2826
    %v2833 = vadd.f32 %v2657, %v2829
    %s2834 = scalar_lea.vmem %s14, 1
    %v2835 = vld [vmem:[%s2834] sm:$0x1]
    %s2836 = scalar_lea.vmem %s15, 1
    %v2837 = vld [vmem:[%s2836] sm:$0x1]
    %v2838 = vsel %vm167, %v2832, 0.0
    %2839 = vadd.xlane.f32.xlu0 %v2838
    %v2840 = vpop.xlane.xlu0 %2839
    %v2841 = vsel %vm167, %v2833, 0.0
    %2842 = vadd.xlane.f32.xlu0 %v2841
    %v2843 = vpop.xlane.xlu0 %2842
    %v2844 = vmul.f32 %v2840, %v174
    %v2845 = vmul.f32 %v2843, %v174
    %v2846 = vsub.f32 %v2832, %v2844
    %v2847 = vsub.f32 %v2833, %v2845
    %v2848 = vmul.f32 %v2846, %v2846
    %v2849 = vmul.f32 %v2847, %v2847
    %v2850 = vsel %vm167, %v2848, 0.0
    %2851 = vadd.xlane.f32.xlu0 %v2850
    %v2852 = vpop.xlane.xlu0 %2851
    %v2853 = vsel %vm167, %v2849, 0.0
    %2854 = vadd.xlane.f32.xlu0 %v2853
    %v2855 = vpop.xlane.xlu0 %2854
    %v2856 = vmul.f32 %v2852, %v174
    %v2857 = vmul.f32 %v2855, %v174
    %v2858 = vadd.f32 %v2856, 1e-12
    %v2859 = vadd.f32 %v2857, 1e-12
    %v2860 = vrsqrt.pop %v2858
    %v2861 = vrsqrt.pop %v2859
    %v2862 = vmul.f32 %v2846, %v2860
    %v2863 = vmul.f32 %v2847, %v2861
    %v2865 = vlaneseq
    %v2866 = vshrl.u32 %v2865, 7
    %v2867 = vsub.s32 0, %v2866
    %v2868 = vrot.slane %v2835, %v2867
    %v2870 = vmul.f32 %v2862, %v2868
    %v2871 = vmul.f32 %v2863, %v2868
    %v2873 = vlaneseq
    %v2874 = vshrl.u32 %v2873, 7
    %v2875 = vsub.s32 0, %v2874
    %v2876 = vrot.slane %v2837, %v2875
    %v2878 = vadd.f32 %v2870, %v2876
    %v2879 = vadd.f32 %v2871, %v2876
    %v2880 = vld [vmem:[%s16] sm:$0xf]
    %v2881 = vld [vmem:[%s16 + $0x4] sm:$0xf]
    %v2882 = vld [vmem:[%s16 + $0x8] sm:$0xf]
    %v2883 = vld [vmem:[%s16 + $0xc] sm:$0xf]
    %v2884 = vpack.c.bf16 %v2878, %v2878
    %v2885 = vld [vmem:[%s17] sm:$0x1]
    %v2890 = vunpack.c.l.b16 %v2880
    %v2891 = vunpack.c.l.b16 %v2881
    %v2892 = vunpack.c.l.b16 %v2882
    %v2893 = vunpack.c.l.b16 %v2883
    %v2894 = vpack.c.b16 %v2891, %v2890
    %v2895 = vpack.c.b16 %v2893, %v2892
    %v2899 = vsel %vm167, %v2884, 0
    %2901 = vmatprep.subr.bf16.mxu0 0
    %2902 = vmatpush1.bf16.msra.mxu0 0
    %2903 = vmatprep.subr.bf16.mxu0 0
    %2904 = vmatpush1.bf16.msra.mxu0 0
    %2905 = vmatprep.subr.bf16.mxu0 0
    %2906 = vmatpush1.bf16.msra.mxu0 0
    %2907 = vmatprep.subr.bf16.mxu0 0
    %2908 = vmatpush1.bf16.msra.mxu0 0
    %2909 = vmatprep.subr.bf16.mxu0 0
    %2910 = vmatpush1.bf16.msra.mxu0 0
    %2911 = vmatprep.subr.bf16.mxu0 0
    %2912 = vmatpush1.bf16.msra.mxu0 0
    %2913 = vmatprep.subr.bf16.mxu0 0
    %2914 = vmatpush1.bf16.msra.mxu0 %v2895
    %2915 = vmatprep.subr.bf16.mxu0 0
    %2916 = vmatpush1.bf16.msra.mxu0 %v2894
    %2917 = vmatprep.subr.bf16.mxu0 0
    %2918 = vmatpush2.bf16.msra.mxu0 0
    %2919 = vmatprep.subr.bf16.mxu0 0
    %2920 = vmatpush2.bf16.msra.mxu0 0
    %2921 = vmatprep.subr.bf16.mxu0 0
    %2922 = vmatpush2.bf16.msra.mxu0 0
    %2923 = vmatprep.subr.bf16.mxu0 0
    %2924 = vmatpush2.bf16.msra.mxu0 0
    %2925 = vmatprep.subr.bf16.mxu0 0
    %2926 = vmatpush2.bf16.msra.mxu0 0
    %2927 = vmatprep.subr.bf16.mxu0 0
    %2928 = vmatpush2.bf16.msra.mxu0 0
    %2929 = vmatprep.subr.bf16.mxu0 0
    %2930 = vmatpush2.bf16.msra.mxu0 0
    %2931 = vmatprep.subr.bf16.mxu0 0
    %2932 = vmatpush2.bf16.msra.mxu0 0
    %2933 = vmatprep.mubr.bf16.mxu0 0
    %2934 = vmatmul.mubr.bf16.gmra.mxu0 %v2899
    %v2935 = vpop.f32.mrf.mxu0
    %v2936 = vadd.f32 %v2885, %v2935
    %v2937 = vpop.f32.mrf.mxu0
    %v2938 = vpop.f32.mrf.mxu0
    %v2939 = vpop.f32.mrf.mxu0
    %2940 = vdwg.mxu0
    %v2941 = vtanh.pop %v2936
    %v2942 = vld [vmem:[%s18] sm:$0x1]
    %v2943 = vpack.c.bf16 %v2941, %v2941
    %v2944 = vunpack.c.l.bf16 %v2943
    %v2945 = vunpack.c.l.bf16 %v2942
    %v2946 = vmul.f32 %v2944, %v2945
    %vm2947 = vcmask 253952
    %v2948 = vsel %vm2947, %v2946, 0.0
    %2949 = vadd.xlane.f32.xlu0 %v2948
    %v2950 = vpop.xlane.xlu0 %2949
    %v2951 = vld [vmem:[#allocation2] sm:$0x1]
    %v2952 = vadd.f32 %v2950, %v2951
    %v2953 = vxor.u32 %v2952, 2147483648
    %v2954 = vmul.f32 %v2953, 1.442695
    %v2955 = vpow.pop %v2954
    %v2956 = vadd.f32 %v2955, 1.0
    %v2957 = vrcp.pop %v2956
    %v2958 = vmul.f32 1.0, %v2957
    %v2959 = vpack.c.bf16 %v2879, %v2879
    %v2961 = vsel %vm167, %v2959, 0
    %2963 = vmatprep.subr.bf16.mxu0 0
    %2964 = vmatpush1.bf16.msra.mxu0 0
    %2965 = vmatprep.subr.bf16.mxu0 0
    %2966 = vmatpush1.bf16.msra.mxu0 0
    %2967 = vmatprep.subr.bf16.mxu0 0
    %2968 = vmatpush1.bf16.msra.mxu0 0
    %2969 = vmatprep.subr.bf16.mxu0 0
    %2970 = vmatpush1.bf16.msra.mxu0 0
    %2971 = vmatprep.subr.bf16.mxu0 0
    %2972 = vmatpush1.bf16.msra.mxu0 0
    %2973 = vmatprep.subr.bf16.mxu0 0
    %2974 = vmatpush1.bf16.msra.mxu0 0
    %2975 = vmatprep.subr.bf16.mxu0 0
    %2976 = vmatpush1.bf16.msra.mxu0 %v2895
    %2977 = vmatprep.subr.bf16.mxu0 0
    %2978 = vmatpush1.bf16.msra.mxu0 %v2894
    %2979 = vmatprep.subr.bf16.mxu0 0
    %2980 = vmatpush2.bf16.msra.mxu0 0
    %2981 = vmatprep.subr.bf16.mxu0 0
    %2982 = vmatpush2.bf16.msra.mxu0 0
    %2983 = vmatprep.subr.bf16.mxu0 0
    %2984 = vmatpush2.bf16.msra.mxu0 0
    %2985 = vmatprep.subr.bf16.mxu0 0
    %2986 = vmatpush2.bf16.msra.mxu0 0
    %2987 = vmatprep.subr.bf16.mxu0 0
    %2988 = vmatpush2.bf16.msra.mxu0 0
    %2989 = vmatprep.subr.bf16.mxu0 0
    %2990 = vmatpush2.bf16.msra.mxu0 0
    %2991 = vmatprep.subr.bf16.mxu0 0
    %2992 = vmatpush2.bf16.msra.mxu0 0
    %2993 = vmatprep.subr.bf16.mxu0 0
    %2994 = vmatpush2.bf16.msra.mxu0 0
    %2995 = vmatprep.mubr.bf16.mxu0 0
    %2996 = vmatmul.mubr.bf16.gmra.mxu0 %v2961
    %v2997 = vpop.f32.mrf.mxu0
    %v2998 = vadd.f32 %v2885, %v2997
    %v2999 = vpop.f32.mrf.mxu0
    %v3000 = vpop.f32.mrf.mxu0
    %v3001 = vpop.f32.mrf.mxu0
    %3002 = vdwg.mxu0
    %v3003 = vtanh.pop %v2998
    %v3004 = vpack.c.bf16 %v3003, %v3003
    %v3005 = vunpack.c.l.bf16 %v3004
    %v3006 = vmul.f32 %v3005, %v2945
    %v3007 = vsel %vm2947, %v3006, 0.0
    %3008 = vadd.xlane.f32.xlu0 %v3007
    %v3009 = vpop.xlane.xlu0 %3008
    %v3010 = vadd.f32 %v3009, %v2951
    %v3011 = vxor.u32 %v3010, 2147483648
    %v3012 = vmul.f32 %v3011, 1.442695
    %v3013 = vpow.pop %v3012
    %v3014 = vadd.f32 %v3013, 1.0
    %v3015 = vrcp.pop %v3014
    %v3016 = vmul.f32 1.0, %v3015
    %3018 = vrot.lane.b32.xlu0 %v3016, 1
    %v3019 = vpop.permute.xlu0 %3018
    %vm3021 = vcmask 7168
    %v3022 = vsel %vm3021, %v2958, %v3019
    %vm3023 = vcmask 8192
    %3024 = vst.msk [vmem:[#allocation15] sm:$0x1] %vm3023, %v3022
    // Predicated region
    $region110: #{tpu_custom_call.1} parent=1 // pred_check
      _
    $region111: #{tpu_custom_call.1} parent=1 // pred_check_branch
      %3026 = sbr.rel (0) target = $region113
    $region112: #{tpu_custom_call.1} parent=1 // pred_region
      %s3028 = ssub.s32 16, 16
      %3029 = vsyncadd [#allocation5], %s3028
      %s3031 = sshll.u32 [#allocation15], 4
      %s3032 = int_to_ptr.vmem [resolvable:$true] %s3031
      %3034 = dma.vmem_to_hbm [thread:$0]  %s3032, 16, %s20, [#allocation5]
    $region113: #{tpu_custom_call.1} parent=1 // pred_fallthru
      _
    // Predicated region
    $region114: #{tpu_custom_call.1} parent=1 // pred_check
      _
    $region115: #{tpu_custom_call.1} parent=1 // pred_check_branch
      %3036 = sbr.rel (0) target = $region117
    $region116: #{tpu_custom_call.1} parent=1 // pred_region
      %3037 = dma.done [#allocation5], 16
    $region117: #{tpu_custom_call.1} parent=1 // pred_fallthru
      _
    %3038 = vsyncpa [#allocation4], 1
    %3039 = vsyncpa [#allocation7], 1
    %3040 = vsyncpa [#allocation10], 1
    %3041 = vsyncpa [#allocation13], 1
    %3042 = vsyncpa [#allocation5], 1

</llo_original>
